<compile_context>
chip_gen: v7x
topology: tpu7x:2x2x1
jax: 0.10.0
libtpu: 0.0.40
codegen_flags: <defaults>
</compile_context>

<pallas_src>
import math

import jax
import jax.numpy as jnp
from jax.experimental import pallas as pl
from jax.experimental.pallas import tpu as pltpu

# ---- synthetic, scaled-down "trocr-small" decoder config ----
VOCAB = 128          # (real model: 64044)
D_MODEL = 32         # (real: 256)
N_HEADS = 4          # (real: 8)
HEAD_DIM = D_MODEL // N_HEADS
FFN_DIM = 64         # (real: 1024)
N_LAYERS = 2         # (real: 6)
MAX_LEN = 8          # decoder seq len (torch script: max_length=32)
ENC_LEN = 16         # encoder_seq_len (torch script: 197)
MAX_POS = 64
POS_OFFSET = 2       # TrOCRLearnedPositionalEmbedding offset
LN_EPS = 1e-5
NEG_INF = -1e30      # plain Python float (a jnp scalar here becomes a captured constant)
LM_TILE_V = 128      # vocab tile for the lm_head grid (multiple of 128)
VOCAB_PAD = ((VOCAB + LM_TILE_V - 1) // LM_TILE_V) * LM_TILE_V


# ---------------- fused decoder body: embedding LN -> N decoder layers ----------------
def _decoder_body_kernel(
    emb_ref, enc_ref,
    sa_qkv_w_ref, sa_qkv_b_ref, sa_o_w_ref, sa_o_b_ref,
    xa_q_w_ref, xa_q_b_ref, xa_kv_w_ref, xa_kv_b_ref, xa_o_w_ref, xa_o_b_ref,
    fc1_w_ref, fc1_b_ref, fc2_w_ref, fc2_b_ref,
    ln_g_ref, ln_b_ref,
    h_out_ref,
    attn_ref,                                  # (S, D) f32 VMEM scratch (head concat)
):
    S = emb_ref.shape[0]
    D = D_MODEL
    bf16 = jnp.bfloat16

    def layer_norm(x, idx):
        g = ln_g_ref[idx:idx + 1, :]
        b = ln_b_ref[idx:idx + 1, :]
        mu = jnp.mean(x, axis=-1, keepdims=True)
        var = jnp.mean(x * x, axis=-1, keepdims=True) - mu * mu   # one-pass variance
        return (x - mu) * jax.lax.rsqrt(var + LN_EPS) * g + b

    def attn_heads(q, k, v, mask_bias):
        # q: (S, D) f32, k/v: (T, D) f32; all heads packed along the lane axis.
        q = q.astype(bf16)
        k = k.astype(bf16)
        v = v.astype(bf16)
        for hd in range(N_HEADS):              # static unroll over heads
            sl = slice(hd * HEAD_DIM, (hd + 1) * HEAD_DIM)
            # scores = qh @ kh^T without an explicit transpose (contract last dims)
            s = jax.lax.dot_general(q[:, sl], k[:, sl], (((1,), (1,)), ((), ())),
                                    preferred_element_type=jnp.float32)
            if mask_bias is not None:
                s = s + mask_bias
            m = jnp.max(s, axis=-1, keepdims=True)
            p = jnp.exp(s - m)
            p = p * pl.reciprocal(jnp.sum(p, axis=-1, keepdims=True), approx=True)
            attn_ref[:, sl] = jnp.dot(p.astype(bf16), v[:, sl],
                                      preferred_element_type=jnp.float32)
        return attn_ref[...].astype(bf16)      # (S, D), all heads concatenated on lanes

    # additive causal mask bias, built once per call
    row = jax.lax.broadcasted_iota(jnp.int32, (S, S), 0)
    col = jax.lax.broadcasted_iota(jnp.int32, (S, S), 1)
    causal_bias = jnp.where(col <= row, 0.0, NEG_INF).astype(jnp.float32)

    enc = enc_ref[...]                         # (ENC_LEN, D) bf16 (MXU operand only)
    h = layer_norm(emb_ref[...], 0)            # embedding LayerNorm (f32)

    for l in range(N_LAYERS):                  # static unroll (N_LAYERS = 2)
        # ---- causal self-attention (q-scaling folded into packed weights) ----
        qkv = jnp.dot(h.astype(bf16), sa_qkv_w_ref[l],
                      preferred_element_type=jnp.float32) + sa_qkv_b_ref[l]
        ctx = attn_heads(qkv[:, :D], qkv[:, D:2 * D], qkv[:, 2 * D:], causal_bias)
        a = jnp.dot(ctx, sa_o_w_ref[l],
                    preferred_element_type=jnp.float32) + sa_o_b_ref[l]
        h = layer_norm(a + h, 1 + 3 * l + 0)

        # ---- cross-attention over encoder hidden states ----
        q = jnp.dot(h.astype(bf16), xa_q_w_ref[l],
                    preferred_element_type=jnp.float32) + xa_q_b_ref[l]
        kv = jnp.dot(enc, xa_kv_w_ref[l],
                     preferred_element_type=jnp.float32) + xa_kv_b_ref[l]
        ctx = attn_heads(q, kv[:, :D], kv[:, D:], None)
        a = jnp.dot(ctx, xa_o_w_ref[l],
                    preferred_element_type=jnp.float32) + xa_o_b_ref[l]
        h = layer_norm(a + h, 1 + 3 * l + 1)

        # ---- feed-forward (ReLU, as in trocr-small) ----
        f = jnp.dot(h.astype(bf16), fc1_w_ref[l],
                    preferred_element_type=jnp.float32) + fc1_b_ref[l]
        f = jnp.maximum(f, 0.0)
        f = jnp.dot(f.astype(bf16), fc2_w_ref[l],
                    preferred_element_type=jnp.float32) + fc2_b_ref[l]
        h = layer_norm(f + h, 1 + 3 * l + 2)

    h_out_ref[...] = h.astype(h_out_ref.dtype)


# ---------------- lm_head: vocab-tiled grid (no bias) ----------------
def _lm_head_kernel(h_ref, w_ref, out_ref):
    out_ref[...] = jnp.dot(h_ref[...], w_ref[...], preferred_element_type=jnp.float32)


def _fused_forward(emb, enc_bf16, body_weights, lm_w):
    S = emb.shape[0]
    vmem = pltpu.MemorySpace.VMEM
    n_inputs = 2 + len(body_weights)

    h = pl.pallas_call(
        _decoder_body_kernel,
        out_shape=jax.ShapeDtypeStruct((S, D_MODEL), jnp.bfloat16),
        in_specs=[pl.BlockSpec(memory_space=vmem)] * n_inputs,
        out_specs=pl.BlockSpec(memory_space=vmem),
        scratch_shapes=[pltpu.VMEM((S, D_MODEL), jnp.float32)],
    )(emb, enc_bf16, *body_weights)

    # Vocab-tiled lm_head: bf16 weight streamed per tile, lane-dense (S, TILE_V) stores,
    # "parallel" vocab axis (megacore on v7x).  Only 1 tile at this scaled-down config.
    logits = pl.pallas_call(
        _lm_head_kernel,
        out_shape=jax.ShapeDtypeStruct((S, VOCAB_PAD), jnp.float32),
        grid=(VOCAB_PAD // LM_TILE_V,),
        in_specs=[pl.BlockSpec((S, D_MODEL), lambda j: (0, 0)),
                  pl.BlockSpec((D_MODEL, LM_TILE_V), lambda j: (0, j))],
        out_specs=pl.BlockSpec((S, LM_TILE_V), lambda j: (0, j)),
        compiler_params=pltpu.CompilerParams(dimension_semantics=("parallel",)),
    )(h, lm_w)
    return logits[:, :VOCAB]          # drop vocab padding (no-op at this config)


# ---------------- parameters ----------------
def init_params(key):
    keys = iter(jax.random.split(key, 512))

    def w(shape, scale=0.02):
        return (scale * jax.random.normal(next(keys), shape)).astype(jnp.float32)

    def bias(shape):
        return w(shape, 0.02)

    def gamma(shape):
        return (1.0 + 0.05 * jax.random.normal(next(keys), shape)).astype(jnp.float32)

    params = {
        "tok_emb": w((VOCAB, D_MODEL)),
        "pos_emb": w((MAX_POS + POS_OFFSET, D_MODEL)),
        "emb_ln_g": gamma((D_MODEL,)), "emb_ln_b": bias((D_MODEL,)),
        "lm_head": w((D_MODEL, VOCAB)),     # output_projection, no bias
        "layers": [],
    }
    for _ in range(N_LAYERS):
        params["layers"].append({
            "q_w": w((D_MODEL, D_MODEL)), "q_b": bias((D_MODEL,)),
            "k_w": w((D_MODEL, D_MODEL)), "k_b": bias((D_MODEL,)),
            "v_w": w((D_MODEL, D_MODEL)), "v_b": bias((D_MODEL,)),
            "o_w": w((D_MODEL, D_MODEL)), "o_b": bias((D_MODEL,)),
            "sa_ln_g": gamma((D_MODEL,)), "sa_ln_b": bias((D_MODEL,)),
            "xq_w": w((D_MODEL, D_MODEL)), "xq_b": bias((D_MODEL,)),
            "xk_w": w((D_MODEL, D_MODEL)), "xk_b": bias((D_MODEL,)),
            "xv_w": w((D_MODEL, D_MODEL)), "xv_b": bias((D_MODEL,)),
            "xo_w": w((D_MODEL, D_MODEL)), "xo_b": bias((D_MODEL,)),
            "xa_ln_g": gamma((D_MODEL,)), "xa_ln_b": bias((D_MODEL,)),
            "fc1_w": w((D_MODEL, FFN_DIM)), "fc1_b": bias((FFN_DIM,)),
            "fc2_w": w((FFN_DIM, D_MODEL)), "fc2_b": bias((D_MODEL,)),
            "ff_ln_g": gamma((D_MODEL,)), "ff_ln_b": bias((D_MODEL,)),
        })
    return params


def pack_params(params):
    """Pack per-layer params into lane-dense stacked arrays for the kernels.
    Attention q-scaling (HEAD_DIM**-0.5) is folded into the q weights/biases here;
    matmul weights are cast to bf16, biases / LN params stay f32."""
    scaling = HEAD_DIM ** -0.5
    bf = jnp.bfloat16

    sa_qkv_w, sa_qkv_b = [], []
    sa_o_w, sa_o_b = [], []
    xa_q_w, xa_q_b = [], []
    xa_kv_w, xa_kv_b = [], []
    xa_o_w, xa_o_b = [], []
    fc1_w, fc1_b, fc2_w, fc2_b = [], [], [], []
    ln_g = [params["emb_ln_g"]]
    ln_b = [params["emb_ln_b"]]

    for p in params["layers"]:
        sa_qkv_w.append(jnp.concatenate([p["q_w"] * scaling, p["k_w"], p["v_w"]], axis=1))
        sa_qkv_b.append(jnp.concatenate([p["q_b"] * scaling, p["k_b"], p["v_b"]])
                        .reshape(1, 3 * D_MODEL))
        sa_o_w.append(p["o_w"])
        sa_o_b.append(p["o_b"].reshape(1, D_MODEL))

        xa_q_w.append(p["xq_w"] * scaling)
        xa_q_b.append((p["xq_b"] * scaling).reshape(1, D_MODEL))
        xa_kv_w.append(jnp.concatenate([p["xk_w"], p["xv_w"]], axis=1))
        xa_kv_b.append(jnp.concatenate([p["xk_b"], p["xv_b"]]).reshape(1, 2 * D_MODEL))
        xa_o_w.append(p["xo_w"])
        xa_o_b.append(p["xo_b"].reshape(1, D_MODEL))

        fc1_w.append(p["fc1_w"])
        fc1_b.append(p["fc1_b"].reshape(1, FFN_DIM))
        fc2_w.append(p["fc2_w"])
        fc2_b.append(p["fc2_b"].reshape(1, D_MODEL))

        ln_g += [p["sa_ln_g"], p["xa_ln_g"], p["ff_ln_g"]]
        ln_b += [p["sa_ln_b"], p["xa_ln_b"], p["ff_ln_b"]]

    body_weights = (
        jnp.stack(sa_qkv_w).astype(bf),      # (L, D, 3D)   q|k|v fused, lane-dense
        jnp.stack(sa_qkv_b),                 # (L, 1, 3D)   f32
        jnp.stack(sa_o_w).astype(bf),        # (L, D, D)
        jnp.stack(sa_o_b),                   # (L, 1, D)
        jnp.stack(xa_q_w).astype(bf),        # (L, D, D)
        jnp.stack(xa_q_b),                   # (L, 1, D)
        jnp.stack(xa_kv_w).astype(bf),       # (L, D, 2D)   k|v fused
        jnp.stack(xa_kv_b),                  # (L, 1, 2D)
        jnp.stack(xa_o_w).astype(bf),        # (L, D, D)
        jnp.stack(xa_o_b),                   # (L, 1, D)
        jnp.stack(fc1_w).astype(bf),         # (L, D, F)
        jnp.stack(fc1_b),                    # (L, 1, F)
        jnp.stack(fc2_w).astype(bf),         # (L, F, D)
        jnp.stack(fc2_b),                    # (L, 1, D)
        jnp.stack(ln_g),                     # (1+3L, D)    emb, then (sa, xa, ff) / layer
        jnp.stack(ln_b),                     # (1+3L, D)
    )

    lm_w = params["lm_head"]
    if VOCAB_PAD != VOCAB:
        lm_w = jnp.pad(lm_w, ((0, 0), (0, VOCAB_PAD - VOCAB)))
    lm_w = lm_w.astype(bf)                   # (D, VOCAB_PAD) bf16, lane-dense tiles

    return {"tok_emb": params["tok_emb"], "pos_emb": params["pos_emb"],
            "body_weights": body_weights, "lm_w": lm_w}


# ---------------- forward (DecoderWrapper.forward -> logits) ----------------
@jax.jit
def decoder_wrapper_forward(packed, decoder_input_ids, encoder_hidden_states):
    ids = decoder_input_ids[0]                              # (S,)   batch = 1
    enc = encoder_hidden_states[0].astype(jnp.bfloat16)     # (Senc, D), MXU operand only
    S = ids.shape[0]
    embed_scale = math.sqrt(D_MODEL)                        # scale_embedding=True
    # TODO(synk): token-embedding gather kept in plain JAX (no useful Pallas gather at this size).
    tok = jnp.take(packed["tok_emb"], ids, axis=0) * embed_scale
    pos = packed["pos_emb"][POS_OFFSET:POS_OFFSET + S]
    emb = (tok + pos).astype(jnp.float32)
    logits = _fused_forward(emb, enc, packed["body_weights"], packed["lm_w"])
    return logits[None]                                     # (1, S, VOCAB)


# ---------------- plain-JAX reference (for correctness check) ----------------
def reference_forward(params, decoder_input_ids, encoder_hidden_states):
    ids = decoder_input_ids[0]
    enc = encoder_hidden_states[0]
    S = ids.shape[0]
    scaling = HEAD_DIM ** -0.5

    def lnorm(x, g, b):
        mu = x.mean(-1, keepdims=True)
        var = jnp.square(x - mu).mean(-1, keepdims=True)
        return (x - mu) * jax.lax.rsqrt(var + LN_EPS) * g + b

    def split(x):
        return x.reshape(x.shape[0], N_HEADS, HEAD_DIM).transpose(1, 0, 2)

    def attn(q, k, v, causal):
        s = jnp.einsum("hqd,hkd->hqk", q, k, precision="highest")
        if causal:
            mask = jnp.tril(jnp.ones((s.shape[1], s.shape[2]), bool))
            s = jnp.where(mask, s, -1e30)
        p = jax.nn.softmax(s, axis=-1)
        o = jnp.einsum("hqk,hkd->hqd", p, v, precision="highest")
        return o.transpose(1, 0, 2).reshape(o.shape[1], -1)

    def dense(x, w, b=None):
        y = jnp.dot(x, w, precision="highest")
        return y if b is None else y + b

    tok = jnp.take(params["tok_emb"], ids, axis=0) * math.sqrt(D_MODEL)
    pos = params["pos_emb"][POS_OFFSET:POS_OFFSET + S]
    h = lnorm(tok + pos, params["emb_ln_g"], params["emb_ln_b"])
    for p in params["layers"]:
        q = dense(h, p["q_w"], p["q_b"]) * scaling
        k = dense(h, p["k_w"], p["k_b"])
        v = dense(h, p["v_w"], p["v_b"])
        a = dense(attn(split(q), split(k), split(v), True), p["o_w"], p["o_b"])
        h = lnorm(a + h, p["sa_ln_g"], p["sa_ln_b"])
        q = dense(h, p["xq_w"], p["xq_b"]) * scaling
        k = dense(enc, p["xk_w"], p["xk_b"])
        v = dense(enc, p["xv_w"], p["xv_b"])
        a = dense(attn(split(q), split(k), split(v), False), p["xo_w"], p["xo_b"])
        h = lnorm(a + h, p["xa_ln_g"], p["xa_ln_b"])
        f = jnp.maximum(dense(h, p["fc1_w"], p["fc1_b"]), 0.0)
        f = dense(f, p["fc2_w"], p["fc2_b"])
        h = lnorm(f + h, p["ff_ln_g"], p["ff_ln_b"])
    return dense(h, params["lm_head"])[None]


if __name__ == "__main__":
    root = jax.random.PRNGKey(0)
    kp, ke = jax.random.split(root)
    params = init_params(kp)
    packed = pack_params(params)

    # Inputs mirror the torch script (ids all ones), shapes scaled down.
    decoder_input_ids = jnp.ones((1, MAX_LEN), dtype=jnp.int32)
    encoder_hidden_states = jax.random.normal(
        ke, (1, ENC_LEN, D_MODEL), dtype=jnp.float32)

    logits = decoder_wrapper_forward(packed, decoder_input_ids, encoder_hidden_states)
    logits = jax.block_until_ready(logits)
    assert logits.shape == (1, MAX_LEN, VOCAB) and logits.dtype == jnp.float32
    assert bool(jnp.all(jnp.isfinite(logits)))

    ref = reference_forward(params, decoder_input_ids, encoder_hidden_states)
    max_err = float(jnp.max(jnp.abs(logits - ref)))
    # Tolerance covers bf16 MXU operands + approx softmax reciprocal vs f32 reference.
    assert max_err < 3e-2, f"mismatch vs plain-JAX reference: {max_err}"
    print("KERNEL_OK")
</pallas_src>

<mosaic_0001>
module attributes {stable_mosaic.version = 11 : i64} {
  func.func @_lm_head_kernel(%arg0: i32, %arg1: memref<8x32xbf16, #tpu.memory_space<vmem>>, %arg2: memref<32x128xbf16, #tpu.memory_space<vmem>>, %arg3: memref<8x128xf32, #tpu.memory_space<vmem>>) attributes {dimension_semantics = [#tpu.dimension_semantics<parallel>], iteration_bounds = array<i64: 1>, scalar_prefetch = 0 : i64, scratch_operands = 0 : i64, tpu.core_type = #tpu.core_type<tc>, window_params = [{pipeline_mode = #tpu.pipeline_mode<synchronous>, transform_indices = @transform_0, window_bounds = array<i64: 8, 32>}, {transform_indices = @transform_1, window_bounds = array<i64: 32, 128>}, {transform_indices = @transform_2, window_bounds = array<i64: 8, 128>}]} {
    %c0 = arith.constant 0 : index
    %c0_0 = arith.constant 0 : index
    %0 = vector.load %arg1[%c0, %c0_0] : memref<8x32xbf16, #tpu.memory_space<vmem>>, vector<8x32xbf16>
    %c0_1 = arith.constant 0 : index
    %c0_2 = arith.constant 0 : index
    %1 = vector.load %arg2[%c0_1, %c0_2] : memref<32x128xbf16, #tpu.memory_space<vmem>>, vector<32x128xbf16>
    %cst = arith.constant dense<0.000000e+00> : vector<8x128xf32>
    %2 = tpu.matmul %0, %1, %cst {dimension_numbers = #tpu.dot_dimension_numbers<[1], [0], [0], [1], [0, 0, 1, 1], [], []>} : vector<8x32xbf16>, vector<32x128xbf16>, vector<8x128xf32> -> vector<8x128xf32>
    %c0_3 = arith.constant 0 : index
    %c0_4 = arith.constant 0 : index
    %3 = vector.load %arg3[%c0_3, %c0_4] : memref<8x128xf32, #tpu.memory_space<vmem>>, vector<8x128xf32>
    tpu.vector_store %arg3[%c0_3, %c0_4], %2 {strides = array<i32>} : memref<8x128xf32, #tpu.memory_space<vmem>>, vector<8x128xf32>,
    return
  }
  func.func @transform_0(%arg0: i32) -> (i32, i32) {
    %c0_i32 = arith.constant 0 : i32
    %c0_i32_0 = arith.constant 0 : i32
    %c0_i32_1 = arith.constant 0 : i32
    return %c0_i32, %c0_i32_0 : i32, i32
  }
  func.func @transform_1(%arg0: i32) -> (i32, i32) {
    %c0_i32 = arith.constant 0 : i32
    %c0_i32_0 = arith.constant 0 : i32
    return %c0_i32, %arg0 : i32, i32
  }
  func.func @transform_2(%arg0: i32) -> (i32, i32) {
    %c0_i32 = arith.constant 0 : i32
    %c0_i32_0 = arith.constant 0 : i32
    return %c0_i32, %arg0 : i32, i32
  }
}

module attributes {stable_mosaic.version = 11 : i64} {
  func.func @_decoder_body_kernel(%arg0: memref<8x32xf32, #tpu.memory_space<vmem>>, %arg1: memref<16x32xbf16, #tpu.memory_space<vmem>>, %arg2: memref<2x32x96xbf16, #tpu.memory_space<vmem>>, %arg3: memref<2x1x96xf32, #tpu.memory_space<vmem>>, %arg4: memref<2x32x32xbf16, #tpu.memory_space<vmem>>, %arg5: memref<2x1x32xf32, #tpu.memory_space<vmem>>, %arg6: memref<2x32x32xbf16, #tpu.memory_space<vmem>>, %arg7: memref<2x1x32xf32, #tpu.memory_space<vmem>>, %arg8: memref<2x32x64xbf16, #tpu.memory_space<vmem>>, %arg9: memref<2x1x64xf32, #tpu.memory_space<vmem>>, %arg10: memref<2x32x32xbf16, #tpu.memory_space<vmem>>, %arg11: memref<2x1x32xf32, #tpu.memory_space<vmem>>, %arg12: memref<2x32x64xbf16, #tpu.memory_space<vmem>>, %arg13: memref<2x1x64xf32, #tpu.memory_space<vmem>>, %arg14: memref<2x64x32xbf16, #tpu.memory_space<vmem>>, %arg15: memref<2x1x32xf32, #tpu.memory_space<vmem>>, %arg16: memref<7x32xf32, #tpu.memory_space<vmem>>, %arg17: memref<7x32xf32, #tpu.memory_space<vmem>>, %arg18: memref<8x32xbf16, #tpu.memory_space<vmem>>, %arg19: memref<8x32xf32, #tpu.memory_space<vmem>>) attributes {dimension_semantics = [], scalar_prefetch = 0 : i64, scratch_operands = 1 : i64, tpu.core_type = #tpu.core_type<tc>} {
    %0 = tpu.iota {dimensions = array<i32: 0>} : vector<8x8xi32>
    %1 = tpu.iota {dimensions = array<i32: 1>} : vector<8x8xi32>
    %2 = arith.cmpi sle, %1, %0 : vector<8x8xi32>
    %cst = arith.constant 0.000000e+00 : f32
    %cst_0 = arith.constant -1.000000e+30 : f32
    %3 = vector.broadcast %cst : f32 to vector<8x8xf32>
    %4 = vector.broadcast %cst_0 : f32 to vector<8x8xf32>
    %5 = arith.select %2, %3, %4 : vector<8x8xi1>, vector<8x8xf32>
    %c0 = arith.constant 0 : index
    %c0_1 = arith.constant 0 : index
    %6 = vector.load %arg1[%c0, %c0_1] : memref<16x32xbf16, #tpu.memory_space<vmem>>, vector<16x32xbf16>
    %c0_2 = arith.constant 0 : index
    %c0_3 = arith.constant 0 : index
    %7 = vector.load %arg0[%c0_2, %c0_3] : memref<8x32xf32, #tpu.memory_space<vmem>>, vector<8x32xf32>
    %c0_4 = arith.constant 0 : index
    %c0_5 = arith.constant 0 : index
    %8 = vector.load %arg16[%c0_4, %c0_5] : memref<7x32xf32, #tpu.memory_space<vmem>>, vector<1x32xf32>
    %c0_6 = arith.constant 0 : index
    %c0_7 = arith.constant 0 : index
    %9 = vector.load %arg17[%c0_6, %c0_7] : memref<7x32xf32, #tpu.memory_space<vmem>>, vector<1x32xf32>
    %cst_8 = arith.constant dense<0.000000e+00> : vector<8xf32>
    %10 = vector.multi_reduction <add>, %7, %cst_8 [1] : vector<8x32xf32> to vector<8xf32>
    %11 = vector.shape_cast %10 : vector<8xf32> to vector<8x1xf32>
    %cst_9 = arith.constant 3.200000e+01 : f32
    %12 = vector.broadcast %cst_9 : f32 to vector<8x1xf32>
    %13 = arith.divf %11, %12 : vector<8x1xf32>
    %14 = arith.mulf %7, %7 : vector<8x32xf32>
    %cst_10 = arith.constant dense<0.000000e+00> : vector<8xf32>
    %15 = vector.multi_reduction <add>, %14, %cst_10 [1] : vector<8x32xf32> to vector<8xf32>
    %16 = vector.shape_cast %15 : vector<8xf32> to vector<8x1xf32>
    %cst_11 = arith.constant 3.200000e+01 : f32
    %17 = vector.broadcast %cst_11 : f32 to vector<8x1xf32>
    %18 = arith.divf %16, %17 : vector<8x1xf32>
    %19 = arith.mulf %13, %13 : vector<8x1xf32>
    %20 = arith.subf %18, %19 : vector<8x1xf32>
    %21 = vector.broadcast %13 : vector<8x1xf32> to vector<8x32xf32>
    %22 = arith.subf %7, %21 : vector<8x32xf32>
    %cst_12 = arith.constant 9.99999974E-6 : f32
    %23 = vector.broadcast %cst_12 : f32 to vector<8x1xf32>
    %24 = arith.addf %20, %23 : vector<8x1xf32>
    %25 = math.rsqrt %24 : vector<8x1xf32>
    %26 = vector.broadcast %25 : vector<8x1xf32> to vector<8x32xf32>
    %27 = arith.mulf %22, %26 : vector<8x32xf32>
    %28 = vector.broadcast %8 : vector<1x32xf32> to vector<8x32xf32>
    %29 = arith.mulf %27, %28 : vector<8x32xf32>
    %30 = vector.broadcast %9 : vector<1x32xf32> to vector<8x32xf32>
    %31 = arith.addf %29, %30 : vector<8x32xf32>
    %32 = arith.truncf %31 : vector<8x32xf32> to vector<8x32xbf16>
    %c0_13 = arith.constant 0 : index
    %c0_14 = arith.constant 0 : index
    %c0_15 = arith.constant 0 : index
    %33 = vector.load %arg2[%c0_13, %c0_14, %c0_15] : memref<2x32x96xbf16, #tpu.memory_space<vmem>>, vector<1x32x96xbf16>
    %34 = vector.shape_cast %33 : vector<1x32x96xbf16> to vector<32x96xbf16>
    %cst_16 = arith.constant dense<0.000000e+00> : vector<8x96xf32>
    %35 = tpu.matmul %32, %34, %cst_16 {dimension_numbers = #tpu.dot_dimension_numbers<[1], [0], [0], [1], [0, 0, 1, 1], [], []>} : vector<8x32xbf16>, vector<32x96xbf16>, vector<8x96xf32> -> vector<8x96xf32>
    %c0_17 = arith.constant 0 : index
    %c0_18 = arith.constant 0 : index
    %c0_19 = arith.constant 0 : index
    %36 = vector.load %arg3[%c0_17, %c0_18, %c0_19] : memref<2x1x96xf32, #tpu.memory_space<vmem>>, vector<1x1x96xf32>
    %37 = vector.shape_cast %36 : vector<1x1x96xf32> to vector<1x96xf32>
    %38 = vector.broadcast %37 : vector<1x96xf32> to vector<8x96xf32>
    %39 = arith.addf %35, %38 : vector<8x96xf32>
    %40 = vector.extract_strided_slice %39 {offsets = [0, 0], sizes = [8, 32], strides = [1, 1]} : vector<8x96xf32> to vector<8x32xf32>
    %41 = vector.extract_strided_slice %39 {offsets = [0, 32], sizes = [8, 32], strides = [1, 1]} : vector<8x96xf32> to vector<8x32xf32>
    %42 = vector.extract_strided_slice %39 {offsets = [0, 64], sizes = [8, 32], strides = [1, 1]} : vector<8x96xf32> to vector<8x32xf32>
    %43 = arith.truncf %40 : vector<8x32xf32> to vector<8x32xbf16>
    %44 = arith.truncf %41 : vector<8x32xf32> to vector<8x32xbf16>
    %45 = arith.truncf %42 : vector<8x32xf32> to vector<8x32xbf16>
    %46 = vector.extract_strided_slice %43 {offsets = [0, 0], sizes = [8, 8], strides = [1, 1]} : vector<8x32xbf16> to vector<8x8xbf16>
    %47 = vector.extract_strided_slice %44 {offsets = [0, 0], sizes = [8, 8], strides = [1, 1]} : vector<8x32xbf16> to vector<8x8xbf16>
    %cst_20 = arith.constant dense<0.000000e+00> : vector<8x8xf32>
    %48 = tpu.matmul %46, %47, %cst_20 {dimension_numbers = #tpu.dot_dimension_numbers<[1], [1], [0], [0], [0, 0, 1, 0], [], []>} : vector<8x8xbf16>, vector<8x8xbf16>, vector<8x8xf32> -> vector<8x8xf32>
    %49 = arith.addf %48, %5 : vector<8x8xf32>
    %cst_21 = arith.constant dense<0xFF800000> : vector<8xf32>
    %50 = vector.multi_reduction <maximumf>, %49, %cst_21 [1] : vector<8x8xf32> to vector<8xf32>
    %51 = vector.shape_cast %50 : vector<8xf32> to vector<8x1xf32>
    %52 = vector.broadcast %51 : vector<8x1xf32> to vector<8x8xf32>
    %53 = arith.subf %49, %52 : vector<8x8xf32>
    %54 = math.exp %53 : vector<8x8xf32>
    %cst_22 = arith.constant dense<0.000000e+00> : vector<8xf32>
    %55 = vector.multi_reduction <add>, %54, %cst_22 [1] : vector<8x8xf32> to vector<8xf32>
    %56 = vector.shape_cast %55 : vector<8xf32> to vector<8x1xf32>
    %57 = tpu.reciprocal %56 {approx = true} : vector<8x1xf32> -> vector<8x1xf32>
    %58 = vector.broadcast %57 : vector<8x1xf32> to vector<8x8xf32>
    %59 = arith.mulf %54, %58 : vector<8x8xf32>
    %60 = arith.truncf %59 : vector<8x8xf32> to vector<8x8xbf16>
    %61 = vector.extract_strided_slice %45 {offsets = [0, 0], sizes = [8, 8], strides = [1, 1]} : vector<8x32xbf16> to vector<8x8xbf16>
    %cst_23 = arith.constant dense<0.000000e+00> : vector<8x8xf32>
    %62 = tpu.matmul %60, %61, %cst_23 {dimension_numbers = #tpu.dot_dimension_numbers<[1], [0], [0], [1], [0, 0, 1, 1], [], []>} : vector<8x8xbf16>, vector<8x8xbf16>, vector<8x8xf32> -> vector<8x8xf32>
    %c0_24 = arith.constant 0 : index
    %c0_25 = arith.constant 0 : index
    %63 = vector.load %arg19[%c0_24, %c0_25] : memref<8x32xf32, #tpu.memory_space<vmem>>, vector<8x8xf32>
    tpu.vector_store %arg19[%c0_24, %c0_25], %62 {strides = array<i32>} : memref<8x32xf32, #tpu.memory_space<vmem>>, vector<8x8xf32>,
    %64 = vector.extract_strided_slice %43 {offsets = [0, 8], sizes = [8, 8], strides = [1, 1]} : vector<8x32xbf16> to vector<8x8xbf16>
    %65 = vector.extract_strided_slice %44 {offsets = [0, 8], sizes = [8, 8], strides = [1, 1]} : vector<8x32xbf16> to vector<8x8xbf16>
    %cst_26 = arith.constant dense<0.000000e+00> : vector<8x8xf32>
    %66 = tpu.matmul %64, %65, %cst_26 {dimension_numbers = #tpu.dot_dimension_numbers<[1], [1], [0], [0], [0, 0, 1, 0], [], []>} : vector<8x8xbf16>, vector<8x8xbf16>, vector<8x8xf32> -> vector<8x8xf32>
    %67 = arith.addf %66, %5 : vector<8x8xf32>
    %cst_27 = arith.constant dense<0xFF800000> : vector<8xf32>
    %68 = vector.multi_reduction <maximumf>, %67, %cst_27 [1] : vector<8x8xf32> to vector<8xf32>
    %69 = vector.shape_cast %68 : vector<8xf32> to vector<8x1xf32>
    %70 = vector.broadcast %69 : vector<8x1xf32> to vector<8x8xf32>
    %71 = arith.subf %67, %70 : vector<8x8xf32>
    %72 = math.exp %71 : vector<8x8xf32>
    %cst_28 = arith.constant dense<0.000000e+00> : vector<8xf32>
    %73 = vector.multi_reduction <add>, %72, %cst_28 [1] : vector<8x8xf32> to vector<8xf32>
    %74 = vector.shape_cast %73 : vector<8xf32> to vector<8x1xf32>
    %75 = tpu.reciprocal %74 {approx = true} : vector<8x1xf32> -> vector<8x1xf32>
    %76 = vector.broadcast %75 : vector<8x1xf32> to vector<8x8xf32>
    %77 = arith.mulf %72, %76 : vector<8x8xf32>
    %78 = arith.truncf %77 : vector<8x8xf32> to vector<8x8xbf16>
    %79 = vector.extract_strided_slice %45 {offsets = [0, 8], sizes = [8, 8], strides = [1, 1]} : vector<8x32xbf16> to vector<8x8xbf16>
    %cst_29 = arith.constant dense<0.000000e+00> : vector<8x8xf32>
    %80 = tpu.matmul %78, %79, %cst_29 {dimension_numbers = #tpu.dot_dimension_numbers<[1], [0], [0], [1], [0, 0, 1, 1], [], []>} : vector<8x8xbf16>, vector<8x8xbf16>, vector<8x8xf32> -> vector<8x8xf32>
    %c0_30 = arith.constant 0 : index
    %c8 = arith.constant 8 : index
    %81 = vector.load %arg19[%c0_30, %c8] : memref<8x32xf32, #tpu.memory_space<vmem>>, vector<8x8xf32>
    tpu.vector_store %arg19[%c0_30, %c8], %80 {strides = array<i32>} : memref<8x32xf32, #tpu.memory_space<vmem>>, vector<8x8xf32>,
    %82 = vector.extract_strided_slice %43 {offsets = [0, 16], sizes = [8, 8], strides = [1, 1]} : vector<8x32xbf16> to vector<8x8xbf16>
    %83 = vector.extract_strided_slice %44 {offsets = [0, 16], sizes = [8, 8], strides = [1, 1]} : vector<8x32xbf16> to vector<8x8xbf16>
    %cst_31 = arith.constant dense<0.000000e+00> : vector<8x8xf32>
    %84 = tpu.matmul %82, %83, %cst_31 {dimension_numbers = #tpu.dot_dimension_numbers<[1], [1], [0], [0], [0, 0, 1, 0], [], []>} : vector<8x8xbf16>, vector<8x8xbf16>, vector<8x8xf32> -> vector<8x8xf32>
    %85 = arith.addf %84, %5 : vector<8x8xf32>
    %cst_32 = arith.constant dense<0xFF800000> : vector<8xf32>
    %86 = vector.multi_reduction <maximumf>, %85, %cst_32 [1] : vector<8x8xf32> to vector<8xf32>
    %87 = vector.shape_cast %86 : vector<8xf32> to vector<8x1xf32>
    %88 = vector.broadcast %87 : vector<8x1xf32> to vector<8x8xf32>
    %89 = arith.subf %85, %88 : vector<8x8xf32>
    %90 = math.exp %89 : vector<8x8xf32>
    %cst_33 = arith.constant dense<0.000000e+00> : vector<8xf32>
    %91 = vector.multi_reduction <add>, %90, %cst_33 [1] : vector<8x8xf32> to vector<8xf32>
    %92 = vector.shape_cast %91 : vector<8xf32> to vector<8x1xf32>
    %93 = tpu.reciprocal %92 {approx = true} : vector<8x1xf32> -> vector<8x1xf32>
    %94 = vector.broadcast %93 : vector<8x1xf32> to vector<8x8xf32>
    %95 = arith.mulf %90, %94 : vector<8x8xf32>
    %96 = arith.truncf %95 : vector<8x8xf32> to vector<8x8xbf16>
    %97 = vector.extract_strided_slice %45 {offsets = [0, 16], sizes = [8, 8], strides = [1, 1]} : vector<8x32xbf16> to vector<8x8xbf16>
    %cst_34 = arith.constant dense<0.000000e+00> : vector<8x8xf32>
    %98 = tpu.matmul %96, %97, %cst_34 {dimension_numbers = #tpu.dot_dimension_numbers<[1], [0], [0], [1], [0, 0, 1, 1], [], []>} : vector<8x8xbf16>, vector<8x8xbf16>, vector<8x8xf32> -> vector<8x8xf32>
    %c0_35 = arith.constant 0 : index
    %c16 = arith.constant 16 : index
    %99 = vector.load %arg19[%c0_35, %c16] : memref<8x32xf32, #tpu.memory_space<vmem>>, vector<8x8xf32>
    tpu.vector_store %arg19[%c0_35, %c16], %98 {strides = array<i32>} : memref<8x32xf32, #tpu.memory_space<vmem>>, vector<8x8xf32>,
    %100 = vector.extract_strided_slice %43 {offsets = [0, 24], sizes = [8, 8], strides = [1, 1]} : vector<8x32xbf16> to vector<8x8xbf16>
    %101 = vector.extract_strided_slice %44 {offsets = [0, 24], sizes = [8, 8], strides = [1, 1]} : vector<8x32xbf16> to vector<8x8xbf16>
    %cst_36 = arith.constant dense<0.000000e+00> : vector<8x8xf32>
    %102 = tpu.matmul %100, %101, %cst_36 {dimension_numbers = #tpu.dot_dimension_numbers<[1], [1], [0], [0], [0, 0, 1, 0], [], []>} : vector<8x8xbf16>, vector<8x8xbf16>, vector<8x8xf32> -> vector<8x8xf32>
    %103 = arith.addf %102, %5 : vector<8x8xf32>
    %cst_37 = arith.constant dense<0xFF800000> : vector<8xf32>
    %104 = vector.multi_reduction <maximumf>, %103, %cst_37 [1] : vector<8x8xf32> to vector<8xf32>
    %105 = vector.shape_cast %104 : vector<8xf32> to vector<8x1xf32>
    %106 = vector.broadcast %105 : vector<8x1xf32> to vector<8x8xf32>
    %107 = arith.subf %103, %106 : vector<8x8xf32>
    %108 = math.exp %107 : vector<8x8xf32>
    %cst_38 = arith.constant dense<0.000000e+00> : vector<8xf32>
    %109 = vector.multi_reduction <add>, %108, %cst_38 [1] : vector<8x8xf32> to vector<8xf32>
    %110 = vector.shape_cast %109 : vector<8xf32> to vector<8x1xf32>
    %111 = tpu.reciprocal %110 {approx = true} : vector<8x1xf32> -> vector<8x1xf32>
    %112 = vector.broadcast %111 : vector<8x1xf32> to vector<8x8xf32>
    %113 = arith.mulf %108, %112 : vector<8x8xf32>
    %114 = arith.truncf %113 : vector<8x8xf32> to vector<8x8xbf16>
    %115 = vector.extract_strided_slice %45 {offsets = [0, 24], sizes = [8, 8], strides = [1, 1]} : vector<8x32xbf16> to vector<8x8xbf16>
    %cst_39 = arith.constant dense<0.000000e+00> : vector<8x8xf32>
    %116 = tpu.matmul %114, %115, %cst_39 {dimension_numbers = #tpu.dot_dimension_numbers<[1], [0], [0], [1], [0, 0, 1, 1], [], []>} : vector<8x8xbf16>, vector<8x8xbf16>, vector<8x8xf32> -> vector<8x8xf32>
    %c0_40 = arith.constant 0 : index
    %c24 = arith.constant 24 : index
    %117 = vector.load %arg19[%c0_40, %c24] : memref<8x32xf32, #tpu.memory_space<vmem>>, vector<8x8xf32>
    tpu.vector_store %arg19[%c0_40, %c24], %116 {strides = array<i32>} : memref<8x32xf32, #tpu.memory_space<vmem>>, vector<8x8xf32>,
    %c0_41 = arith.constant 0 : index
    %c0_42 = arith.constant 0 : index
    %118 = vector.load %arg19[%c0_41, %c0_42] : memref<8x32xf32, #tpu.memory_space<vmem>>, vector<8x32xf32>
    %119 = arith.truncf %118 : vector<8x32xf32> to vector<8x32xbf16>
    %c0_43 = arith.constant 0 : index
    %c0_44 = arith.constant 0 : index
    %c0_45 = arith.constant 0 : index
    %120 = vector.load %arg4[%c0_43, %c0_44, %c0_45] : memref<2x32x32xbf16, #tpu.memory_space<vmem>>, vector<1x32x32xbf16>
    %121 = vector.shape_cast %120 : vector<1x32x32xbf16> to vector<32x32xbf16>
    %cst_46 = arith.constant dense<0.000000e+00> : vector<8x32xf32>
    %122 = tpu.matmul %119, %121, %cst_46 {dimension_numbers = #tpu.dot_dimension_numbers<[1], [0], [0], [1], [0, 0, 1, 1], [], []>} : vector<8x32xbf16>, vector<32x32xbf16>, vector<8x32xf32> -> vector<8x32xf32>
    %c0_47 = arith.constant 0 : index
    %c0_48 = arith.constant 0 : index
    %c0_49 = arith.constant 0 : index
    %123 = vector.load %arg5[%c0_47, %c0_48, %c0_49] : memref<2x1x32xf32, #tpu.memory_space<vmem>>, vector<1x1x32xf32>
    %124 = vector.shape_cast %123 : vector<1x1x32xf32> to vector<1x32xf32>
    %125 = vector.broadcast %124 : vector<1x32xf32> to vector<8x32xf32>
    %126 = arith.addf %122, %125 : vector<8x32xf32>
    %127 = arith.addf %126, %31 : vector<8x32xf32>
    %c1 = arith.constant 1 : index
    %c0_50 = arith.constant 0 : index
    %128 = vector.load %arg16[%c1, %c0_50] : memref<7x32xf32, #tpu.memory_space<vmem>>, vector<1x32xf32>
    %c1_51 = arith.constant 1 : index
    %c0_52 = arith.constant 0 : index
    %129 = vector.load %arg17[%c1_51, %c0_52] : memref<7x32xf32, #tpu.memory_space<vmem>>, vector<1x32xf32>
    %cst_53 = arith.constant dense<0.000000e+00> : vector<8xf32>
    %130 = vector.multi_reduction <add>, %127, %cst_53 [1] : vector<8x32xf32> to vector<8xf32>
    %131 = vector.shape_cast %130 : vector<8xf32> to vector<8x1xf32>
    %cst_54 = arith.constant 3.200000e+01 : f32
    %132 = vector.broadcast %cst_54 : f32 to vector<8x1xf32>
    %133 = arith.divf %131, %132 : vector<8x1xf32>
    %134 = arith.mulf %127, %127 : vector<8x32xf32>
    %cst_55 = arith.constant dense<0.000000e+00> : vector<8xf32>
    %135 = vector.multi_reduction <add>, %134, %cst_55 [1] : vector<8x32xf32> to vector<8xf32>
    %136 = vector.shape_cast %135 : vector<8xf32> to vector<8x1xf32>
    %cst_56 = arith.constant 3.200000e+01 : f32
    %137 = vector.broadcast %cst_56 : f32 to vector<8x1xf32>
    %138 = arith.divf %136, %137 : vector<8x1xf32>
    %139 = arith.mulf %133, %133 : vector<8x1xf32>
    %140 = arith.subf %138, %139 : vector<8x1xf32>
    %141 = vector.broadcast %133 : vector<8x1xf32> to vector<8x32xf32>
    %142 = arith.subf %127, %141 : vector<8x32xf32>
    %cst_57 = arith.constant 9.99999974E-6 : f32
    %143 = vector.broadcast %cst_57 : f32 to vector<8x1xf32>
    %144 = arith.addf %140, %143 : vector<8x1xf32>
    %145 = math.rsqrt %144 : vector<8x1xf32>
    %146 = vector.broadcast %145 : vector<8x1xf32> to vector<8x32xf32>
    %147 = arith.mulf %142, %146 : vector<8x32xf32>
    %148 = vector.broadcast %128 : vector<1x32xf32> to vector<8x32xf32>
    %149 = arith.mulf %147, %148 : vector<8x32xf32>
    %150 = vector.broadcast %129 : vector<1x32xf32> to vector<8x32xf32>
    %151 = arith.addf %149, %150 : vector<8x32xf32>
    %152 = arith.truncf %151 : vector<8x32xf32> to vector<8x32xbf16>
    %c0_58 = arith.constant 0 : index
    %c0_59 = arith.constant 0 : index
    %c0_60 = arith.constant 0 : index
    %153 = vector.load %arg6[%c0_58, %c0_59, %c0_60] : memref<2x32x32xbf16, #tpu.memory_space<vmem>>, vector<1x32x32xbf16>
    %154 = vector.shape_cast %153 : vector<1x32x32xbf16> to vector<32x32xbf16>
    %cst_61 = arith.constant dense<0.000000e+00> : vector<8x32xf32>
    %155 = tpu.matmul %152, %154, %cst_61 {dimension_numbers = #tpu.dot_dimension_numbers<[1], [0], [0], [1], [0, 0, 1, 1], [], []>} : vector<8x32xbf16>, vector<32x32xbf16>, vector<8x32xf32> -> vector<8x32xf32>
    %c0_62 = arith.constant 0 : index
    %c0_63 = arith.constant 0 : index
    %c0_64 = arith.constant 0 : index
    %156 = vector.load %arg7[%c0_62, %c0_63, %c0_64] : memref<2x1x32xf32, #tpu.memory_space<vmem>>, vector<1x1x32xf32>
    %157 = vector.shape_cast %156 : vector<1x1x32xf32> to vector<1x32xf32>
    %158 = vector.broadcast %157 : vector<1x32xf32> to vector<8x32xf32>
    %159 = arith.addf %155, %158 : vector<8x32xf32>
    %c0_65 = arith.constant 0 : index
    %c0_66 = arith.constant 0 : index
    %c0_67 = arith.constant 0 : index
    %160 = vector.load %arg8[%c0_65, %c0_66, %c0_67] : memref<2x32x64xbf16, #tpu.memory_space<vmem>>, vector<1x32x64xbf16>
    %161 = vector.shape_cast %160 : vector<1x32x64xbf16> to vector<32x64xbf16>
    %cst_68 = arith.constant dense<0.000000e+00> : vector<16x64xf32>
    %162 = tpu.matmul %6, %161, %cst_68 {dimension_numbers = #tpu.dot_dimension_numbers<[1], [0], [0], [1], [0, 0, 1, 1], [], []>} : vector<16x32xbf16>, vector<32x64xbf16>, vector<16x64xf32> -> vector<16x64xf32>
    %c0_69 = arith.constant 0 : index
    %c0_70 = arith.constant 0 : index
    %c0_71 = arith.constant 0 : index
    %163 = vector.load %arg9[%c0_69, %c0_70, %c0_71] : memref<2x1x64xf32, #tpu.memory_space<vmem>>, vector<1x1x64xf32>
    %164 = vector.shape_cast %163 : vector<1x1x64xf32> to vector<1x64xf32>
    %165 = vector.broadcast %164 : vector<1x64xf32> to vector<16x64xf32>
    %166 = arith.addf %162, %165 : vector<16x64xf32>
    %167 = vector.extract_strided_slice %166 {offsets = [0, 0], sizes = [16, 32], strides = [1, 1]} : vector<16x64xf32> to vector<16x32xf32>
    %168 = vector.extract_strided_slice %166 {offsets = [0, 32], sizes = [16, 32], strides = [1, 1]} : vector<16x64xf32> to vector<16x32xf32>
    %169 = arith.truncf %159 : vector<8x32xf32> to vector<8x32xbf16>
    %170 = arith.truncf %167 : vector<16x32xf32> to vector<16x32xbf16>
    %171 = arith.truncf %168 : vector<16x32xf32> to vector<16x32xbf16>
    %172 = vector.extract_strided_slice %169 {offsets = [0, 0], sizes = [8, 8], strides = [1, 1]} : vector<8x32xbf16> to vector<8x8xbf16>
    %173 = vector.extract_strided_slice %170 {offsets = [0, 0], sizes = [16, 8], strides = [1, 1]} : vector<16x32xbf16> to vector<16x8xbf16>
    %cst_72 = arith.constant dense<0.000000e+00> : vector<8x16xf32>
    %174 = tpu.matmul %172, %173, %cst_72 {dimension_numbers = #tpu.dot_dimension_numbers<[1], [1], [0], [0], [0, 0, 1, 0], [], []>} : vector<8x8xbf16>, vector<16x8xbf16>, vector<8x16xf32> -> vector<8x16xf32>
    %cst_73 = arith.constant dense<0xFF800000> : vector<8xf32>
    %175 = vector.multi_reduction <maximumf>, %174, %cst_73 [1] : vector<8x16xf32> to vector<8xf32>
    %176 = vector.shape_cast %175 : vector<8xf32> to vector<8x1xf32>
    %177 = vector.broadcast %176 : vector<8x1xf32> to vector<8x16xf32>
    %178 = arith.subf %174, %177 : vector<8x16xf32>
    %179 = math.exp %178 : vector<8x16xf32>
    %cst_74 = arith.constant dense<0.000000e+00> : vector<8xf32>
    %180 = vector.multi_reduction <add>, %179, %cst_74 [1] : vector<8x16xf32> to vector<8xf32>
    %181 = vector.shape_cast %180 : vector<8xf32> to vector<8x1xf32>
    %182 = tpu.reciprocal %181 {approx = true} : vector<8x1xf32> -> vector<8x1xf32>
    %183 = vector.broadcast %182 : vector<8x1xf32> to vector<8x16xf32>
    %184 = arith.mulf %179, %183 : vector<8x16xf32>
    %185 = arith.truncf %184 : vector<8x16xf32> to vector<8x16xbf16>
    %186 = vector.extract_strided_slice %171 {offsets = [0, 0], sizes = [16, 8], strides = [1, 1]} : vector<16x32xbf16> to vector<16x8xbf16>
    %cst_75 = arith.constant dense<0.000000e+00> : vector<8x8xf32>
    %187 = tpu.matmul %185, %186, %cst_75 {dimension_numbers = #tpu.dot_dimension_numbers<[1], [0], [0], [1], [0, 0, 1, 1], [], []>} : vector<8x16xbf16>, vector<16x8xbf16>, vector<8x8xf32> -> vector<8x8xf32>
    %c0_76 = arith.constant 0 : index
    %c0_77 = arith.constant 0 : index
    %188 = vector.load %arg19[%c0_76, %c0_77] : memref<8x32xf32, #tpu.memory_space<vmem>>, vector<8x8xf32>
    tpu.vector_store %arg19[%c0_76, %c0_77], %187 {strides = array<i32>} : memref<8x32xf32, #tpu.memory_space<vmem>>, vector<8x8xf32>,
    %189 = vector.extract_strided_slice %169 {offsets = [0, 8], sizes = [8, 8], strides = [1, 1]} : vector<8x32xbf16> to vector<8x8xbf16>
    %190 = vector.extract_strided_slice %170 {offsets = [0, 8], sizes = [16, 8], strides = [1, 1]} : vector<16x32xbf16> to vector<16x8xbf16>
    %cst_78 = arith.constant dense<0.000000e+00> : vector<8x16xf32>
    %191 = tpu.matmul %189, %190, %cst_78 {dimension_numbers = #tpu.dot_dimension_numbers<[1], [1], [0], [0], [0, 0, 1, 0], [], []>} : vector<8x8xbf16>, vector<16x8xbf16>, vector<8x16xf32> -> vector<8x16xf32>
    %cst_79 = arith.constant dense<0xFF800000> : vector<8xf32>
    %192 = vector.multi_reduction <maximumf>, %191, %cst_79 [1] : vector<8x16xf32> to vector<8xf32>
    %193 = vector.shape_cast %192 : vector<8xf32> to vector<8x1xf32>
    %194 = vector.broadcast %193 : vector<8x1xf32> to vector<8x16xf32>
    %195 = arith.subf %191, %194 : vector<8x16xf32>
    %196 = math.exp %195 : vector<8x16xf32>
    %cst_80 = arith.constant dense<0.000000e+00> : vector<8xf32>
    %197 = vector.multi_reduction <add>, %196, %cst_80 [1] : vector<8x16xf32> to vector<8xf32>
    %198 = vector.shape_cast %197 : vector<8xf32> to vector<8x1xf32>
    %199 = tpu.reciprocal %198 {approx = true} : vector<8x1xf32> -> vector<8x1xf32>
    %200 = vector.broadcast %199 : vector<8x1xf32> to vector<8x16xf32>
    %201 = arith.mulf %196, %200 : vector<8x16xf32>
    %202 = arith.truncf %201 : vector<8x16xf32> to vector<8x16xbf16>
    %203 = vector.extract_strided_slice %171 {offsets = [0, 8], sizes = [16, 8], strides = [1, 1]} : vector<16x32xbf16> to vector<16x8xbf16>
    %cst_81 = arith.constant dense<0.000000e+00> : vector<8x8xf32>
    %204 = tpu.matmul %202, %203, %cst_81 {dimension_numbers = #tpu.dot_dimension_numbers<[1], [0], [0], [1], [0, 0, 1, 1], [], []>} : vector<8x16xbf16>, vector<16x8xbf16>, vector<8x8xf32> -> vector<8x8xf32>
    %c0_82 = arith.constant 0 : index
    %c8_83 = arith.constant 8 : index
    %205 = vector.load %arg19[%c0_82, %c8_83] : memref<8x32xf32, #tpu.memory_space<vmem>>, vector<8x8xf32>
    tpu.vector_store %arg19[%c0_82, %c8_83], %204 {strides = array<i32>} : memref<8x32xf32, #tpu.memory_space<vmem>>, vector<8x8xf32>,
    %206 = vector.extract_strided_slice %169 {offsets = [0, 16], sizes = [8, 8], strides = [1, 1]} : vector<8x32xbf16> to vector<8x8xbf16>
    %207 = vector.extract_strided_slice %170 {offsets = [0, 16], sizes = [16, 8], strides = [1, 1]} : vector<16x32xbf16> to vector<16x8xbf16>
    %cst_84 = arith.constant dense<0.000000e+00> : vector<8x16xf32>
    %208 = tpu.matmul %206, %207, %cst_84 {dimension_numbers = #tpu.dot_dimension_numbers<[1], [1], [0], [0], [0, 0, 1, 0], [], []>} : vector<8x8xbf16>, vector<16x8xbf16>, vector<8x16xf32> -> vector<8x16xf32>
    %cst_85 = arith.constant dense<0xFF800000> : vector<8xf32>
    %209 = vector.multi_reduction <maximumf>, %208, %cst_85 [1] : vector<8x16xf32> to vector<8xf32>
    %210 = vector.shape_cast %209 : vector<8xf32> to vector<8x1xf32>
    %211 = vector.broadcast %210 : vector<8x1xf32> to vector<8x16xf32>
    %212 = arith.subf %208, %211 : vector<8x16xf32>
    %213 = math.exp %212 : vector<8x16xf32>
    %cst_86 = arith.constant dense<0.000000e+00> : vector<8xf32>
    %214 = vector.multi_reduction <add>, %213, %cst_86 [1] : vector<8x16xf32> to vector<8xf32>
    %215 = vector.shape_cast %214 : vector<8xf32> to vector<8x1xf32>
    %216 = tpu.reciprocal %215 {approx = true} : vector<8x1xf32> -> vector<8x1xf32>
    %217 = vector.broadcast %216 : vector<8x1xf32> to vector<8x16xf32>
    %218 = arith.mulf %213, %217 : vector<8x16xf32>
    %219 = arith.truncf %218 : vector<8x16xf32> to vector<8x16xbf16>
    %220 = vector.extract_strided_slice %171 {offsets = [0, 16], sizes = [16, 8], strides = [1, 1]} : vector<16x32xbf16> to vector<16x8xbf16>
    %cst_87 = arith.constant dense<0.000000e+00> : vector<8x8xf32>
    %221 = tpu.matmul %219, %220, %cst_87 {dimension_numbers = #tpu.dot_dimension_numbers<[1], [0], [0], [1], [0, 0, 1, 1], [], []>} : vector<8x16xbf16>, vector<16x8xbf16>, vector<8x8xf32> -> vector<8x8xf32>
    %c0_88 = arith.constant 0 : index
    %c16_89 = arith.constant 16 : index
    %222 = vector.load %arg19[%c0_88, %c16_89] : memref<8x32xf32, #tpu.memory_space<vmem>>, vector<8x8xf32>
    tpu.vector_store %arg19[%c0_88, %c16_89], %221 {strides = array<i32>} : memref<8x32xf32, #tpu.memory_space<vmem>>, vector<8x8xf32>,
    %223 = vector.extract_strided_slice %169 {offsets = [0, 24], sizes = [8, 8], strides = [1, 1]} : vector<8x32xbf16> to vector<8x8xbf16>
    %224 = vector.extract_strided_slice %170 {offsets = [0, 24], sizes = [16, 8], strides = [1, 1]} : vector<16x32xbf16> to vector<16x8xbf16>
    %cst_90 = arith.constant dense<0.000000e+00> : vector<8x16xf32>
    %225 = tpu.matmul %223, %224, %cst_90 {dimension_numbers = #tpu.dot_dimension_numbers<[1], [1], [0], [0], [0, 0, 1, 0], [], []>} : vector<8x8xbf16>, vector<16x8xbf16>, vector<8x16xf32> -> vector<8x16xf32>
    %cst_91 = arith.constant dense<0xFF800000> : vector<8xf32>
    %226 = vector.multi_reduction <maximumf>, %225, %cst_91 [1] : vector<8x16xf32> to vector<8xf32>
    %227 = vector.shape_cast %226 : vector<8xf32> to vector<8x1xf32>
    %228 = vector.broadcast %227 : vector<8x1xf32> to vector<8x16xf32>
    %229 = arith.subf %225, %228 : vector<8x16xf32>
    %230 = math.exp %229 : vector<8x16xf32>
    %cst_92 = arith.constant dense<0.000000e+00> : vector<8xf32>
    %231 = vector.multi_reduction <add>, %230, %cst_92 [1] : vector<8x16xf32> to vector<8xf32>
    %232 = vector.shape_cast %231 : vector<8xf32> to vector<8x1xf32>
    %233 = tpu.reciprocal %232 {approx = true} : vector<8x1xf32> -> vector<8x1xf32>
    %234 = vector.broadcast %233 : vector<8x1xf32> to vector<8x16xf32>
    %235 = arith.mulf %230, %234 : vector<8x16xf32>
    %236 = arith.truncf %235 : vector<8x16xf32> to vector<8x16xbf16>
    %237 = vector.extract_strided_slice %171 {offsets = [0, 24], sizes = [16, 8], strides = [1, 1]} : vector<16x32xbf16> to vector<16x8xbf16>
    %cst_93 = arith.constant dense<0.000000e+00> : vector<8x8xf32>
    %238 = tpu.matmul %236, %237, %cst_93 {dimension_numbers = #tpu.dot_dimension_numbers<[1], [0], [0], [1], [0, 0, 1, 1], [], []>} : vector<8x16xbf16>, vector<16x8xbf16>, vector<8x8xf32> -> vector<8x8xf32>
    %c0_94 = arith.constant 0 : index
    %c24_95 = arith.constant 24 : index
    %239 = vector.load %arg19[%c0_94, %c24_95] : memref<8x32xf32, #tpu.memory_space<vmem>>, vector<8x8xf32>
    tpu.vector_store %arg19[%c0_94, %c24_95], %238 {strides = array<i32>} : memref<8x32xf32, #tpu.memory_space<vmem>>, vector<8x8xf32>,
    %c0_96 = arith.constant 0 : index
    %c0_97 = arith.constant 0 : index
    %240 = vector.load %arg19[%c0_96, %c0_97] : memref<8x32xf32, #tpu.memory_space<vmem>>, vector<8x32xf32>
    %241 = arith.truncf %240 : vector<8x32xf32> to vector<8x32xbf16>
    %c0_98 = arith.constant 0 : index
    %c0_99 = arith.constant 0 : index
    %c0_100 = arith.constant 0 : index
    %242 = vector.load %arg10[%c0_98, %c0_99, %c0_100] : memref<2x32x32xbf16, #tpu.memory_space<vmem>>, vector<1x32x32xbf16>
    %243 = vector.shape_cast %242 : vector<1x32x32xbf16> to vector<32x32xbf16>
    %cst_101 = arith.constant dense<0.000000e+00> : vector<8x32xf32>
    %244 = tpu.matmul %241, %243, %cst_101 {dimension_numbers = #tpu.dot_dimension_numbers<[1], [0], [0], [1], [0, 0, 1, 1], [], []>} : vector<8x32xbf16>, vector<32x32xbf16>, vector<8x32xf32> -> vector<8x32xf32>
    %c0_102 = arith.constant 0 : index
    %c0_103 = arith.constant 0 : index
    %c0_104 = arith.constant 0 : index
    %245 = vector.load %arg11[%c0_102, %c0_103, %c0_104] : memref<2x1x32xf32, #tpu.memory_space<vmem>>, vector<1x1x32xf32>
    %246 = vector.shape_cast %245 : vector<1x1x32xf32> to vector<1x32xf32>
    %247 = vector.broadcast %246 : vector<1x32xf32> to vector<8x32xf32>
    %248 = arith.addf %244, %247 : vector<8x32xf32>
    %249 = arith.addf %248, %151 : vector<8x32xf32>
    %c2 = arith.constant 2 : index
    %c0_105 = arith.constant 0 : index
    %250 = vector.load %arg16[%c2, %c0_105] : memref<7x32xf32, #tpu.memory_space<vmem>>, vector<1x32xf32>
    %c2_106 = arith.constant 2 : index
    %c0_107 = arith.constant 0 : index
    %251 = vector.load %arg17[%c2_106, %c0_107] : memref<7x32xf32, #tpu.memory_space<vmem>>, vector<1x32xf32>
    %cst_108 = arith.constant dense<0.000000e+00> : vector<8xf32>
    %252 = vector.multi_reduction <add>, %249, %cst_108 [1] : vector<8x32xf32> to vector<8xf32>
    %253 = vector.shape_cast %252 : vector<8xf32> to vector<8x1xf32>
    %cst_109 = arith.constant 3.200000e+01 : f32
    %254 = vector.broadcast %cst_109 : f32 to vector<8x1xf32>
    %255 = arith.divf %253, %254 : vector<8x1xf32>
    %256 = arith.mulf %249, %249 : vector<8x32xf32>
    %cst_110 = arith.constant dense<0.000000e+00> : vector<8xf32>
    %257 = vector.multi_reduction <add>, %256, %cst_110 [1] : vector<8x32xf32> to vector<8xf32>
    %258 = vector.shape_cast %257 : vector<8xf32> to vector<8x1xf32>
    %cst_111 = arith.constant 3.200000e+01 : f32
    %259 = vector.broadcast %cst_111 : f32 to vector<8x1xf32>
    %260 = arith.divf %258, %259 : vector<8x1xf32>
    %261 = arith.mulf %255, %255 : vector<8x1xf32>
    %262 = arith.subf %260, %261 : vector<8x1xf32>
    %263 = vector.broadcast %255 : vector<8x1xf32> to vector<8x32xf32>
    %264 = arith.subf %249, %263 : vector<8x32xf32>
    %cst_112 = arith.constant 9.99999974E-6 : f32
    %265 = vector.broadcast %cst_112 : f32 to vector<8x1xf32>
    %266 = arith.addf %262, %265 : vector<8x1xf32>
    %267 = math.rsqrt %266 : vector<8x1xf32>
    %268 = vector.broadcast %267 : vector<8x1xf32> to vector<8x32xf32>
    %269 = arith.mulf %264, %268 : vector<8x32xf32>
    %270 = vector.broadcast %250 : vector<1x32xf32> to vector<8x32xf32>
    %271 = arith.mulf %269, %270 : vector<8x32xf32>
    %272 = vector.broadcast %251 : vector<1x32xf32> to vector<8x32xf32>
    %273 = arith.addf %271, %272 : vector<8x32xf32>
    %274 = arith.truncf %273 : vector<8x32xf32> to vector<8x32xbf16>
    %c0_113 = arith.constant 0 : index
    %c0_114 = arith.constant 0 : index
    %c0_115 = arith.constant 0 : index
    %275 = vector.load %arg12[%c0_113, %c0_114, %c0_115] : memref<2x32x64xbf16, #tpu.memory_space<vmem>>, vector<1x32x64xbf16>
    %276 = vector.shape_cast %275 : vector<1x32x64xbf16> to vector<32x64xbf16>
    %cst_116 = arith.constant dense<0.000000e+00> : vector<8x64xf32>
    %277 = tpu.matmul %274, %276, %cst_116 {dimension_numbers = #tpu.dot_dimension_numbers<[1], [0], [0], [1], [0, 0, 1, 1], [], []>} : vector<8x32xbf16>, vector<32x64xbf16>, vector<8x64xf32> -> vector<8x64xf32>
    %c0_117 = arith.constant 0 : index
    %c0_118 = arith.constant 0 : index
    %c0_119 = arith.constant 0 : index
    %278 = vector.load %arg13[%c0_117, %c0_118, %c0_119] : memref<2x1x64xf32, #tpu.memory_space<vmem>>, vector<1x1x64xf32>
    %279 = vector.shape_cast %278 : vector<1x1x64xf32> to vector<1x64xf32>
    %280 = vector.broadcast %279 : vector<1x64xf32> to vector<8x64xf32>
    %281 = arith.addf %277, %280 : vector<8x64xf32>
    %cst_120 = arith.constant 0.000000e+00 : f32
    %282 = vector.broadcast %cst_120 : f32 to vector<8x64xf32>
    %283 = arith.maximumf %281, %282 : vector<8x64xf32>
    %284 = arith.truncf %283 : vector<8x64xf32> to vector<8x64xbf16>
    %c0_121 = arith.constant 0 : index
    %c0_122 = arith.constant 0 : index
    %c0_123 = arith.constant 0 : index
    %285 = vector.load %arg14[%c0_121, %c0_122, %c0_123] : memref<2x64x32xbf16, #tpu.memory_space<vmem>>, vector<1x64x32xbf16>
    %286 = vector.shape_cast %285 : vector<1x64x32xbf16> to vector<64x32xbf16>
    %cst_124 = arith.constant dense<0.000000e+00> : vector<8x32xf32>
    %287 = tpu.matmul %284, %286, %cst_124 {dimension_numbers = #tpu.dot_dimension_numbers<[1], [0], [0], [1], [0, 0, 1, 1], [], []>} : vector<8x64xbf16>, vector<64x32xbf16>, vector<8x32xf32> -> vector<8x32xf32>
    %c0_125 = arith.constant 0 : index
    %c0_126 = arith.constant 0 : index
    %c0_127 = arith.constant 0 : index
    %288 = vector.load %arg15[%c0_125, %c0_126, %c0_127] : memref<2x1x32xf32, #tpu.memory_space<vmem>>, vector<1x1x32xf32>
    %289 = vector.shape_cast %288 : vector<1x1x32xf32> to vector<1x32xf32>
    %290 = vector.broadcast %289 : vector<1x32xf32> to vector<8x32xf32>
    %291 = arith.addf %287, %290 : vector<8x32xf32>
    %292 = arith.addf %291, %273 : vector<8x32xf32>
    %c3 = arith.constant 3 : index
    %c0_128 = arith.constant 0 : index
    %293 = vector.load %arg16[%c3, %c0_128] : memref<7x32xf32, #tpu.memory_space<vmem>>, vector<1x32xf32>
    %c3_129 = arith.constant 3 : index
    %c0_130 = arith.constant 0 : index
    %294 = vector.load %arg17[%c3_129, %c0_130] : memref<7x32xf32, #tpu.memory_space<vmem>>, vector<1x32xf32>
    %cst_131 = arith.constant dense<0.000000e+00> : vector<8xf32>
    %295 = vector.multi_reduction <add>, %292, %cst_131 [1] : vector<8x32xf32> to vector<8xf32>
    %296 = vector.shape_cast %295 : vector<8xf32> to vector<8x1xf32>
    %cst_132 = arith.constant 3.200000e+01 : f32
    %297 = vector.broadcast %cst_132 : f32 to vector<8x1xf32>
    %298 = arith.divf %296, %297 : vector<8x1xf32>
    %299 = arith.mulf %292, %292 : vector<8x32xf32>
    %cst_133 = arith.constant dense<0.000000e+00> : vector<8xf32>
    %300 = vector.multi_reduction <add>, %299, %cst_133 [1] : vector<8x32xf32> to vector<8xf32>
    %301 = vector.shape_cast %300 : vector<8xf32> to vector<8x1xf32>
    %cst_134 = arith.constant 3.200000e+01 : f32
    %302 = vector.broadcast %cst_134 : f32 to vector<8x1xf32>
    %303 = arith.divf %301, %302 : vector<8x1xf32>
    %304 = arith.mulf %298, %298 : vector<8x1xf32>
    %305 = arith.subf %303, %304 : vector<8x1xf32>
    %306 = vector.broadcast %298 : vector<8x1xf32> to vector<8x32xf32>
    %307 = arith.subf %292, %306 : vector<8x32xf32>
    %cst_135 = arith.constant 9.99999974E-6 : f32
    %308 = vector.broadcast %cst_135 : f32 to vector<8x1xf32>
    %309 = arith.addf %305, %308 : vector<8x1xf32>
    %310 = math.rsqrt %309 : vector<8x1xf32>
    %311 = vector.broadcast %310 : vector<8x1xf32> to vector<8x32xf32>
    %312 = arith.mulf %307, %311 : vector<8x32xf32>
    %313 = vector.broadcast %293 : vector<1x32xf32> to vector<8x32xf32>
    %314 = arith.mulf %312, %313 : vector<8x32xf32>
    %315 = vector.broadcast %294 : vector<1x32xf32> to vector<8x32xf32>
    %316 = arith.addf %314, %315 : vector<8x32xf32>
    %317 = arith.truncf %316 : vector<8x32xf32> to vector<8x32xbf16>
    %c1_136 = arith.constant 1 : index
    %c0_137 = arith.constant 0 : index
    %c0_138 = arith.constant 0 : index
    %318 = vector.load %arg2[%c1_136, %c0_137, %c0_138] : memref<2x32x96xbf16, #tpu.memory_space<vmem>>, vector<1x32x96xbf16>
    %319 = vector.shape_cast %318 : vector<1x32x96xbf16> to vector<32x96xbf16>
    %cst_139 = arith.constant dense<0.000000e+00> : vector<8x96xf32>
    %320 = tpu.matmul %317, %319, %cst_139 {dimension_numbers = #tpu.dot_dimension_numbers<[1], [0], [0], [1], [0, 0, 1, 1], [], []>} : vector<8x32xbf16>, vector<32x96xbf16>, vector<8x96xf32> -> vector<8x96xf32>
    %c1_140 = arith.constant 1 : index
    %c0_141 = arith.constant 0 : index
    %c0_142 = arith.constant 0 : index
    %321 = vector.load %arg3[%c1_140, %c0_141, %c0_142] : memref<2x1x96xf32, #tpu.memory_space<vmem>>, vector<1x1x96xf32>
    %322 = vector.shape_cast %321 : vector<1x1x96xf32> to vector<1x96xf32>
    %323 = vector.broadcast %322 : vector<1x96xf32> to vector<8x96xf32>
    %324 = arith.addf %320, %323 : vector<8x96xf32>
    %325 = vector.extract_strided_slice %324 {offsets = [0, 0], sizes = [8, 32], strides = [1, 1]} : vector<8x96xf32> to vector<8x32xf32>
    %326 = vector.extract_strided_slice %324 {offsets = [0, 32], sizes = [8, 32], strides = [1, 1]} : vector<8x96xf32> to vector<8x32xf32>
    %327 = vector.extract_strided_slice %324 {offsets = [0, 64], sizes = [8, 32], strides = [1, 1]} : vector<8x96xf32> to vector<8x32xf32>
    %328 = arith.truncf %325 : vector<8x32xf32> to vector<8x32xbf16>
    %329 = arith.truncf %326 : vector<8x32xf32> to vector<8x32xbf16>
    %330 = arith.truncf %327 : vector<8x32xf32> to vector<8x32xbf16>
    %331 = vector.extract_strided_slice %328 {offsets = [0, 0], sizes = [8, 8], strides = [1, 1]} : vector<8x32xbf16> to vector<8x8xbf16>
    %332 = vector.extract_strided_slice %329 {offsets = [0, 0], sizes = [8, 8], strides = [1, 1]} : vector<8x32xbf16> to vector<8x8xbf16>
    %cst_143 = arith.constant dense<0.000000e+00> : vector<8x8xf32>
    %333 = tpu.matmul %331, %332, %cst_143 {dimension_numbers = #tpu.dot_dimension_numbers<[1], [1], [0], [0], [0, 0, 1, 0], [], []>} : vector<8x8xbf16>, vector<8x8xbf16>, vector<8x8xf32> -> vector<8x8xf32>
    %334 = arith.addf %333, %5 : vector<8x8xf32>
    %cst_144 = arith.constant dense<0xFF800000> : vector<8xf32>
    %335 = vector.multi_reduction <maximumf>, %334, %cst_144 [1] : vector<8x8xf32> to vector<8xf32>
    %336 = vector.shape_cast %335 : vector<8xf32> to vector<8x1xf32>
    %337 = vector.broadcast %336 : vector<8x1xf32> to vector<8x8xf32>
    %338 = arith.subf %334, %337 : vector<8x8xf32>
    %339 = math.exp %338 : vector<8x8xf32>
    %cst_145 = arith.constant dense<0.000000e+00> : vector<8xf32>
    %340 = vector.multi_reduction <add>, %339, %cst_145 [1] : vector<8x8xf32> to vector<8xf32>
    %341 = vector.shape_cast %340 : vector<8xf32> to vector<8x1xf32>
    %342 = tpu.reciprocal %341 {approx = true} : vector<8x1xf32> -> vector<8x1xf32>
    %343 = vector.broadcast %342 : vector<8x1xf32> to vector<8x8xf32>
    %344 = arith.mulf %339, %343 : vector<8x8xf32>
    %345 = arith.truncf %344 : vector<8x8xf32> to vector<8x8xbf16>
    %346 = vector.extract_strided_slice %330 {offsets = [0, 0], sizes = [8, 8], strides = [1, 1]} : vector<8x32xbf16> to vector<8x8xbf16>
    %cst_146 = arith.constant dense<0.000000e+00> : vector<8x8xf32>
    %347 = tpu.matmul %345, %346, %cst_146 {dimension_numbers = #tpu.dot_dimension_numbers<[1], [0], [0], [1], [0, 0, 1, 1], [], []>} : vector<8x8xbf16>, vector<8x8xbf16>, vector<8x8xf32> -> vector<8x8xf32>
    %c0_147 = arith.constant 0 : index
    %c0_148 = arith.constant 0 : index
    %348 = vector.load %arg19[%c0_147, %c0_148] : memref<8x32xf32, #tpu.memory_space<vmem>>, vector<8x8xf32>
    tpu.vector_store %arg19[%c0_147, %c0_148], %347 {strides = array<i32>} : memref<8x32xf32, #tpu.memory_space<vmem>>, vector<8x8xf32>,
    %349 = vector.extract_strided_slice %328 {offsets = [0, 8], sizes = [8, 8], strides = [1, 1]} : vector<8x32xbf16> to vector<8x8xbf16>
    %350 = vector.extract_strided_slice %329 {offsets = [0, 8], sizes = [8, 8], strides = [1, 1]} : vector<8x32xbf16> to vector<8x8xbf16>
    %cst_149 = arith.constant dense<0.000000e+00> : vector<8x8xf32>
    %351 = tpu.matmul %349, %350, %cst_149 {dimension_numbers = #tpu.dot_dimension_numbers<[1], [1], [0], [0], [0, 0, 1, 0], [], []>} : vector<8x8xbf16>, vector<8x8xbf16>, vector<8x8xf32> -> vector<8x8xf32>
    %352 = arith.addf %351, %5 : vector<8x8xf32>
    %cst_150 = arith.constant dense<0xFF800000> : vector<8xf32>
    %353 = vector.multi_reduction <maximumf>, %352, %cst_150 [1] : vector<8x8xf32> to vector<8xf32>
    %354 = vector.shape_cast %353 : vector<8xf32> to vector<8x1xf32>
    %355 = vector.broadcast %354 : vector<8x1xf32> to vector<8x8xf32>
    %356 = arith.subf %352, %355 : vector<8x8xf32>
    %357 = math.exp %356 : vector<8x8xf32>
    %cst_151 = arith.constant dense<0.000000e+00> : vector<8xf32>
    %358 = vector.multi_reduction <add>, %357, %cst_151 [1] : vector<8x8xf32> to vector<8xf32>
    %359 = vector.shape_cast %358 : vector<8xf32> to vector<8x1xf32>
    %360 = tpu.reciprocal %359 {approx = true} : vector<8x1xf32> -> vector<8x1xf32>
    %361 = vector.broadcast %360 : vector<8x1xf32> to vector<8x8xf32>
    %362 = arith.mulf %357, %361 : vector<8x8xf32>
    %363 = arith.truncf %362 : vector<8x8xf32> to vector<8x8xbf16>
    %364 = vector.extract_strided_slice %330 {offsets = [0, 8], sizes = [8, 8], strides = [1, 1]} : vector<8x32xbf16> to vector<8x8xbf16>
    %cst_152 = arith.constant dense<0.000000e+00> : vector<8x8xf32>
    %365 = tpu.matmul %363, %364, %cst_152 {dimension_numbers = #tpu.dot_dimension_numbers<[1], [0], [0], [1], [0, 0, 1, 1], [], []>} : vector<8x8xbf16>, vector<8x8xbf16>, vector<8x8xf32> -> vector<8x8xf32>
    %c0_153 = arith.constant 0 : index
    %c8_154 = arith.constant 8 : index
    %366 = vector.load %arg19[%c0_153, %c8_154] : memref<8x32xf32, #tpu.memory_space<vmem>>, vector<8x8xf32>
    tpu.vector_store %arg19[%c0_153, %c8_154], %365 {strides = array<i32>} : memref<8x32xf32, #tpu.memory_space<vmem>>, vector<8x8xf32>,
    %367 = vector.extract_strided_slice %328 {offsets = [0, 16], sizes = [8, 8], strides = [1, 1]} : vector<8x32xbf16> to vector<8x8xbf16>
    %368 = vector.extract_strided_slice %329 {offsets = [0, 16], sizes = [8, 8], strides = [1, 1]} : vector<8x32xbf16> to vector<8x8xbf16>
    %cst_155 = arith.constant dense<0.000000e+00> : vector<8x8xf32>
    %369 = tpu.matmul %367, %368, %cst_155 {dimension_numbers = #tpu.dot_dimension_numbers<[1], [1], [0], [0], [0, 0, 1, 0], [], []>} : vector<8x8xbf16>, vector<8x8xbf16>, vector<8x8xf32> -> vector<8x8xf32>
    %370 = arith.addf %369, %5 : vector<8x8xf32>
    %cst_156 = arith.constant dense<0xFF800000> : vector<8xf32>
    %371 = vector.multi_reduction <maximumf>, %370, %cst_156 [1] : vector<8x8xf32> to vector<8xf32>
    %372 = vector.shape_cast %371 : vector<8xf32> to vector<8x1xf32>
    %373 = vector.broadcast %372 : vector<8x1xf32> to vector<8x8xf32>
    %374 = arith.subf %370, %373 : vector<8x8xf32>
    %375 = math.exp %374 : vector<8x8xf32>
    %cst_157 = arith.constant dense<0.000000e+00> : vector<8xf32>
    %376 = vector.multi_reduction <add>, %375, %cst_157 [1] : vector<8x8xf32> to vector<8xf32>
    %377 = vector.shape_cast %376 : vector<8xf32> to vector<8x1xf32>
    %378 = tpu.reciprocal %377 {approx = true} : vector<8x1xf32> -> vector<8x1xf32>
    %379 = vector.broadcast %378 : vector<8x1xf32> to vector<8x8xf32>
    %380 = arith.mulf %375, %379 : vector<8x8xf32>
    %381 = arith.truncf %380 : vector<8x8xf32> to vector<8x8xbf16>
    %382 = vector.extract_strided_slice %330 {offsets = [0, 16], sizes = [8, 8], strides = [1, 1]} : vector<8x32xbf16> to vector<8x8xbf16>
    %cst_158 = arith.constant dense<0.000000e+00> : vector<8x8xf32>
    %383 = tpu.matmul %381, %382, %cst_158 {dimension_numbers = #tpu.dot_dimension_numbers<[1], [0], [0], [1], [0, 0, 1, 1], [], []>} : vector<8x8xbf16>, vector<8x8xbf16>, vector<8x8xf32> -> vector<8x8xf32>
    %c0_159 = arith.constant 0 : index
    %c16_160 = arith.constant 16 : index
    %384 = vector.load %arg19[%c0_159, %c16_160] : memref<8x32xf32, #tpu.memory_space<vmem>>, vector<8x8xf32>
    tpu.vector_store %arg19[%c0_159, %c16_160], %383 {strides = array<i32>} : memref<8x32xf32, #tpu.memory_space<vmem>>, vector<8x8xf32>,
    %385 = vector.extract_strided_slice %328 {offsets = [0, 24], sizes = [8, 8], strides = [1, 1]} : vector<8x32xbf16> to vector<8x8xbf16>
    %386 = vector.extract_strided_slice %329 {offsets = [0, 24], sizes = [8, 8], strides = [1, 1]} : vector<8x32xbf16> to vector<8x8xbf16>
    %cst_161 = arith.constant dense<0.000000e+00> : vector<8x8xf32>
    %387 = tpu.matmul %385, %386, %cst_161 {dimension_numbers = #tpu.dot_dimension_numbers<[1], [1], [0], [0], [0, 0, 1, 0], [], []>} : vector<8x8xbf16>, vector<8x8xbf16>, vector<8x8xf32> -> vector<8x8xf32>
    %388 = arith.addf %387, %5 : vector<8x8xf32>
    %cst_162 = arith.constant dense<0xFF800000> : vector<8xf32>
    %389 = vector.multi_reduction <maximumf>, %388, %cst_162 [1] : vector<8x8xf32> to vector<8xf32>
    %390 = vector.shape_cast %389 : vector<8xf32> to vector<8x1xf32>
    %391 = vector.broadcast %390 : vector<8x1xf32> to vector<8x8xf32>
    %392 = arith.subf %388, %391 : vector<8x8xf32>
    %393 = math.exp %392 : vector<8x8xf32>
    %cst_163 = arith.constant dense<0.000000e+00> : vector<8xf32>
    %394 = vector.multi_reduction <add>, %393, %cst_163 [1] : vector<8x8xf32> to vector<8xf32>
    %395 = vector.shape_cast %394 : vector<8xf32> to vector<8x1xf32>
    %396 = tpu.reciprocal %395 {approx = true} : vector<8x1xf32> -> vector<8x1xf32>
    %397 = vector.broadcast %396 : vector<8x1xf32> to vector<8x8xf32>
    %398 = arith.mulf %393, %397 : vector<8x8xf32>
    %399 = arith.truncf %398 : vector<8x8xf32> to vector<8x8xbf16>
    %400 = vector.extract_strided_slice %330 {offsets = [0, 24], sizes = [8, 8], strides = [1, 1]} : vector<8x32xbf16> to vector<8x8xbf16>
    %cst_164 = arith.constant dense<0.000000e+00> : vector<8x8xf32>
    %401 = tpu.matmul %399, %400, %cst_164 {dimension_numbers = #tpu.dot_dimension_numbers<[1], [0], [0], [1], [0, 0, 1, 1], [], []>} : vector<8x8xbf16>, vector<8x8xbf16>, vector<8x8xf32> -> vector<8x8xf32>
    %c0_165 = arith.constant 0 : index
    %c24_166 = arith.constant 24 : index
    %402 = vector.load %arg19[%c0_165, %c24_166] : memref<8x32xf32, #tpu.memory_space<vmem>>, vector<8x8xf32>
    tpu.vector_store %arg19[%c0_165, %c24_166], %401 {strides = array<i32>} : memref<8x32xf32, #tpu.memory_space<vmem>>, vector<8x8xf32>,
    %c0_167 = arith.constant 0 : index
    %c0_168 = arith.constant 0 : index
    %403 = vector.load %arg19[%c0_167, %c0_168] : memref<8x32xf32, #tpu.memory_space<vmem>>, vector<8x32xf32>
    %404 = arith.truncf %403 : vector<8x32xf32> to vector<8x32xbf16>
    %c1_169 = arith.constant 1 : index
    %c0_170 = arith.constant 0 : index
    %c0_171 = arith.constant 0 : index
    %405 = vector.load %arg4[%c1_169, %c0_170, %c0_171] : memref<2x32x32xbf16, #tpu.memory_space<vmem>>, vector<1x32x32xbf16>
    %406 = vector.shape_cast %405 : vector<1x32x32xbf16> to vector<32x32xbf16>
    %cst_172 = arith.constant dense<0.000000e+00> : vector<8x32xf32>
    %407 = tpu.matmul %404, %406, %cst_172 {dimension_numbers = #tpu.dot_dimension_numbers<[1], [0], [0], [1], [0, 0, 1, 1], [], []>} : vector<8x32xbf16>, vector<32x32xbf16>, vector<8x32xf32> -> vector<8x32xf32>
    %c1_173 = arith.constant 1 : index
    %c0_174 = arith.constant 0 : index
    %c0_175 = arith.constant 0 : index
    %408 = vector.load %arg5[%c1_173, %c0_174, %c0_175] : memref<2x1x32xf32, #tpu.memory_space<vmem>>, vector<1x1x32xf32>
    %409 = vector.shape_cast %408 : vector<1x1x32xf32> to vector<1x32xf32>
    %410 = vector.broadcast %409 : vector<1x32xf32> to vector<8x32xf32>
    %411 = arith.addf %407, %410 : vector<8x32xf32>
    %412 = arith.addf %411, %316 : vector<8x32xf32>
    %c4 = arith.constant 4 : index
    %c0_176 = arith.constant 0 : index
    %413 = vector.load %arg16[%c4, %c0_176] : memref<7x32xf32, #tpu.memory_space<vmem>>, vector<1x32xf32>
    %c4_177 = arith.constant 4 : index
    %c0_178 = arith.constant 0 : index
    %414 = vector.load %arg17[%c4_177, %c0_178] : memref<7x32xf32, #tpu.memory_space<vmem>>, vector<1x32xf32>
    %cst_179 = arith.constant dense<0.000000e+00> : vector<8xf32>
    %415 = vector.multi_reduction <add>, %412, %cst_179 [1] : vector<8x32xf32> to vector<8xf32>
    %416 = vector.shape_cast %415 : vector<8xf32> to vector<8x1xf32>
    %cst_180 = arith.constant 3.200000e+01 : f32
    %417 = vector.broadcast %cst_180 : f32 to vector<8x1xf32>
    %418 = arith.divf %416, %417 : vector<8x1xf32>
    %419 = arith.mulf %412, %412 : vector<8x32xf32>
    %cst_181 = arith.constant dense<0.000000e+00> : vector<8xf32>
    %420 = vector.multi_reduction <add>, %419, %cst_181 [1] : vector<8x32xf32> to vector<8xf32>
    %421 = vector.shape_cast %420 : vector<8xf32> to vector<8x1xf32>
    %cst_182 = arith.constant 3.200000e+01 : f32
    %422 = vector.broadcast %cst_182 : f32 to vector<8x1xf32>
    %423 = arith.divf %421, %422 : vector<8x1xf32>
    %424 = arith.mulf %418, %418 : vector<8x1xf32>
    %425 = arith.subf %423, %424 : vector<8x1xf32>
    %426 = vector.broadcast %418 : vector<8x1xf32> to vector<8x32xf32>
    %427 = arith.subf %412, %426 : vector<8x32xf32>
    %cst_183 = arith.constant 9.99999974E-6 : f32
    %428 = vector.broadcast %cst_183 : f32 to vector<8x1xf32>
    %429 = arith.addf %425, %428 : vector<8x1xf32>
    %430 = math.rsqrt %429 : vector<8x1xf32>
    %431 = vector.broadcast %430 : vector<8x1xf32> to vector<8x32xf32>
    %432 = arith.mulf %427, %431 : vector<8x32xf32>
    %433 = vector.broadcast %413 : vector<1x32xf32> to vector<8x32xf32>
    %434 = arith.mulf %432, %433 : vector<8x32xf32>
    %435 = vector.broadcast %414 : vector<1x32xf32> to vector<8x32xf32>
    %436 = arith.addf %434, %435 : vector<8x32xf32>
    %437 = arith.truncf %436 : vector<8x32xf32> to vector<8x32xbf16>
    %c1_184 = arith.constant 1 : index
    %c0_185 = arith.constant 0 : index
    %c0_186 = arith.constant 0 : index
    %438 = vector.load %arg6[%c1_184, %c0_185, %c0_186] : memref<2x32x32xbf16, #tpu.memory_space<vmem>>, vector<1x32x32xbf16>
    %439 = vector.shape_cast %438 : vector<1x32x32xbf16> to vector<32x32xbf16>
    %cst_187 = arith.constant dense<0.000000e+00> : vector<8x32xf32>
    %440 = tpu.matmul %437, %439, %cst_187 {dimension_numbers = #tpu.dot_dimension_numbers<[1], [0], [0], [1], [0, 0, 1, 1], [], []>} : vector<8x32xbf16>, vector<32x32xbf16>, vector<8x32xf32> -> vector<8x32xf32>
    %c1_188 = arith.constant 1 : index
    %c0_189 = arith.constant 0 : index
    %c0_190 = arith.constant 0 : index
    %441 = vector.load %arg7[%c1_188, %c0_189, %c0_190] : memref<2x1x32xf32, #tpu.memory_space<vmem>>, vector<1x1x32xf32>
    %442 = vector.shape_cast %441 : vector<1x1x32xf32> to vector<1x32xf32>
    %443 = vector.broadcast %442 : vector<1x32xf32> to vector<8x32xf32>
    %444 = arith.addf %440, %443 : vector<8x32xf32>
    %c1_191 = arith.constant 1 : index
    %c0_192 = arith.constant 0 : index
    %c0_193 = arith.constant 0 : index
    %445 = vector.load %arg8[%c1_191, %c0_192, %c0_193] : memref<2x32x64xbf16, #tpu.memory_space<vmem>>, vector<1x32x64xbf16>
    %446 = vector.shape_cast %445 : vector<1x32x64xbf16> to vector<32x64xbf16>
    %cst_194 = arith.constant dense<0.000000e+00> : vector<16x64xf32>
    %447 = tpu.matmul %6, %446, %cst_194 {dimension_numbers = #tpu.dot_dimension_numbers<[1], [0], [0], [1], [0, 0, 1, 1], [], []>} : vector<16x32xbf16>, vector<32x64xbf16>, vector<16x64xf32> -> vector<16x64xf32>
    %c1_195 = arith.constant 1 : index
    %c0_196 = arith.constant 0 : index
    %c0_197 = arith.constant 0 : index
    %448 = vector.load %arg9[%c1_195, %c0_196, %c0_197] : memref<2x1x64xf32, #tpu.memory_space<vmem>>, vector<1x1x64xf32>
    %449 = vector.shape_cast %448 : vector<1x1x64xf32> to vector<1x64xf32>
    %450 = vector.broadcast %449 : vector<1x64xf32> to vector<16x64xf32>
    %451 = arith.addf %447, %450 : vector<16x64xf32>
    %452 = vector.extract_strided_slice %451 {offsets = [0, 0], sizes = [16, 32], strides = [1, 1]} : vector<16x64xf32> to vector<16x32xf32>
    %453 = vector.extract_strided_slice %451 {offsets = [0, 32], sizes = [16, 32], strides = [1, 1]} : vector<16x64xf32> to vector<16x32xf32>
    %454 = arith.truncf %444 : vector<8x32xf32> to vector<8x32xbf16>
    %455 = arith.truncf %452 : vector<16x32xf32> to vector<16x32xbf16>
    %456 = arith.truncf %453 : vector<16x32xf32> to vector<16x32xbf16>
    %457 = vector.extract_strided_slice %454 {offsets = [0, 0], sizes = [8, 8], strides = [1, 1]} : vector<8x32xbf16> to vector<8x8xbf16>
    %458 = vector.extract_strided_slice %455 {offsets = [0, 0], sizes = [16, 8], strides = [1, 1]} : vector<16x32xbf16> to vector<16x8xbf16>
    %cst_198 = arith.constant dense<0.000000e+00> : vector<8x16xf32>
    %459 = tpu.matmul %457, %458, %cst_198 {dimension_numbers = #tpu.dot_dimension_numbers<[1], [1], [0], [0], [0, 0, 1, 0], [], []>} : vector<8x8xbf16>, vector<16x8xbf16>, vector<8x16xf32> -> vector<8x16xf32>
    %cst_199 = arith.constant dense<0xFF800000> : vector<8xf32>
    %460 = vector.multi_reduction <maximumf>, %459, %cst_199 [1] : vector<8x16xf32> to vector<8xf32>
    %461 = vector.shape_cast %460 : vector<8xf32> to vector<8x1xf32>
    %462 = vector.broadcast %461 : vector<8x1xf32> to vector<8x16xf32>
    %463 = arith.subf %459, %462 : vector<8x16xf32>
    %464 = math.exp %463 : vector<8x16xf32>
    %cst_200 = arith.constant dense<0.000000e+00> : vector<8xf32>
    %465 = vector.multi_reduction <add>, %464, %cst_200 [1] : vector<8x16xf32> to vector<8xf32>
    %466 = vector.shape_cast %465 : vector<8xf32> to vector<8x1xf32>
    %467 = tpu.reciprocal %466 {approx = true} : vector<8x1xf32> -> vector<8x1xf32>
    %468 = vector.broadcast %467 : vector<8x1xf32> to vector<8x16xf32>
    %469 = arith.mulf %464, %468 : vector<8x16xf32>
    %470 = arith.truncf %469 : vector<8x16xf32> to vector<8x16xbf16>
    %471 = vector.extract_strided_slice %456 {offsets = [0, 0], sizes = [16, 8], strides = [1, 1]} : vector<16x32xbf16> to vector<16x8xbf16>
    %cst_201 = arith.constant dense<0.000000e+00> : vector<8x8xf32>
    %472 = tpu.matmul %470, %471, %cst_201 {dimension_numbers = #tpu.dot_dimension_numbers<[1], [0], [0], [1], [0, 0, 1, 1], [], []>} : vector<8x16xbf16>, vector<16x8xbf16>, vector<8x8xf32> -> vector<8x8xf32>
    %c0_202 = arith.constant 0 : index
    %c0_203 = arith.constant 0 : index
    %473 = vector.load %arg19[%c0_202, %c0_203] : memref<8x32xf32, #tpu.memory_space<vmem>>, vector<8x8xf32>
    tpu.vector_store %arg19[%c0_202, %c0_203], %472 {strides = array<i32>} : memref<8x32xf32, #tpu.memory_space<vmem>>, vector<8x8xf32>,
    %474 = vector.extract_strided_slice %454 {offsets = [0, 8], sizes = [8, 8], strides = [1, 1]} : vector<8x32xbf16> to vector<8x8xbf16>
    %475 = vector.extract_strided_slice %455 {offsets = [0, 8], sizes = [16, 8], strides = [1, 1]} : vector<16x32xbf16> to vector<16x8xbf16>
    %cst_204 = arith.constant dense<0.000000e+00> : vector<8x16xf32>
    %476 = tpu.matmul %474, %475, %cst_204 {dimension_numbers = #tpu.dot_dimension_numbers<[1], [1], [0], [0], [0, 0, 1, 0], [], []>} : vector<8x8xbf16>, vector<16x8xbf16>, vector<8x16xf32> -> vector<8x16xf32>
    %cst_205 = arith.constant dense<0xFF800000> : vector<8xf32>
    %477 = vector.multi_reduction <maximumf>, %476, %cst_205 [1] : vector<8x16xf32> to vector<8xf32>
    %478 = vector.shape_cast %477 : vector<8xf32> to vector<8x1xf32>
    %479 = vector.broadcast %478 : vector<8x1xf32> to vector<8x16xf32>
    %480 = arith.subf %476, %479 : vector<8x16xf32>
    %481 = math.exp %480 : vector<8x16xf32>
    %cst_206 = arith.constant dense<0.000000e+00> : vector<8xf32>
    %482 = vector.multi_reduction <add>, %481, %cst_206 [1] : vector<8x16xf32> to vector<8xf32>
    %483 = vector.shape_cast %482 : vector<8xf32> to vector<8x1xf32>
    %484 = tpu.reciprocal %483 {approx = true} : vector<8x1xf32> -> vector<8x1xf32>
    %485 = vector.broadcast %484 : vector<8x1xf32> to vector<8x16xf32>
    %486 = arith.mulf %481, %485 : vector<8x16xf32>
    %487 = arith.truncf %486 : vector<8x16xf32> to vector<8x16xbf16>
    %488 = vector.extract_strided_slice %456 {offsets = [0, 8], sizes = [16, 8], strides = [1, 1]} : vector<16x32xbf16> to vector<16x8xbf16>
    %cst_207 = arith.constant dense<0.000000e+00> : vector<8x8xf32>
    %489 = tpu.matmul %487, %488, %cst_207 {dimension_numbers = #tpu.dot_dimension_numbers<[1], [0], [0], [1], [0, 0, 1, 1], [], []>} : vector<8x16xbf16>, vector<16x8xbf16>, vector<8x8xf32> -> vector<8x8xf32>
    %c0_208 = arith.constant 0 : index
    %c8_209 = arith.constant 8 : index
    %490 = vector.load %arg19[%c0_208, %c8_209] : memref<8x32xf32, #tpu.memory_space<vmem>>, vector<8x8xf32>
    tpu.vector_store %arg19[%c0_208, %c8_209], %489 {strides = array<i32>} : memref<8x32xf32, #tpu.memory_space<vmem>>, vector<8x8xf32>,
    %491 = vector.extract_strided_slice %454 {offsets = [0, 16], sizes = [8, 8], strides = [1, 1]} : vector<8x32xbf16> to vector<8x8xbf16>
    %492 = vector.extract_strided_slice %455 {offsets = [0, 16], sizes = [16, 8], strides = [1, 1]} : vector<16x32xbf16> to vector<16x8xbf16>
    %cst_210 = arith.constant dense<0.000000e+00> : vector<8x16xf32>
    %493 = tpu.matmul %491, %492, %cst_210 {dimension_numbers = #tpu.dot_dimension_numbers<[1], [1], [0], [0], [0, 0, 1, 0], [], []>} : vector<8x8xbf16>, vector<16x8xbf16>, vector<8x16xf32> -> vector<8x16xf32>
    %cst_211 = arith.constant dense<0xFF800000> : vector<8xf32>
    %494 = vector.multi_reduction <maximumf>, %493, %cst_211 [1] : vector<8x16xf32> to vector<8xf32>
    %495 = vector.shape_cast %494 : vector<8xf32> to vector<8x1xf32>
    %496 = vector.broadcast %495 : vector<8x1xf32> to vector<8x16xf32>
    %497 = arith.subf %493, %496 : vector<8x16xf32>
    %498 = math.exp %497 : vector<8x16xf32>
    %cst_212 = arith.constant dense<0.000000e+00> : vector<8xf32>
    %499 = vector.multi_reduction <add>, %498, %cst_212 [1] : vector<8x16xf32> to vector<8xf32>
    %500 = vector.shape_cast %499 : vector<8xf32> to vector<8x1xf32>
    %501 = tpu.reciprocal %500 {approx = true} : vector<8x1xf32> -> vector<8x1xf32>
    %502 = vector.broadcast %501 : vector<8x1xf32> to vector<8x16xf32>
    %503 = arith.mulf %498, %502 : vector<8x16xf32>
    %504 = arith.truncf %503 : vector<8x16xf32> to vector<8x16xbf16>
    %505 = vector.extract_strided_slice %456 {offsets = [0, 16], sizes = [16, 8], strides = [1, 1]} : vector<16x32xbf16> to vector<16x8xbf16>
    %cst_213 = arith.constant dense<0.000000e+00> : vector<8x8xf32>
    %506 = tpu.matmul %504, %505, %cst_213 {dimension_numbers = #tpu.dot_dimension_numbers<[1], [0], [0], [1], [0, 0, 1, 1], [], []>} : vector<8x16xbf16>, vector<16x8xbf16>, vector<8x8xf32> -> vector<8x8xf32>
    %c0_214 = arith.constant 0 : index
    %c16_215 = arith.constant 16 : index
    %507 = vector.load %arg19[%c0_214, %c16_215] : memref<8x32xf32, #tpu.memory_space<vmem>>, vector<8x8xf32>
    tpu.vector_store %arg19[%c0_214, %c16_215], %506 {strides = array<i32>} : memref<8x32xf32, #tpu.memory_space<vmem>>, vector<8x8xf32>,
    %508 = vector.extract_strided_slice %454 {offsets = [0, 24], sizes = [8, 8], strides = [1, 1]} : vector<8x32xbf16> to vector<8x8xbf16>
    %509 = vector.extract_strided_slice %455 {offsets = [0, 24], sizes = [16, 8], strides = [1, 1]} : vector<16x32xbf16> to vector<16x8xbf16>
    %cst_216 = arith.constant dense<0.000000e+00> : vector<8x16xf32>
    %510 = tpu.matmul %508, %509, %cst_216 {dimension_numbers = #tpu.dot_dimension_numbers<[1], [1], [0], [0], [0, 0, 1, 0], [], []>} : vector<8x8xbf16>, vector<16x8xbf16>, vector<8x16xf32> -> vector<8x16xf32>
    %cst_217 = arith.constant dense<0xFF800000> : vector<8xf32>
    %511 = vector.multi_reduction <maximumf>, %510, %cst_217 [1] : vector<8x16xf32> to vector<8xf32>
    %512 = vector.shape_cast %511 : vector<8xf32> to vector<8x1xf32>
    %513 = vector.broadcast %512 : vector<8x1xf32> to vector<8x16xf32>
    %514 = arith.subf %510, %513 : vector<8x16xf32>
    %515 = math.exp %514 : vector<8x16xf32>
    %cst_218 = arith.constant dense<0.000000e+00> : vector<8xf32>
    %516 = vector.multi_reduction <add>, %515, %cst_218 [1] : vector<8x16xf32> to vector<8xf32>
    %517 = vector.shape_cast %516 : vector<8xf32> to vector<8x1xf32>
    %518 = tpu.reciprocal %517 {approx = true} : vector<8x1xf32> -> vector<8x1xf32>
    %519 = vector.broadcast %518 : vector<8x1xf32> to vector<8x16xf32>
    %520 = arith.mulf %515, %519 : vector<8x16xf32>
    %521 = arith.truncf %520 : vector<8x16xf32> to vector<8x16xbf16>
    %522 = vector.extract_strided_slice %456 {offsets = [0, 24], sizes = [16, 8], strides = [1, 1]} : vector<16x32xbf16> to vector<16x8xbf16>
    %cst_219 = arith.constant dense<0.000000e+00> : vector<8x8xf32>
    %523 = tpu.matmul %521, %522, %cst_219 {dimension_numbers = #tpu.dot_dimension_numbers<[1], [0], [0], [1], [0, 0, 1, 1], [], []>} : vector<8x16xbf16>, vector<16x8xbf16>, vector<8x8xf32> -> vector<8x8xf32>
    %c0_220 = arith.constant 0 : index
    %c24_221 = arith.constant 24 : index
    %524 = vector.load %arg19[%c0_220, %c24_221] : memref<8x32xf32, #tpu.memory_space<vmem>>, vector<8x8xf32>
    tpu.vector_store %arg19[%c0_220, %c24_221], %523 {strides = array<i32>} : memref<8x32xf32, #tpu.memory_space<vmem>>, vector<8x8xf32>,
    %c0_222 = arith.constant 0 : index
    %c0_223 = arith.constant 0 : index
    %525 = vector.load %arg19[%c0_222, %c0_223] : memref<8x32xf32, #tpu.memory_space<vmem>>, vector<8x32xf32>
    %526 = arith.truncf %525 : vector<8x32xf32> to vector<8x32xbf16>
    %c1_224 = arith.constant 1 : index
    %c0_225 = arith.constant 0 : index
    %c0_226 = arith.constant 0 : index
    %527 = vector.load %arg10[%c1_224, %c0_225, %c0_226] : memref<2x32x32xbf16, #tpu.memory_space<vmem>>, vector<1x32x32xbf16>
    %528 = vector.shape_cast %527 : vector<1x32x32xbf16> to vector<32x32xbf16>
    %cst_227 = arith.constant dense<0.000000e+00> : vector<8x32xf32>
    %529 = tpu.matmul %526, %528, %cst_227 {dimension_numbers = #tpu.dot_dimension_numbers<[1], [0], [0], [1], [0, 0, 1, 1], [], []>} : vector<8x32xbf16>, vector<32x32xbf16>, vector<8x32xf32> -> vector<8x32xf32>
    %c1_228 = arith.constant 1 : index
    %c0_229 = arith.constant 0 : index
    %c0_230 = arith.constant 0 : index
    %530 = vector.load %arg11[%c1_228, %c0_229, %c0_230] : memref<2x1x32xf32, #tpu.memory_space<vmem>>, vector<1x1x32xf32>
    %531 = vector.shape_cast %530 : vector<1x1x32xf32> to vector<1x32xf32>
    %532 = vector.broadcast %531 : vector<1x32xf32> to vector<8x32xf32>
    %533 = arith.addf %529, %532 : vector<8x32xf32>
    %534 = arith.addf %533, %436 : vector<8x32xf32>
    %c5 = arith.constant 5 : index
    %c0_231 = arith.constant 0 : index
    %535 = vector.load %arg16[%c5, %c0_231] : memref<7x32xf32, #tpu.memory_space<vmem>>, vector<1x32xf32>
    %c5_232 = arith.constant 5 : index
    %c0_233 = arith.constant 0 : index
    %536 = vector.load %arg17[%c5_232, %c0_233] : memref<7x32xf32, #tpu.memory_space<vmem>>, vector<1x32xf32>
    %cst_234 = arith.constant dense<0.000000e+00> : vector<8xf32>
    %537 = vector.multi_reduction <add>, %534, %cst_234 [1] : vector<8x32xf32> to vector<8xf32>
    %538 = vector.shape_cast %537 : vector<8xf32> to vector<8x1xf32>
    %cst_235 = arith.constant 3.200000e+01 : f32
    %539 = vector.broadcast %cst_235 : f32 to vector<8x1xf32>
    %540 = arith.divf %538, %539 : vector<8x1xf32>
    %541 = arith.mulf %534, %534 : vector<8x32xf32>
    %cst_236 = arith.constant dense<0.000000e+00> : vector<8xf32>
    %542 = vector.multi_reduction <add>, %541, %cst_236 [1] : vector<8x32xf32> to vector<8xf32>
    %543 = vector.shape_cast %542 : vector<8xf32> to vector<8x1xf32>
    %cst_237 = arith.constant 3.200000e+01 : f32
    %544 = vector.broadcast %cst_237 : f32 to vector<8x1xf32>
    %545 = arith.divf %543, %544 : vector<8x1xf32>
    %546 = arith.mulf %540, %540 : vector<8x1xf32>
    %547 = arith.subf %545, %546 : vector<8x1xf32>
    %548 = vector.broadcast %540 : vector<8x1xf32> to vector<8x32xf32>
    %549 = arith.subf %534, %548 : vector<8x32xf32>
    %cst_238 = arith.constant 9.99999974E-6 : f32
    %550 = vector.broadcast %cst_238 : f32 to vector<8x1xf32>
    %551 = arith.addf %547, %550 : vector<8x1xf32>
    %552 = math.rsqrt %551 : vector<8x1xf32>
    %553 = vector.broadcast %552 : vector<8x1xf32> to vector<8x32xf32>
    %554 = arith.mulf %549, %553 : vector<8x32xf32>
    %555 = vector.broadcast %535 : vector<1x32xf32> to vector<8x32xf32>
    %556 = arith.mulf %554, %555 : vector<8x32xf32>
    %557 = vector.broadcast %536 : vector<1x32xf32> to vector<8x32xf32>
    %558 = arith.addf %556, %557 : vector<8x32xf32>
    %559 = arith.truncf %558 : vector<8x32xf32> to vector<8x32xbf16>
    %c1_239 = arith.constant 1 : index
    %c0_240 = arith.constant 0 : index
    %c0_241 = arith.constant 0 : index
    %560 = vector.load %arg12[%c1_239, %c0_240, %c0_241] : memref<2x32x64xbf16, #tpu.memory_space<vmem>>, vector<1x32x64xbf16>
    %561 = vector.shape_cast %560 : vector<1x32x64xbf16> to vector<32x64xbf16>
    %cst_242 = arith.constant dense<0.000000e+00> : vector<8x64xf32>
    %562 = tpu.matmul %559, %561, %cst_242 {dimension_numbers = #tpu.dot_dimension_numbers<[1], [0], [0], [1], [0, 0, 1, 1], [], []>} : vector<8x32xbf16>, vector<32x64xbf16>, vector<8x64xf32> -> vector<8x64xf32>
    %c1_243 = arith.constant 1 : index
    %c0_244 = arith.constant 0 : index
    %c0_245 = arith.constant 0 : index
    %563 = vector.load %arg13[%c1_243, %c0_244, %c0_245] : memref<2x1x64xf32, #tpu.memory_space<vmem>>, vector<1x1x64xf32>
    %564 = vector.shape_cast %563 : vector<1x1x64xf32> to vector<1x64xf32>
    %565 = vector.broadcast %564 : vector<1x64xf32> to vector<8x64xf32>
    %566 = arith.addf %562, %565 : vector<8x64xf32>
    %cst_246 = arith.constant 0.000000e+00 : f32
    %567 = vector.broadcast %cst_246 : f32 to vector<8x64xf32>
    %568 = arith.maximumf %566, %567 : vector<8x64xf32>
    %569 = arith.truncf %568 : vector<8x64xf32> to vector<8x64xbf16>
    %c1_247 = arith.constant 1 : index
    %c0_248 = arith.constant 0 : index
    %c0_249 = arith.constant 0 : index
    %570 = vector.load %arg14[%c1_247, %c0_248, %c0_249] : memref<2x64x32xbf16, #tpu.memory_space<vmem>>, vector<1x64x32xbf16>
    %571 = vector.shape_cast %570 : vector<1x64x32xbf16> to vector<64x32xbf16>
    %cst_250 = arith.constant dense<0.000000e+00> : vector<8x32xf32>
    %572 = tpu.matmul %569, %571, %cst_250 {dimension_numbers = #tpu.dot_dimension_numbers<[1], [0], [0], [1], [0, 0, 1, 1], [], []>} : vector<8x64xbf16>, vector<64x32xbf16>, vector<8x32xf32> -> vector<8x32xf32>
    %c1_251 = arith.constant 1 : index
    %c0_252 = arith.constant 0 : index
    %c0_253 = arith.constant 0 : index
    %573 = vector.load %arg15[%c1_251, %c0_252, %c0_253] : memref<2x1x32xf32, #tpu.memory_space<vmem>>, vector<1x1x32xf32>
    %574 = vector.shape_cast %573 : vector<1x1x32xf32> to vector<1x32xf32>
    %575 = vector.broadcast %574 : vector<1x32xf32> to vector<8x32xf32>
    %576 = arith.addf %572, %575 : vector<8x32xf32>
    %577 = arith.addf %576, %558 : vector<8x32xf32>
    %c6 = arith.constant 6 : index
    %c0_254 = arith.constant 0 : index
    %578 = vector.load %arg16[%c6, %c0_254] : memref<7x32xf32, #tpu.memory_space<vmem>>, vector<1x32xf32>
    %c6_255 = arith.constant 6 : index
    %c0_256 = arith.constant 0 : index
    %579 = vector.load %arg17[%c6_255, %c0_256] : memref<7x32xf32, #tpu.memory_space<vmem>>, vector<1x32xf32>
    %cst_257 = arith.constant dense<0.000000e+00> : vector<8xf32>
    %580 = vector.multi_reduction <add>, %577, %cst_257 [1] : vector<8x32xf32> to vector<8xf32>
    %581 = vector.shape_cast %580 : vector<8xf32> to vector<8x1xf32>
    %cst_258 = arith.constant 3.200000e+01 : f32
    %582 = vector.broadcast %cst_258 : f32 to vector<8x1xf32>
    %583 = arith.divf %581, %582 : vector<8x1xf32>
    %584 = arith.mulf %577, %577 : vector<8x32xf32>
    %cst_259 = arith.constant dense<0.000000e+00> : vector<8xf32>
    %585 = vector.multi_reduction <add>, %584, %cst_259 [1] : vector<8x32xf32> to vector<8xf32>
    %586 = vector.shape_cast %585 : vector<8xf32> to vector<8x1xf32>
    %cst_260 = arith.constant 3.200000e+01 : f32
    %587 = vector.broadcast %cst_260 : f32 to vector<8x1xf32>
    %588 = arith.divf %586, %587 : vector<8x1xf32>
    %589 = arith.mulf %583, %583 : vector<8x1xf32>
    %590 = arith.subf %588, %589 : vector<8x1xf32>
    %591 = vector.broadcast %583 : vector<8x1xf32> to vector<8x32xf32>
    %592 = arith.subf %577, %591 : vector<8x32xf32>
    %cst_261 = arith.constant 9.99999974E-6 : f32
    %593 = vector.broadcast %cst_261 : f32 to vector<8x1xf32>
    %594 = arith.addf %590, %593 : vector<8x1xf32>
    %595 = math.rsqrt %594 : vector<8x1xf32>
    %596 = vector.broadcast %595 : vector<8x1xf32> to vector<8x32xf32>
    %597 = arith.mulf %592, %596 : vector<8x32xf32>
    %598 = vector.broadcast %578 : vector<1x32xf32> to vector<8x32xf32>
    %599 = arith.mulf %597, %598 : vector<8x32xf32>
    %600 = vector.broadcast %579 : vector<1x32xf32> to vector<8x32xf32>
    %601 = arith.addf %599, %600 : vector<8x32xf32>
    %602 = arith.truncf %601 : vector<8x32xf32> to vector<8x32xbf16>
    %c0_262 = arith.constant 0 : index
    %c0_263 = arith.constant 0 : index
    %603 = vector.load %arg18[%c0_262, %c0_263] : memref<8x32xbf16, #tpu.memory_space<vmem>>, vector<8x32xbf16>
    tpu.vector_store %arg18[%c0_262, %c0_263], %602 {strides = array<i32>} : memref<8x32xbf16, #tpu.memory_space<vmem>>, vector<8x32xbf16>,
    return
  }
}

</mosaic_0001>

<llo_original>
// kernel: decoder_wrapper_forward.3
$region0: #{decoder_wrapper_forward.3}
  #allocation0 [shape = 'u32[]', space=smem, size = 0x4, offset = 0x4, fixed_abs, tag = 'smem constant byte address 0x4 - core index']
  #allocation1 [shape = 'u32[144,128]{1,0:T(1,128)}', space=vmem, size = 0x12000, scoped, tag = 'internal scratch']
  %s0 = inlined_call_operand.vmem [shape: bf16[8,32], index: 0, kind: input, shape index: {}]
  %s1 = inlined_call_operand.vmem [shape: bf16[32,128], index: 1, kind: input, shape index: {}]
  %s2 = inlined_call_operand.hbm [shape: f32[8,128], index: 2, kind: output, shape index: {}]
  %s3 = sld [smem:[#allocation0]]
  $region18: #{decoder_wrapper_forward.3} parent=0
    _
  %s5 = ssub.s32 1, %s3
  %s6 = scalar_select 0, %s5, %s3
  $region1: #{decoder_wrapper_forward.3} parent=0
    #allocation2 [shape = 'u8[4096]{0}', space=vmem, size = 0x1000, scoped, tag = 'output window, operand 0, single buffered']
    #allocation3 [shape = 's32[1]{0}', space=sflag, size = 0x4, scoped, tag = 'scoped memory for decoder_wrapper_forward.3']
    %7 = vsyncpa [#allocation3], 0
    // Predicated region
    $region2: #{decoder_wrapper_forward.3} parent=1 // pred_check
      _
    $region3: #{decoder_wrapper_forward.3} parent=1 // pred_check_branch
      %9 = sbr.rel (0) target = $region5
    $region4: #{decoder_wrapper_forward.3} parent=1 // pred_region
      _
    $region5: #{decoder_wrapper_forward.3} parent=1 // pred_fallthru
      _
    // Predicated region
    $region6: #{decoder_wrapper_forward.3} parent=1 // pred_check
      _
    $region7: #{decoder_wrapper_forward.3} parent=1 // pred_check_branch
      %11 = sbr.rel (0) target = $region9
    $region8: #{decoder_wrapper_forward.3} parent=1 // pred_region
      _
    $region9: #{decoder_wrapper_forward.3} parent=1 // pred_fallthru
      _
    %v13 = vld [vmem:[%s0] sm:$0xf]
    %v14 = vld [vmem:[%s1] sm:$0xf]
    %v15 = vld [vmem:[%s1 + $0x4] sm:$0xf]
    %v16 = vld [vmem:[%s1 + $0x8] sm:$0xf]
    %v17 = vld [vmem:[%s1 + $0xc] sm:$0xf]
    %v22 = vunpack.c.l.b16 %v14
    %v23 = vunpack.c.l.b16 %v15
    %v24 = vunpack.c.l.b16 %v16
    %v25 = vunpack.c.l.b16 %v17
    %v26 = vpack.c.b16 %v23, %v22
    %v27 = vpack.c.b16 %v25, %v24
    %vm30 = vcmask 261120
    %v32 = vsel %vm30, %v13, 0
    %34 = vmatprep.subr.bf16.mxu0 0
    %35 = vmatpush1.bf16.msra.mxu0 %v26
    %36 = vmatprep.subr.bf16.mxu0 0
    %37 = vmatpush1.bf16.msra.mxu0 %v27
    %38 = vmatprep.subr.bf16.mxu0 0
    %39 = vmatpush1.bf16.msra.mxu0 0
    %40 = vmatprep.subr.bf16.mxu0 0
    %41 = vmatpush1.bf16.msra.mxu0 0
    %42 = vmatprep.subr.bf16.mxu0 0
    %43 = vmatpush1.bf16.msra.mxu0 0
    %44 = vmatprep.subr.bf16.mxu0 0
    %45 = vmatpush1.bf16.msra.mxu0 0
    %46 = vmatprep.subr.bf16.mxu0 0
    %47 = vmatpush1.bf16.msra.mxu0 0
    %48 = vmatprep.subr.bf16.mxu0 0
    %49 = vmatpush1.bf16.msra.mxu0 0
    %50 = vmatprep.subr.bf16.mxu0 0
    %51 = vmatpush1.bf16.msra.mxu0 0
    %52 = vmatprep.subr.bf16.mxu0 0
    %53 = vmatpush1.bf16.msra.mxu0 0
    %54 = vmatprep.subr.bf16.mxu0 0
    %55 = vmatpush1.bf16.msra.mxu0 0
    %56 = vmatprep.subr.bf16.mxu0 0
    %57 = vmatpush1.bf16.msra.mxu0 0
    %58 = vmatprep.subr.bf16.mxu0 0
    %59 = vmatpush1.bf16.msra.mxu0 0
    %60 = vmatprep.subr.bf16.mxu0 0
    %61 = vmatpush1.bf16.msra.mxu0 0
    %62 = vmatprep.subr.bf16.mxu0 0
    %63 = vmatpush1.bf16.msra.mxu0 0
    %64 = vmatprep.subr.bf16.mxu0 0
    %65 = vmatpush1.bf16.msra.mxu0 0
    %66 = vmatprep.mubr.bf16.mxu0 0
    %67 = vmatmul.mubr.bf16.gmra.mrb[0].mxu0 %v32
    %v68 = vpop.f32.mrb[0].mxu0
    %v69 = vadd.f32 0.0, %v68
    %v70 = vpop.f32.mrb[0].mxu0
    %v71 = vpop.f32.mrb[0].mxu0
    %v72 = vpop.f32.mrb[0].mxu0
    %73 = vdwg.mxu0
    %74 = vst [vmem:[#allocation2] sm:$0xff] %v69
    // Predicated region
    $region10: #{decoder_wrapper_forward.3} parent=1 // pred_check
      _
    $region11: #{decoder_wrapper_forward.3} parent=1 // pred_check_branch
      %76 = sbr.rel (0) target = $region13
    $region12: #{decoder_wrapper_forward.3} parent=1 // pred_region
      %s78 = ssub.s32 128, 128
      %79 = vsyncadd [#allocation3], %s78
      %s81 = sshll.u32 [#allocation2], 4
      %s82 = int_to_ptr.vmem [resolvable:$true] %s81
      %84 = dma.vmem_to_hbm [thread:$0]  %s82, 128, %s2, [#allocation3]
    $region13: #{decoder_wrapper_forward.3} parent=1 // pred_fallthru
      _
    // Predicated region
    $region14: #{decoder_wrapper_forward.3} parent=1 // pred_check
      _
    $region15: #{decoder_wrapper_forward.3} parent=1 // pred_check_branch
      %86 = sbr.rel (0) target = $region17
    $region16: #{decoder_wrapper_forward.3} parent=1 // pred_region
      %87 = dma.done [#allocation3], 128
    $region17: #{decoder_wrapper_forward.3} parent=1 // pred_fallthru
      _
    %88 = vsyncpa [#allocation3], 1

// kernel: decoder_wrapper_forward.2
$region0: #{decoder_wrapper_forward.2}
  #allocation0 [shape = 'u32[]', space=smem, size = 0x4, offset = 0x4, fixed_abs, tag = 'smem constant byte address 0x4 - core index']
  #allocation1 [shape = 'u32[144,128]{1,0:T(1,128)}', space=vmem, size = 0x12000, scoped, tag = 'internal scratch']
  #allocation2 [shape = 'f32[8,32]{1,0:T(8,128)}', space=vmem, size = 0x1000, scoped, tag = 'scratch operand']
  %s0 = inlined_call_operand.vmem [shape: f32[8,32], index: 0, kind: input, shape index: {}]
  %s1 = inlined_call_operand.vmem [shape: bf16[16,32], index: 1, kind: input, shape index: {}]
  %s2 = inlined_call_operand.vmem [shape: bf16[2,32,96], index: 2, kind: input, shape index: {}]
  %s3 = inlined_call_operand.vmem [shape: f32[2,1,96], index: 3, kind: input, shape index: {}]
  %s4 = inlined_call_operand.vmem [shape: bf16[2,32,32], index: 4, kind: input, shape index: {}]
  %s5 = inlined_call_operand.vmem [shape: f32[2,1,32], index: 5, kind: input, shape index: {}]
  %s6 = inlined_call_operand.vmem [shape: bf16[2,32,32], index: 6, kind: input, shape index: {}]
  %s7 = inlined_call_operand.vmem [shape: f32[2,1,32], index: 7, kind: input, shape index: {}]
  %s8 = inlined_call_operand.vmem [shape: bf16[2,32,64], index: 8, kind: input, shape index: {}]
  %s9 = inlined_call_operand.vmem [shape: f32[2,1,64], index: 9, kind: input, shape index: {}]
  %s10 = inlined_call_operand.vmem [shape: bf16[2,32,32], index: 10, kind: input, shape index: {}]
  %s11 = inlined_call_operand.vmem [shape: f32[2,1,32], index: 11, kind: input, shape index: {}]
  %s12 = inlined_call_operand.vmem [shape: bf16[2,32,64], index: 12, kind: input, shape index: {}]
  %s13 = inlined_call_operand.vmem [shape: f32[2,1,64], index: 13, kind: input, shape index: {}]
  %s14 = inlined_call_operand.vmem [shape: bf16[2,64,32], index: 14, kind: input, shape index: {}]
  %s15 = inlined_call_operand.vmem [shape: f32[2,1,32], index: 15, kind: input, shape index: {}]
  %s16 = inlined_call_operand.vmem [shape: f32[7,32], index: 16, kind: input, shape index: {}]
  %s17 = inlined_call_operand.vmem [shape: f32[7,32], index: 17, kind: input, shape index: {}]
  %s18 = inlined_call_operand.vmem [shape: bf16[8,32], index: 18, kind: output, shape index: {}]
  %s19 = sld [smem:[#allocation0]]
  $region82: #{decoder_wrapper_forward.2} parent=0
    _
  %s21 = ssub.s32 1, %s19
  %s22 = scalar_select 0, %s21, %s19
  // Predicated region
  $region2: #{decoder_wrapper_forward.2} parent=0 // pred_check
    _
  $region3: #{decoder_wrapper_forward.2} parent=0 // pred_check_branch
    %24 = sbr.rel (0) target = $region5
  $region4: #{decoder_wrapper_forward.2} parent=0 // pred_region
    _
  $region5: #{decoder_wrapper_forward.2} parent=0 // pred_fallthru
    _
  // Predicated region
  $region6: #{decoder_wrapper_forward.2} parent=0 // pred_check
    _
  $region7: #{decoder_wrapper_forward.2} parent=0 // pred_check_branch
    %26 = sbr.rel (0) target = $region9
  $region8: #{decoder_wrapper_forward.2} parent=0 // pred_region
    _
  $region9: #{decoder_wrapper_forward.2} parent=0 // pred_fallthru
    _
  // Predicated region
  $region10: #{decoder_wrapper_forward.2} parent=0 // pred_check
    _
  $region11: #{decoder_wrapper_forward.2} parent=0 // pred_check_branch
    %28 = sbr.rel (0) target = $region13
  $region12: #{decoder_wrapper_forward.2} parent=0 // pred_region
    _
  $region13: #{decoder_wrapper_forward.2} parent=0 // pred_fallthru
    _
  // Predicated region
  $region14: #{decoder_wrapper_forward.2} parent=0 // pred_check
    _
  $region15: #{decoder_wrapper_forward.2} parent=0 // pred_check_branch
    %30 = sbr.rel (0) target = $region17
  $region16: #{decoder_wrapper_forward.2} parent=0 // pred_region
    _
  $region17: #{decoder_wrapper_forward.2} parent=0 // pred_fallthru
    _
  // Predicated region
  $region18: #{decoder_wrapper_forward.2} parent=0 // pred_check
    _
  $region19: #{decoder_wrapper_forward.2} parent=0 // pred_check_branch
    %32 = sbr.rel (0) target = $region21
  $region20: #{decoder_wrapper_forward.2} parent=0 // pred_region
    _
  $region21: #{decoder_wrapper_forward.2} parent=0 // pred_fallthru
    _
  // Predicated region
  $region22: #{decoder_wrapper_forward.2} parent=0 // pred_check
    _
  $region23: #{decoder_wrapper_forward.2} parent=0 // pred_check_branch
    %34 = sbr.rel (0) target = $region25
  $region24: #{decoder_wrapper_forward.2} parent=0 // pred_region
    _
  $region25: #{decoder_wrapper_forward.2} parent=0 // pred_fallthru
    _
  // Predicated region
  $region26: #{decoder_wrapper_forward.2} parent=0 // pred_check
    _
  $region27: #{decoder_wrapper_forward.2} parent=0 // pred_check_branch
    %36 = sbr.rel (0) target = $region29
  $region28: #{decoder_wrapper_forward.2} parent=0 // pred_region
    _
  $region29: #{decoder_wrapper_forward.2} parent=0 // pred_fallthru
    _
  // Predicated region
  $region30: #{decoder_wrapper_forward.2} parent=0 // pred_check
    _
  $region31: #{decoder_wrapper_forward.2} parent=0 // pred_check_branch
    %38 = sbr.rel (0) target = $region33
  $region32: #{decoder_wrapper_forward.2} parent=0 // pred_region
    _
  $region33: #{decoder_wrapper_forward.2} parent=0 // pred_fallthru
    _
  // Predicated region
  $region34: #{decoder_wrapper_forward.2} parent=0 // pred_check
    _
  $region35: #{decoder_wrapper_forward.2} parent=0 // pred_check_branch
    %40 = sbr.rel (0) target = $region37
  $region36: #{decoder_wrapper_forward.2} parent=0 // pred_region
    _
  $region37: #{decoder_wrapper_forward.2} parent=0 // pred_fallthru
    _
  // Predicated region
  $region38: #{decoder_wrapper_forward.2} parent=0 // pred_check
    _
  $region39: #{decoder_wrapper_forward.2} parent=0 // pred_check_branch
    %42 = sbr.rel (0) target = $region41
  $region40: #{decoder_wrapper_forward.2} parent=0 // pred_region
    _
  $region41: #{decoder_wrapper_forward.2} parent=0 // pred_fallthru
    _
  // Predicated region
  $region42: #{decoder_wrapper_forward.2} parent=0 // pred_check
    _
  $region43: #{decoder_wrapper_forward.2} parent=0 // pred_check_branch
    %44 = sbr.rel (0) target = $region45
  $region44: #{decoder_wrapper_forward.2} parent=0 // pred_region
    _
  $region45: #{decoder_wrapper_forward.2} parent=0 // pred_fallthru
    _
  // Predicated region
  $region46: #{decoder_wrapper_forward.2} parent=0 // pred_check
    _
  $region47: #{decoder_wrapper_forward.2} parent=0 // pred_check_branch
    %46 = sbr.rel (0) target = $region49
  $region48: #{decoder_wrapper_forward.2} parent=0 // pred_region
    _
  $region49: #{decoder_wrapper_forward.2} parent=0 // pred_fallthru
    _
  // Predicated region
  $region50: #{decoder_wrapper_forward.2} parent=0 // pred_check
    _
  $region51: #{decoder_wrapper_forward.2} parent=0 // pred_check_branch
    %48 = sbr.rel (0) target = $region53
  $region52: #{decoder_wrapper_forward.2} parent=0 // pred_region
    _
  $region53: #{decoder_wrapper_forward.2} parent=0 // pred_fallthru
    _
  // Predicated region
  $region54: #{decoder_wrapper_forward.2} parent=0 // pred_check
    _
  $region55: #{decoder_wrapper_forward.2} parent=0 // pred_check_branch
    %50 = sbr.rel (0) target = $region57
  $region56: #{decoder_wrapper_forward.2} parent=0 // pred_region
    _
  $region57: #{decoder_wrapper_forward.2} parent=0 // pred_fallthru
    _
  // Predicated region
  $region58: #{decoder_wrapper_forward.2} parent=0 // pred_check
    _
  $region59: #{decoder_wrapper_forward.2} parent=0 // pred_check_branch
    %52 = sbr.rel (0) target = $region61
  $region60: #{decoder_wrapper_forward.2} parent=0 // pred_region
    _
  $region61: #{decoder_wrapper_forward.2} parent=0 // pred_fallthru
    _
  // Predicated region
  $region62: #{decoder_wrapper_forward.2} parent=0 // pred_check
    _
  $region63: #{decoder_wrapper_forward.2} parent=0 // pred_check_branch
    %54 = sbr.rel (0) target = $region65
  $region64: #{decoder_wrapper_forward.2} parent=0 // pred_region
    _
  $region65: #{decoder_wrapper_forward.2} parent=0 // pred_fallthru
    _
  // Predicated region
  $region66: #{decoder_wrapper_forward.2} parent=0 // pred_check
    _
  $region67: #{decoder_wrapper_forward.2} parent=0 // pred_check_branch
    %56 = sbr.rel (0) target = $region69
  $region68: #{decoder_wrapper_forward.2} parent=0 // pred_region
    _
  $region69: #{decoder_wrapper_forward.2} parent=0 // pred_fallthru
    _
  // Predicated region
  $region70: #{decoder_wrapper_forward.2} parent=0 // pred_check
    _
  $region71: #{decoder_wrapper_forward.2} parent=0 // pred_check_branch
    %58 = sbr.rel (0) target = $region73
  $region72: #{decoder_wrapper_forward.2} parent=0 // pred_region
    _
  $region73: #{decoder_wrapper_forward.2} parent=0 // pred_fallthru
    _
  %v60 = vlaneseq
  %v61 = vshrl.u32 %v60, 7
  %v62 = vlaneseq
  %v63 = vand.u32 %v62, 127
  %vm64 = vcmp.le.s32.totalorder %v63, %v61
  %v65 = vsel %vm64, 0.0, -1e+30
  %v66 = vld [vmem:[%s1] sm:$0xf]
  %v67 = vld [vmem:[%s1 + $0x4] sm:$0xf]
  %v68 = vld [vmem:[%s0] sm:$0xff]
  %v69 = vld [vmem:[%s16] sm:$0x1]
  %v70 = vld [vmem:[%s17] sm:$0x1]
  %vm71 = vcmask 261120
  %v72 = vsel %vm71, %v68, 0.0
  %73 = vadd.xlane.f32.xlu0 %v72
  %v74 = vpop.xlane.xlu0 %73
  %v75 = vrcp.pop 32.0
  %v76 = vmul.f32 %v74, %v75
  %v77 = vmul.f32 %v68, %v68
  %v78 = vsel %vm71, %v77, 0.0
  %79 = vadd.xlane.f32.xlu0 %v78
  %v80 = vpop.xlane.xlu0 %79
  %v81 = vmul.f32 %v80, %v75
  %v82 = vmul.f32 %v76, %v76
  %v83 = vsub.f32 %v81, %v82
  %v84 = vsub.f32 %v68, %v76
  %v85 = vadd.f32 %v83, 1e-05
  %v86 = vrsqrt.pop %v85
  %v87 = vmul.f32 %v84, %v86
  %v88 = vlaneseq
  %v89 = vshrl.u32 %v88, 7
  %v90 = vsub.s32 0, %v89
  %v91 = vrot.slane %v69, %v90
  %v92 = vmul.f32 %v87, %v91
  %v93 = vlaneseq
  %v94 = vshrl.u32 %v93, 7
  %v95 = vsub.s32 0, %v94
  %v96 = vrot.slane %v70, %v95
  %v97 = vadd.f32 %v92, %v96
  %v98 = vpack.c.bf16 %v97, %v97
  %v99 = vld [vmem:[%s2] sm:$0xf]
  %v100 = vld [vmem:[%s2 + $0x4] sm:$0xf]
  %v101 = vld [vmem:[%s2 + $0x8] sm:$0xf]
  %v102 = vld [vmem:[%s2 + $0xc] sm:$0xf]
  %v103 = vld [vmem:[%s3] sm:$0x1]
  %v105 = vlaneseq
  %v106 = vshrl.u32 %v105, 7
  %v107 = vsub.s32 0, %v106
  %v108 = vrot.slane %v103, %v107
  %v114 = vunpack.c.l.b16 %v99
  %v115 = vunpack.c.l.b16 %v100
  %v116 = vunpack.c.l.b16 %v101
  %v117 = vunpack.c.l.b16 %v102
  %v118 = vpack.c.b16 %v115, %v114
  %v119 = vpack.c.b16 %v117, %v116
  %v123 = vsel %vm71, %v98, 0
  %125 = vmatprep.subr.bf16.mxu0 0
  %126 = vmatpush1.bf16.msra.mxu0 %v118
  %127 = vmatprep.subr.bf16.mxu0 0
  %128 = vmatpush1.bf16.msra.mxu0 %v119
  %129 = vmatprep.subr.bf16.mxu0 0
  %130 = vmatpush1.bf16.msra.mxu0 0
  %131 = vmatprep.subr.bf16.mxu0 0
  %132 = vmatpush1.bf16.msra.mxu0 0
  %133 = vmatprep.subr.bf16.mxu0 0
  %134 = vmatpush1.bf16.msra.mxu0 0
  %135 = vmatprep.subr.bf16.mxu0 0
  %136 = vmatpush1.bf16.msra.mxu0 0
  %137 = vmatprep.subr.bf16.mxu0 0
  %138 = vmatpush1.bf16.msra.mxu0 0
  %139 = vmatprep.subr.bf16.mxu0 0
  %140 = vmatpush1.bf16.msra.mxu0 0
  %141 = vmatprep.subr.bf16.mxu0 0
  %142 = vmatpush1.bf16.msra.mxu0 0
  %143 = vmatprep.subr.bf16.mxu0 0
  %144 = vmatpush1.bf16.msra.mxu0 0
  %145 = vmatprep.subr.bf16.mxu0 0
  %146 = vmatpush1.bf16.msra.mxu0 0
  %147 = vmatprep.subr.bf16.mxu0 0
  %148 = vmatpush1.bf16.msra.mxu0 0
  %149 = vmatprep.subr.bf16.mxu0 0
  %150 = vmatpush1.bf16.msra.mxu0 0
  %151 = vmatprep.subr.bf16.mxu0 0
  %152 = vmatpush1.bf16.msra.mxu0 0
  %153 = vmatprep.subr.bf16.mxu0 0
  %154 = vmatpush1.bf16.msra.mxu0 0
  %155 = vmatprep.subr.bf16.mxu0 0
  %156 = vmatpush1.bf16.msra.mxu0 0
  %157 = vmatprep.mubr.bf16.mxu0 0
  %158 = vmatmul.mubr.bf16.gmra.mrb[0].mxu0 %v123
  %v159 = vpop.f32.mrb[0].mxu0
  %v160 = vadd.f32 %v108, %v159
  %v161 = vpop.f32.mrb[0].mxu0
  %v162 = vpop.f32.mrb[0].mxu0
  %v163 = vpop.f32.mrb[0].mxu0
  %164 = vdwg.mxu0
  %v165 = vpack.c.bf16 %v160, %v160
  %167 = vrot.lane.b32.xlu0 %v165, 96
  %v168 = vpop.permute.xlu0 %167
  %vm169 = vcmask 64512
  %v171 = vsel %vm169, %v165, 0
  %v174 = vsel %vm169, %v168, 0
  %176 = vmatprep.subr.bf16.mxu0 0
  %177 = vmatpush1.bf16.xpose.msra.mxu0 %v174
  %178 = vmatprep.subr.bf16.mxu0 0
  %179 = vmatpush1.bf16.xpose.msra.mxu0 0
  %180 = vmatprep.subr.bf16.mxu0 0
  %181 = vmatpush1.bf16.xpose.msra.mxu0 0
  %182 = vmatprep.subr.bf16.mxu0 0
  %183 = vmatpush1.bf16.xpose.msra.mxu0 0
  %184 = vmatprep.subr.bf16.mxu0 0
  %185 = vmatpush1.bf16.xpose.msra.mxu0 0
  %186 = vmatprep.subr.bf16.mxu0 0
  %187 = vmatpush1.bf16.xpose.msra.mxu0 0
  %188 = vmatprep.subr.bf16.mxu0 0
  %189 = vmatpush1.bf16.xpose.msra.mxu0 0
  %190 = vmatprep.subr.bf16.mxu0 0
  %191 = vmatpush1.bf16.xpose.msra.mxu0 0
  %192 = vmatprep.subr.bf16.mxu0 0
  %193 = vmatpush1.bf16.xpose.msra.mxu0 0
  %194 = vmatprep.subr.bf16.mxu0 0
  %195 = vmatpush1.bf16.xpose.msra.mxu0 0
  %196 = vmatprep.subr.bf16.mxu0 0
  %197 = vmatpush1.bf16.xpose.msra.mxu0 0
  %198 = vmatprep.subr.bf16.mxu0 0
  %199 = vmatpush1.bf16.xpose.msra.mxu0 0
  %200 = vmatprep.subr.bf16.mxu0 0
  %201 = vmatpush1.bf16.xpose.msra.mxu0 0
  %202 = vmatprep.subr.bf16.mxu0 0
  %203 = vmatpush1.bf16.xpose.msra.mxu0 0
  %204 = vmatprep.subr.bf16.mxu0 0
  %205 = vmatpush1.bf16.xpose.msra.mxu0 0
  %206 = vmatprep.subr.bf16.mxu0 0
  %207 = vmatpush1.bf16.xpose.msra.mxu0 0
  %208 = vmatprep.mubr.bf16.mxu0 0
  %209 = vmatmul.mubr.bf16.gmra.mrb[0].mxu0 %v171
  %v210 = vpop.f32.mrb[0].mxu0
  %v211 = vadd.f32 %v65, %v210
  %v212 = vpop.f32.mrb[0].mxu0
  %v213 = vpop.f32.mrb[0].mxu0
  %v214 = vpop.f32.mrb[0].mxu0
  %215 = vdwg.mxu0
  %v216 = vsel %vm169, %v211, -inf
  %217 = vmax.xlane.f32.xlu0 %v216
  %v218 = vpop.xlane.xlu0 %217
  %v219 = vsub.f32 %v211, %v218
  %v220 = vmul.f32 %v219, 1.442695
  %v221 = vpow.pop %v220
  %v222 = vsel %vm169, %v221, 0.0
  %223 = vadd.xlane.f32.xlu0 %v222
  %v224 = vpop.xlane.xlu0 %223
  %v225 = vrcp.pop %v224
  %v226 = vmul.f32 %v221, %v225
  %v227 = vpack.c.bf16 %v226, %v226
  %228 = vrot.lane.b32.xlu0 %v165, 64
  %v229 = vpop.permute.xlu0 %228
  %v231 = vsel %vm169, %v227, 0
  %vm233 = vcmask 1043456
  %v235 = vsel %vm233, %v229, 0
  %237 = vmatprep.subr.bf16.mxu0 0
  %238 = vmatpush1.bf16.msra.mxu0 %v235
  %239 = vmatprep.subr.bf16.mxu0 0
  %240 = vmatpush1.bf16.msra.mxu0 0
  %241 = vmatprep.subr.bf16.mxu0 0
  %242 = vmatpush1.bf16.msra.mxu0 0
  %243 = vmatprep.subr.bf16.mxu0 0
  %244 = vmatpush1.bf16.msra.mxu0 0
  %245 = vmatprep.subr.bf16.mxu0 0
  %246 = vmatpush1.bf16.msra.mxu0 0
  %247 = vmatprep.subr.bf16.mxu0 0
  %248 = vmatpush1.bf16.msra.mxu0 0
  %249 = vmatprep.subr.bf16.mxu0 0
  %250 = vmatpush1.bf16.msra.mxu0 0
  %251 = vmatprep.subr.bf16.mxu0 0
  %252 = vmatpush1.bf16.msra.mxu0 0
  %253 = vmatprep.subr.bf16.mxu0 0
  %254 = vmatpush1.bf16.msra.mxu0 0
  %255 = vmatprep.subr.bf16.mxu0 0
  %256 = vmatpush1.bf16.msra.mxu0 0
  %257 = vmatprep.subr.bf16.mxu0 0
  %258 = vmatpush1.bf16.msra.mxu0 0
  %259 = vmatprep.subr.bf16.mxu0 0
  %260 = vmatpush1.bf16.msra.mxu0 0
  %261 = vmatprep.subr.bf16.mxu0 0
  %262 = vmatpush1.bf16.msra.mxu0 0
  %263 = vmatprep.subr.bf16.mxu0 0
  %264 = vmatpush1.bf16.msra.mxu0 0
  %265 = vmatprep.subr.bf16.mxu0 0
  %266 = vmatpush1.bf16.msra.mxu0 0
  %267 = vmatprep.subr.bf16.mxu0 0
  %268 = vmatpush1.bf16.msra.mxu0 0
  %269 = vmatprep.mubr.bf16.mxu0 0
  %270 = vmatmul.mubr.bf16.gmra.mrb[0].mxu0 %v231
  %v271 = vpop.f32.mrb[0].mxu0
  %v272 = vadd.f32 0.0, %v271
  %v273 = vpop.f32.mrb[0].mxu0
  %v274 = vpop.f32.mrb[0].mxu0
  %v275 = vpop.f32.mrb[0].mxu0
  %276 = vdwg.mxu0
  %277 = vst.msk [vmem:[#allocation2] sm:$0xff] %vm169, %v272
  %278 = vrot.lane.b32.xlu0 %v165, 120
  %v279 = vpop.permute.xlu0 %278
  %280 = vrot.lane.b32.xlu0 %v165, 88
  %v281 = vpop.permute.xlu0 %280
  %v283 = vsel %vm169, %v279, 0
  %v286 = vsel %vm169, %v281, 0
  %288 = vmatprep.subr.bf16.mxu0 0
  %289 = vmatpush1.bf16.xpose.msra.mxu0 %v286
  %290 = vmatprep.subr.bf16.mxu0 0
  %291 = vmatpush1.bf16.xpose.msra.mxu0 0
  %292 = vmatprep.subr.bf16.mxu0 0
  %293 = vmatpush1.bf16.xpose.msra.mxu0 0
  %294 = vmatprep.subr.bf16.mxu0 0
  %295 = vmatpush1.bf16.xpose.msra.mxu0 0
  %296 = vmatprep.subr.bf16.mxu0 0
  %297 = vmatpush1.bf16.xpose.msra.mxu0 0
  %298 = vmatprep.subr.bf16.mxu0 0
  %299 = vmatpush1.bf16.xpose.msra.mxu0 0
  %300 = vmatprep.subr.bf16.mxu0 0
  %301 = vmatpush1.bf16.xpose.msra.mxu0 0
  %302 = vmatprep.subr.bf16.mxu0 0
  %303 = vmatpush1.bf16.xpose.msra.mxu0 0
  %304 = vmatprep.subr.bf16.mxu0 0
  %305 = vmatpush1.bf16.xpose.msra.mxu0 0
  %306 = vmatprep.subr.bf16.mxu0 0
  %307 = vmatpush1.bf16.xpose.msra.mxu0 0
  %308 = vmatprep.subr.bf16.mxu0 0
  %309 = vmatpush1.bf16.xpose.msra.mxu0 0
  %310 = vmatprep.subr.bf16.mxu0 0
  %311 = vmatpush1.bf16.xpose.msra.mxu0 0
  %312 = vmatprep.subr.bf16.mxu0 0
  %313 = vmatpush1.bf16.xpose.msra.mxu0 0
  %314 = vmatprep.subr.bf16.mxu0 0
  %315 = vmatpush1.bf16.xpose.msra.mxu0 0
  %316 = vmatprep.subr.bf16.mxu0 0
  %317 = vmatpush1.bf16.xpose.msra.mxu0 0
  %318 = vmatprep.subr.bf16.mxu0 0
  %319 = vmatpush1.bf16.xpose.msra.mxu0 0
  %320 = vmatprep.mubr.bf16.mxu0 0
  %321 = vmatmul.mubr.bf16.gmra.mrb[0].mxu0 %v283
  %v322 = vpop.f32.mrb[0].mxu0
  %v323 = vadd.f32 %v65, %v322
  %v324 = vpop.f32.mrb[0].mxu0
  %v325 = vpop.f32.mrb[0].mxu0
  %v326 = vpop.f32.mrb[0].mxu0
  %327 = vdwg.mxu0
  %v328 = vsel %vm169, %v323, -inf
  %329 = vmax.xlane.f32.xlu0 %v328
  %v330 = vpop.xlane.xlu0 %329
  %v331 = vsub.f32 %v323, %v330
  %v332 = vmul.f32 %v331, 1.442695
  %v333 = vpow.pop %v332
  %v334 = vsel %vm169, %v333, 0.0
  %335 = vadd.xlane.f32.xlu0 %v334
  %v336 = vpop.xlane.xlu0 %335
  %v337 = vrcp.pop %v336
  %v338 = vmul.f32 %v333, %v337
  %v339 = vpack.c.bf16 %v338, %v338
  %340 = vrot.lane.b32.xlu0 %v165, 56
  %v341 = vpop.permute.xlu0 %340
  %v343 = vsel %vm169, %v339, 0
  %v346 = vsel %vm233, %v341, 0
  %348 = vmatprep.subr.bf16.mxu0 0
  %349 = vmatpush1.bf16.msra.mxu0 %v346
  %350 = vmatprep.subr.bf16.mxu0 0
  %351 = vmatpush1.bf16.msra.mxu0 0
  %352 = vmatprep.subr.bf16.mxu0 0
  %353 = vmatpush1.bf16.msra.mxu0 0
  %354 = vmatprep.subr.bf16.mxu0 0
  %355 = vmatpush1.bf16.msra.mxu0 0
  %356 = vmatprep.subr.bf16.mxu0 0
  %357 = vmatpush1.bf16.msra.mxu0 0
  %358 = vmatprep.subr.bf16.mxu0 0
  %359 = vmatpush1.bf16.msra.mxu0 0
  %360 = vmatprep.subr.bf16.mxu0 0
  %361 = vmatpush1.bf16.msra.mxu0 0
  %362 = vmatprep.subr.bf16.mxu0 0
  %363 = vmatpush1.bf16.msra.mxu0 0
  %364 = vmatprep.subr.bf16.mxu0 0
  %365 = vmatpush1.bf16.msra.mxu0 0
  %366 = vmatprep.subr.bf16.mxu0 0
  %367 = vmatpush1.bf16.msra.mxu0 0
  %368 = vmatprep.subr.bf16.mxu0 0
  %369 = vmatpush1.bf16.msra.mxu0 0
  %370 = vmatprep.subr.bf16.mxu0 0
  %371 = vmatpush1.bf16.msra.mxu0 0
  %372 = vmatprep.subr.bf16.mxu0 0
  %373 = vmatpush1.bf16.msra.mxu0 0
  %374 = vmatprep.subr.bf16.mxu0 0
  %375 = vmatpush1.bf16.msra.mxu0 0
  %376 = vmatprep.subr.bf16.mxu0 0
  %377 = vmatpush1.bf16.msra.mxu0 0
  %378 = vmatprep.subr.bf16.mxu0 0
  %379 = vmatpush1.bf16.msra.mxu0 0
  %380 = vmatprep.mubr.bf16.mxu0 0
  %381 = vmatmul.mubr.bf16.gmra.mrb[0].mxu0 %v343
  %v382 = vpop.f32.mrb[0].mxu0
  %v383 = vadd.f32 0.0, %v382
  %v384 = vpop.f32.mrb[0].mxu0
  %v385 = vpop.f32.mrb[0].mxu0
  %v386 = vpop.f32.mrb[0].mxu0
  %387 = vdwg.mxu0
  %389 = vrot.lane.b32.xlu0 %v383, 8
  %v390 = vpop.permute.xlu0 %389
  %vm392 = vcmask 130112
  %393 = vst.msk [vmem:[#allocation2] sm:$0xff] %vm392, %v390
  %394 = vrot.lane.b32.xlu0 %v165, 112
  %v395 = vpop.permute.xlu0 %394
  %396 = vrot.lane.b32.xlu0 %v165, 80
  %v397 = vpop.permute.xlu0 %396
  %v399 = vsel %vm169, %v395, 0
  %v402 = vsel %vm169, %v397, 0
  %404 = vmatprep.subr.bf16.mxu0 0
  %405 = vmatpush1.bf16.xpose.msra.mxu0 %v402
  %406 = vmatprep.subr.bf16.mxu0 0
  %407 = vmatpush1.bf16.xpose.msra.mxu0 0
  %408 = vmatprep.subr.bf16.mxu0 0
  %409 = vmatpush1.bf16.xpose.msra.mxu0 0
  %410 = vmatprep.subr.bf16.mxu0 0
  %411 = vmatpush1.bf16.xpose.msra.mxu0 0
  %412 = vmatprep.subr.bf16.mxu0 0
  %413 = vmatpush1.bf16.xpose.msra.mxu0 0
  %414 = vmatprep.subr.bf16.mxu0 0
  %415 = vmatpush1.bf16.xpose.msra.mxu0 0
  %416 = vmatprep.subr.bf16.mxu0 0
  %417 = vmatpush1.bf16.xpose.msra.mxu0 0
  %418 = vmatprep.subr.bf16.mxu0 0
  %419 = vmatpush1.bf16.xpose.msra.mxu0 0
  %420 = vmatprep.subr.bf16.mxu0 0
  %421 = vmatpush1.bf16.xpose.msra.mxu0 0
  %422 = vmatprep.subr.bf16.mxu0 0
  %423 = vmatpush1.bf16.xpose.msra.mxu0 0
  %424 = vmatprep.subr.bf16.mxu0 0
  %425 = vmatpush1.bf16.xpose.msra.mxu0 0
  %426 = vmatprep.subr.bf16.mxu0 0
  %427 = vmatpush1.bf16.xpose.msra.mxu0 0
  %428 = vmatprep.subr.bf16.mxu0 0
  %429 = vmatpush1.bf16.xpose.msra.mxu0 0
  %430 = vmatprep.subr.bf16.mxu0 0
  %431 = vmatpush1.bf16.xpose.msra.mxu0 0
  %432 = vmatprep.subr.bf16.mxu0 0
  %433 = vmatpush1.bf16.xpose.msra.mxu0 0
  %434 = vmatprep.subr.bf16.mxu0 0
  %435 = vmatpush1.bf16.xpose.msra.mxu0 0
  %436 = vmatprep.mubr.bf16.mxu0 0
  %437 = vmatmul.mubr.bf16.gmra.mrb[0].mxu0 %v399
  %v438 = vpop.f32.mrb[0].mxu0
  %v439 = vadd.f32 %v65, %v438
  %v440 = vpop.f32.mrb[0].mxu0
  %v441 = vpop.f32.mrb[0].mxu0
  %v442 = vpop.f32.mrb[0].mxu0
  %443 = vdwg.mxu0
  %v444 = vsel %vm169, %v439, -inf
  %445 = vmax.xlane.f32.xlu0 %v444
  %v446 = vpop.xlane.xlu0 %445
  %v447 = vsub.f32 %v439, %v446
  %v448 = vmul.f32 %v447, 1.442695
  %v449 = vpow.pop %v448
  %v450 = vsel %vm169, %v449, 0.0
  %451 = vadd.xlane.f32.xlu0 %v450
  %v452 = vpop.xlane.xlu0 %451
  %v453 = vrcp.pop %v452
  %v454 = vmul.f32 %v449, %v453
  %v455 = vpack.c.bf16 %v454, %v454
  %456 = vrot.lane.b32.xlu0 %v165, 48
  %v457 = vpop.permute.xlu0 %456
  %v459 = vsel %vm169, %v455, 0
  %v462 = vsel %vm233, %v457, 0
  %464 = vmatprep.subr.bf16.mxu0 0
  %465 = vmatpush1.bf16.msra.mxu0 %v462
  %466 = vmatprep.subr.bf16.mxu0 0
  %467 = vmatpush1.bf16.msra.mxu0 0
  %468 = vmatprep.subr.bf16.mxu0 0
  %469 = vmatpush1.bf16.msra.mxu0 0
  %470 = vmatprep.subr.bf16.mxu0 0
  %471 = vmatpush1.bf16.msra.mxu0 0
  %472 = vmatprep.subr.bf16.mxu0 0
  %473 = vmatpush1.bf16.msra.mxu0 0
  %474 = vmatprep.subr.bf16.mxu0 0
  %475 = vmatpush1.bf16.msra.mxu0 0
  %476 = vmatprep.subr.bf16.mxu0 0
  %477 = vmatpush1.bf16.msra.mxu0 0
  %478 = vmatprep.subr.bf16.mxu0 0
  %479 = vmatpush1.bf16.msra.mxu0 0
  %480 = vmatprep.subr.bf16.mxu0 0
  %481 = vmatpush1.bf16.msra.mxu0 0
  %482 = vmatprep.subr.bf16.mxu0 0
  %483 = vmatpush1.bf16.msra.mxu0 0
  %484 = vmatprep.subr.bf16.mxu0 0
  %485 = vmatpush1.bf16.msra.mxu0 0
  %486 = vmatprep.subr.bf16.mxu0 0
  %487 = vmatpush1.bf16.msra.mxu0 0
  %488 = vmatprep.subr.bf16.mxu0 0
  %489 = vmatpush1.bf16.msra.mxu0 0
  %490 = vmatprep.subr.bf16.mxu0 0
  %491 = vmatpush1.bf16.msra.mxu0 0
  %492 = vmatprep.subr.bf16.mxu0 0
  %493 = vmatpush1.bf16.msra.mxu0 0
  %494 = vmatprep.subr.bf16.mxu0 0
  %495 = vmatpush1.bf16.msra.mxu0 0
  %496 = vmatprep.mubr.bf16.mxu0 0
  %497 = vmatmul.mubr.bf16.gmra.mrb[0].mxu0 %v459
  %v498 = vpop.f32.mrb[0].mxu0
  %v499 = vadd.f32 0.0, %v498
  %v500 = vpop.f32.mrb[0].mxu0
  %v501 = vpop.f32.mrb[0].mxu0
  %v502 = vpop.f32.mrb[0].mxu0
  %503 = vdwg.mxu0
  %505 = vrot.lane.b32.xlu0 %v499, 16
  %v506 = vpop.permute.xlu0 %505
  %vm508 = vcmask 195712
  %509 = vst.msk [vmem:[#allocation2] sm:$0xff] %vm508, %v506
  %510 = vrot.lane.b32.xlu0 %v165, 104
  %v511 = vpop.permute.xlu0 %510
  %512 = vrot.lane.b32.xlu0 %v165, 72
  %v513 = vpop.permute.xlu0 %512
  %v515 = vsel %vm169, %v511, 0
  %v518 = vsel %vm169, %v513, 0
  %520 = vmatprep.subr.bf16.mxu0 0
  %521 = vmatpush1.bf16.xpose.msra.mxu0 %v518
  %522 = vmatprep.subr.bf16.mxu0 0
  %523 = vmatpush1.bf16.xpose.msra.mxu0 0
  %524 = vmatprep.subr.bf16.mxu0 0
  %525 = vmatpush1.bf16.xpose.msra.mxu0 0
  %526 = vmatprep.subr.bf16.mxu0 0
  %527 = vmatpush1.bf16.xpose.msra.mxu0 0
  %528 = vmatprep.subr.bf16.mxu0 0
  %529 = vmatpush1.bf16.xpose.msra.mxu0 0
  %530 = vmatprep.subr.bf16.mxu0 0
  %531 = vmatpush1.bf16.xpose.msra.mxu0 0
  %532 = vmatprep.subr.bf16.mxu0 0
  %533 = vmatpush1.bf16.xpose.msra.mxu0 0
  %534 = vmatprep.subr.bf16.mxu0 0
  %535 = vmatpush1.bf16.xpose.msra.mxu0 0
  %536 = vmatprep.subr.bf16.mxu0 0
  %537 = vmatpush1.bf16.xpose.msra.mxu0 0
  %538 = vmatprep.subr.bf16.mxu0 0
  %539 = vmatpush1.bf16.xpose.msra.mxu0 0
  %540 = vmatprep.subr.bf16.mxu0 0
  %541 = vmatpush1.bf16.xpose.msra.mxu0 0
  %542 = vmatprep.subr.bf16.mxu0 0
  %543 = vmatpush1.bf16.xpose.msra.mxu0 0
  %544 = vmatprep.subr.bf16.mxu0 0
  %545 = vmatpush1.bf16.xpose.msra.mxu0 0
  %546 = vmatprep.subr.bf16.mxu0 0
  %547 = vmatpush1.bf16.xpose.msra.mxu0 0
  %548 = vmatprep.subr.bf16.mxu0 0
  %549 = vmatpush1.bf16.xpose.msra.mxu0 0
  %550 = vmatprep.subr.bf16.mxu0 0
  %551 = vmatpush1.bf16.xpose.msra.mxu0 0
  %552 = vmatprep.mubr.bf16.mxu0 0
  %553 = vmatmul.mubr.bf16.gmra.mrb[0].mxu0 %v515
  %v554 = vpop.f32.mrb[0].mxu0
  %v555 = vadd.f32 %v65, %v554
  %v556 = vpop.f32.mrb[0].mxu0
  %v557 = vpop.f32.mrb[0].mxu0
  %v558 = vpop.f32.mrb[0].mxu0
  %559 = vdwg.mxu0
  %v560 = vsel %vm169, %v555, -inf
  %561 = vmax.xlane.f32.xlu0 %v560
  %v562 = vpop.xlane.xlu0 %561
  %v563 = vsub.f32 %v555, %v562
  %v564 = vmul.f32 %v563, 1.442695
  %v565 = vpow.pop %v564
  %v566 = vsel %vm169, %v565, 0.0
  %567 = vadd.xlane.f32.xlu0 %v566
  %v568 = vpop.xlane.xlu0 %567
  %v569 = vrcp.pop %v568
  %v570 = vmul.f32 %v565, %v569
  %v571 = vpack.c.bf16 %v570, %v570
  %572 = vrot.lane.b32.xlu0 %v165, 40
  %v573 = vpop.permute.xlu0 %572
  %v575 = vsel %vm169, %v571, 0
  %v578 = vsel %vm233, %v573, 0
  %580 = vmatprep.subr.bf16.mxu0 0
  %581 = vmatpush1.bf16.msra.mxu0 %v578
  %582 = vmatprep.subr.bf16.mxu0 0
  %583 = vmatpush1.bf16.msra.mxu0 0
  %584 = vmatprep.subr.bf16.mxu0 0
  %585 = vmatpush1.bf16.msra.mxu0 0
  %586 = vmatprep.subr.bf16.mxu0 0
  %587 = vmatpush1.bf16.msra.mxu0 0
  %588 = vmatprep.subr.bf16.mxu0 0
  %589 = vmatpush1.bf16.msra.mxu0 0
  %590 = vmatprep.subr.bf16.mxu0 0
  %591 = vmatpush1.bf16.msra.mxu0 0
  %592 = vmatprep.subr.bf16.mxu0 0
  %593 = vmatpush1.bf16.msra.mxu0 0
  %594 = vmatprep.subr.bf16.mxu0 0
  %595 = vmatpush1.bf16.msra.mxu0 0
  %596 = vmatprep.subr.bf16.mxu0 0
  %597 = vmatpush1.bf16.msra.mxu0 0
  %598 = vmatprep.subr.bf16.mxu0 0
  %599 = vmatpush1.bf16.msra.mxu0 0
  %600 = vmatprep.subr.bf16.mxu0 0
  %601 = vmatpush1.bf16.msra.mxu0 0
  %602 = vmatprep.subr.bf16.mxu0 0
  %603 = vmatpush1.bf16.msra.mxu0 0
  %604 = vmatprep.subr.bf16.mxu0 0
  %605 = vmatpush1.bf16.msra.mxu0 0
  %606 = vmatprep.subr.bf16.mxu0 0
  %607 = vmatpush1.bf16.msra.mxu0 0
  %608 = vmatprep.subr.bf16.mxu0 0
  %609 = vmatpush1.bf16.msra.mxu0 0
  %610 = vmatprep.subr.bf16.mxu0 0
  %611 = vmatpush1.bf16.msra.mxu0 0
  %612 = vmatprep.mubr.bf16.mxu0 0
  %613 = vmatmul.mubr.bf16.gmra.mrb[0].mxu0 %v575
  %v614 = vpop.f32.mrb[0].mxu0
  %v615 = vadd.f32 0.0, %v614
  %v616 = vpop.f32.mrb[0].mxu0
  %v617 = vpop.f32.mrb[0].mxu0
  %v618 = vpop.f32.mrb[0].mxu0
  %619 = vdwg.mxu0
  %621 = vrot.lane.b32.xlu0 %v615, 24
  %v622 = vpop.permute.xlu0 %621
  %vm624 = vcmask 261312
  %625 = vst.msk [vmem:[#allocation2] sm:$0xff] %vm624, %v622
  %v626 = vld [vmem:[#allocation2] sm:$0xff]
  %v627 = vpack.c.bf16 %v626, %v626
  %v628 = vld [vmem:[%s4] sm:$0xf]
  %v629 = vld [vmem:[%s4 + $0x4] sm:$0xf]
  %v630 = vld [vmem:[%s4 + $0x8] sm:$0xf]
  %v631 = vld [vmem:[%s4 + $0xc] sm:$0xf]
  %v632 = vld [vmem:[%s5] sm:$0x1]
  %v634 = vlaneseq
  %v635 = vshrl.u32 %v634, 7
  %v636 = vsub.s32 0, %v635
  %v637 = vrot.slane %v632, %v636
  %v643 = vunpack.c.l.b16 %v628
  %v644 = vunpack.c.l.b16 %v629
  %v645 = vunpack.c.l.b16 %v630
  %v646 = vunpack.c.l.b16 %v631
  %v647 = vpack.c.b16 %v644, %v643
  %v648 = vpack.c.b16 %v646, %v645
  %v652 = vsel %vm71, %v627, 0
  %654 = vmatprep.subr.bf16.mxu0 0
  %655 = vmatpush1.bf16.msra.mxu0 %v647
  %656 = vmatprep.subr.bf16.mxu0 0
  %657 = vmatpush1.bf16.msra.mxu0 %v648
  %658 = vmatprep.subr.bf16.mxu0 0
  %659 = vmatpush1.bf16.msra.mxu0 0
  %660 = vmatprep.subr.bf16.mxu0 0
  %661 = vmatpush1.bf16.msra.mxu0 0
  %662 = vmatprep.subr.bf16.mxu0 0
  %663 = vmatpush1.bf16.msra.mxu0 0
  %664 = vmatprep.subr.bf16.mxu0 0
  %665 = vmatpush1.bf16.msra.mxu0 0
  %666 = vmatprep.subr.bf16.mxu0 0
  %667 = vmatpush1.bf16.msra.mxu0 0
  %668 = vmatprep.subr.bf16.mxu0 0
  %669 = vmatpush1.bf16.msra.mxu0 0
  %670 = vmatprep.subr.bf16.mxu0 0
  %671 = vmatpush1.bf16.msra.mxu0 0
  %672 = vmatprep.subr.bf16.mxu0 0
  %673 = vmatpush1.bf16.msra.mxu0 0
  %674 = vmatprep.subr.bf16.mxu0 0
  %675 = vmatpush1.bf16.msra.mxu0 0
  %676 = vmatprep.subr.bf16.mxu0 0
  %677 = vmatpush1.bf16.msra.mxu0 0
  %678 = vmatprep.subr.bf16.mxu0 0
  %679 = vmatpush1.bf16.msra.mxu0 0
  %680 = vmatprep.subr.bf16.mxu0 0
  %681 = vmatpush1.bf16.msra.mxu0 0
  %682 = vmatprep.subr.bf16.mxu0 0
  %683 = vmatpush1.bf16.msra.mxu0 0
  %684 = vmatprep.subr.bf16.mxu0 0
  %685 = vmatpush1.bf16.msra.mxu0 0
  %686 = vmatprep.mubr.bf16.mxu0 0
  %687 = vmatmul.mubr.bf16.gmra.mrb[0].mxu0 %v652
  %v688 = vpop.f32.mrb[0].mxu0
  %v689 = vadd.f32 %v637, %v688
  %v690 = vpop.f32.mrb[0].mxu0
  %v691 = vpop.f32.mrb[0].mxu0
  %v692 = vpop.f32.mrb[0].mxu0
  %693 = vdwg.mxu0
  %v694 = vadd.f32 %v689, %v97
  %v695 = vld [vmem:[%s16 + $0x1] sm:$0x1]
  %v696 = vld [vmem:[%s17 + $0x1] sm:$0x1]
  %v697 = vsel %vm71, %v694, 0.0
  %698 = vadd.xlane.f32.xlu0 %v697
  %v699 = vpop.xlane.xlu0 %698
  %v700 = vmul.f32 %v699, %v75
  %v701 = vmul.f32 %v694, %v694
  %v702 = vsel %vm71, %v701, 0.0
  %703 = vadd.xlane.f32.xlu0 %v702
  %v704 = vpop.xlane.xlu0 %703
  %v705 = vmul.f32 %v704, %v75
  %v706 = vmul.f32 %v700, %v700
  %v707 = vsub.f32 %v705, %v706
  %v708 = vsub.f32 %v694, %v700
  %v709 = vadd.f32 %v707, 1e-05
  %v710 = vrsqrt.pop %v709
  %v711 = vmul.f32 %v708, %v710
  %v712 = vlaneseq
  %v713 = vshrl.u32 %v712, 7
  %v714 = vsub.s32 0, %v713
  %v715 = vrot.slane %v695, %v714
  %v716 = vmul.f32 %v711, %v715
  %v717 = vlaneseq
  %v718 = vshrl.u32 %v717, 7
  %v719 = vsub.s32 0, %v718
  %v720 = vrot.slane %v696, %v719
  %v721 = vadd.f32 %v716, %v720
  %v722 = vpack.c.bf16 %v721, %v721
  %v723 = vld [vmem:[%s6] sm:$0xf]
  %v724 = vld [vmem:[%s6 + $0x4] sm:$0xf]
  %v725 = vld [vmem:[%s6 + $0x8] sm:$0xf]
  %v726 = vld [vmem:[%s6 + $0xc] sm:$0xf]
  %v727 = vld [vmem:[%s7] sm:$0x1]
  %v729 = vlaneseq
  %v730 = vshrl.u32 %v729, 7
  %v731 = vsub.s32 0, %v730
  %v732 = vrot.slane %v727, %v731
  %v738 = vunpack.c.l.b16 %v723
  %v739 = vunpack.c.l.b16 %v724
  %v740 = vunpack.c.l.b16 %v725
  %v741 = vunpack.c.l.b16 %v726
  %v742 = vpack.c.b16 %v739, %v738
  %v743 = vpack.c.b16 %v741, %v740
  %v747 = vsel %vm71, %v722, 0
  %749 = vmatprep.subr.bf16.mxu0 0
  %750 = vmatpush1.bf16.msra.mxu0 %v742
  %751 = vmatprep.subr.bf16.mxu0 0
  %752 = vmatpush1.bf16.msra.mxu0 %v743
  %753 = vmatprep.subr.bf16.mxu0 0
  %754 = vmatpush1.bf16.msra.mxu0 0
  %755 = vmatprep.subr.bf16.mxu0 0
  %756 = vmatpush1.bf16.msra.mxu0 0
  %757 = vmatprep.subr.bf16.mxu0 0
  %758 = vmatpush1.bf16.msra.mxu0 0
  %759 = vmatprep.subr.bf16.mxu0 0
  %760 = vmatpush1.bf16.msra.mxu0 0
  %761 = vmatprep.subr.bf16.mxu0 0
  %762 = vmatpush1.bf16.msra.mxu0 0
  %763 = vmatprep.subr.bf16.mxu0 0
  %764 = vmatpush1.bf16.msra.mxu0 0
  %765 = vmatprep.subr.bf16.mxu0 0
  %766 = vmatpush1.bf16.msra.mxu0 0
  %767 = vmatprep.subr.bf16.mxu0 0
  %768 = vmatpush1.bf16.msra.mxu0 0
  %769 = vmatprep.subr.bf16.mxu0 0
  %770 = vmatpush1.bf16.msra.mxu0 0
  %771 = vmatprep.subr.bf16.mxu0 0
  %772 = vmatpush1.bf16.msra.mxu0 0
  %773 = vmatprep.subr.bf16.mxu0 0
  %774 = vmatpush1.bf16.msra.mxu0 0
  %775 = vmatprep.subr.bf16.mxu0 0
  %776 = vmatpush1.bf16.msra.mxu0 0
  %777 = vmatprep.subr.bf16.mxu0 0
  %778 = vmatpush1.bf16.msra.mxu0 0
  %779 = vmatprep.subr.bf16.mxu0 0
  %780 = vmatpush1.bf16.msra.mxu0 0
  %781 = vmatprep.mubr.bf16.mxu0 0
  %782 = vmatmul.mubr.bf16.gmra.mrb[0].mxu0 %v747
  %v783 = vpop.f32.mrb[0].mxu0
  %v784 = vadd.f32 %v732, %v783
  %v785 = vpop.f32.mrb[0].mxu0
  %v786 = vpop.f32.mrb[0].mxu0
  %v787 = vpop.f32.mrb[0].mxu0
  %788 = vdwg.mxu0
  %v789 = vld [vmem:[%s8] sm:$0xf]
  %v790 = vld [vmem:[%s8 + $0x4] sm:$0xf]
  %v791 = vld [vmem:[%s8 + $0x8] sm:$0xf]
  %v792 = vld [vmem:[%s8 + $0xc] sm:$0xf]
  %v793 = vld [vmem:[%s9] sm:$0x1]
  %v795 = vlaneseq
  %v796 = vshrl.u32 %v795, 7
  %v797 = vsub.s32 0, %v796
  %v798 = vrot.slane %v793, %v797
  %v802 = vunpack.c.l.b16 %v66
  %v803 = vunpack.c.l.b16 %v67
  %v804 = vpack.c.b16 %v803, %v802
  %v809 = vunpack.c.l.b16 %v789
  %v810 = vunpack.c.l.b16 %v790
  %v811 = vunpack.c.l.b16 %v791
  %v812 = vunpack.c.l.b16 %v792
  %v813 = vpack.c.b16 %v810, %v809
  %v814 = vpack.c.b16 %v812, %v811
  %v818 = vsel %vm71, %v804, 0
  %820 = vmatprep.subr.bf16.mxu0 0
  %821 = vmatpush1.bf16.msra.mxu0 %v813
  %822 = vmatprep.subr.bf16.mxu0 0
  %823 = vmatpush1.bf16.msra.mxu0 %v814
  %824 = vmatprep.subr.bf16.mxu0 0
  %825 = vmatpush1.bf16.msra.mxu0 0
  %826 = vmatprep.subr.bf16.mxu0 0
  %827 = vmatpush1.bf16.msra.mxu0 0
  %828 = vmatprep.subr.bf16.mxu0 0
  %829 = vmatpush1.bf16.msra.mxu0 0
  %830 = vmatprep.subr.bf16.mxu0 0
  %831 = vmatpush1.bf16.msra.mxu0 0
  %832 = vmatprep.subr.bf16.mxu0 0
  %833 = vmatpush1.bf16.msra.mxu0 0
  %834 = vmatprep.subr.bf16.mxu0 0
  %835 = vmatpush1.bf16.msra.mxu0 0
  %836 = vmatprep.subr.bf16.mxu0 0
  %837 = vmatpush1.bf16.msra.mxu0 0
  %838 = vmatprep.subr.bf16.mxu0 0
  %839 = vmatpush1.bf16.msra.mxu0 0
  %840 = vmatprep.subr.bf16.mxu0 0
  %841 = vmatpush1.bf16.msra.mxu0 0
  %842 = vmatprep.subr.bf16.mxu0 0
  %843 = vmatpush1.bf16.msra.mxu0 0
  %844 = vmatprep.subr.bf16.mxu0 0
  %845 = vmatpush1.bf16.msra.mxu0 0
  %846 = vmatprep.subr.bf16.mxu0 0
  %847 = vmatpush1.bf16.msra.mxu0 0
  %848 = vmatprep.subr.bf16.mxu0 0
  %849 = vmatpush1.bf16.msra.mxu0 0
  %850 = vmatprep.subr.bf16.mxu0 0
  %851 = vmatpush1.bf16.msra.mxu0 0
  %852 = vmatprep.mubr.bf16.mxu0 0
  %853 = vmatmul.mubr.bf16.gmra.mrb[0].mxu0 %v818
  %v854 = vpop.f32.mrb[0].mxu0
  %v855 = vadd.f32 %v798, %v854
  %v856 = vpop.f32.mrb[0].mxu0
  %v857 = vpop.f32.mrb[0].mxu0
  %v858 = vadd.f32 %v798, %v857
  %v859 = vpop.f32.mrb[0].mxu0
  %860 = vdwg.mxu0
  %v861 = vpack.c.bf16 %v784, %v784
  %v862 = vpack.c.bf16 %v858, %v855
  %v864 = vsel %vm169, %v861, 0
  %v867 = vsel %vm169, %v862, 0
  %869 = vmatprep.subr.bf16.mxu0 0
  %870 = vmatpush1.bf16.xpose.msra.mxu0 %v867
  %871 = vmatprep.subr.bf16.mxu0 0
  %872 = vmatpush1.bf16.xpose.msra.mxu0 0
  %873 = vmatprep.subr.bf16.mxu0 0
  %874 = vmatpush1.bf16.xpose.msra.mxu0 0
  %875 = vmatprep.subr.bf16.mxu0 0
  %876 = vmatpush1.bf16.xpose.msra.mxu0 0
  %877 = vmatprep.subr.bf16.mxu0 0
  %878 = vmatpush1.bf16.xpose.msra.mxu0 0
  %879 = vmatprep.subr.bf16.mxu0 0
  %880 = vmatpush1.bf16.xpose.msra.mxu0 0
  %881 = vmatprep.subr.bf16.mxu0 0
  %882 = vmatpush1.bf16.xpose.msra.mxu0 0
  %883 = vmatprep.subr.bf16.mxu0 0
  %884 = vmatpush1.bf16.xpose.msra.mxu0 0
  %885 = vmatprep.subr.bf16.mxu0 0
  %886 = vmatpush1.bf16.xpose.msra.mxu0 0
  %887 = vmatprep.subr.bf16.mxu0 0
  %888 = vmatpush1.bf16.xpose.msra.mxu0 0
  %889 = vmatprep.subr.bf16.mxu0 0
  %890 = vmatpush1.bf16.xpose.msra.mxu0 0
  %891 = vmatprep.subr.bf16.mxu0 0
  %892 = vmatpush1.bf16.xpose.msra.mxu0 0
  %893 = vmatprep.subr.bf16.mxu0 0
  %894 = vmatpush1.bf16.xpose.msra.mxu0 0
  %895 = vmatprep.subr.bf16.mxu0 0
  %896 = vmatpush1.bf16.xpose.msra.mxu0 0
  %897 = vmatprep.subr.bf16.mxu0 0
  %898 = vmatpush1.bf16.xpose.msra.mxu0 0
  %899 = vmatprep.subr.bf16.mxu0 0
  %900 = vmatpush1.bf16.xpose.msra.mxu0 0
  %901 = vmatprep.mubr.bf16.mxu0 0
  %902 = vmatmul.mubr.bf16.gmra.mrb[0].mxu0 %v864
  %v903 = vpop.f32.mrb[0].mxu0
  %v904 = vadd.f32 0.0, %v903
  %v905 = vpop.f32.mrb[0].mxu0
  %v906 = vpop.f32.mrb[0].mxu0
  %v907 = vpop.f32.mrb[0].mxu0
  %908 = vdwg.mxu0
  %vm909 = vcmask 130048
  %v910 = vsel %vm909, %v904, -inf
  %911 = vmax.xlane.f32.xlu0 %v910
  %v912 = vpop.xlane.xlu0 %911
  %v913 = vsub.f32 %v904, %v912
  %v914 = vmul.f32 %v913, 1.442695
  %v915 = vpow.pop %v914
  %v916 = vsel %vm909, %v915, 0.0
  %917 = vadd.xlane.f32.xlu0 %v916
  %v918 = vpop.xlane.xlu0 %917
  %v919 = vrcp.pop %v918
  %v920 = vmul.f32 %v915, %v919
  %v921 = vpack.c.bf16 %v920, %v920
  %923 = vrot.lane.b32.xlu0 %v862, 96
  %v924 = vpop.permute.xlu0 %923
  %v927 = vsel %vm909, %v921, 0
  %929 = vmatprep.subr.bf16.mxu0 0
  %930 = vmatpush1.bf16.msra.mxu0 %v924
  %931 = vmatprep.subr.bf16.mxu0 0
  %932 = vmatpush1.bf16.msra.mxu0 0
  %933 = vmatprep.subr.bf16.mxu0 0
  %934 = vmatpush1.bf16.msra.mxu0 0
  %935 = vmatprep.subr.bf16.mxu0 0
  %936 = vmatpush1.bf16.msra.mxu0 0
  %937 = vmatprep.subr.bf16.mxu0 0
  %938 = vmatpush1.bf16.msra.mxu0 0
  %939 = vmatprep.subr.bf16.mxu0 0
  %940 = vmatpush1.bf16.msra.mxu0 0
  %941 = vmatprep.subr.bf16.mxu0 0
  %942 = vmatpush1.bf16.msra.mxu0 0
  %943 = vmatprep.subr.bf16.mxu0 0
  %944 = vmatpush1.bf16.msra.mxu0 0
  %945 = vmatprep.subr.bf16.mxu0 0
  %946 = vmatpush1.bf16.msra.mxu0 0
  %947 = vmatprep.subr.bf16.mxu0 0
  %948 = vmatpush1.bf16.msra.mxu0 0
  %949 = vmatprep.subr.bf16.mxu0 0
  %950 = vmatpush1.bf16.msra.mxu0 0
  %951 = vmatprep.subr.bf16.mxu0 0
  %952 = vmatpush1.bf16.msra.mxu0 0
  %953 = vmatprep.subr.bf16.mxu0 0
  %954 = vmatpush1.bf16.msra.mxu0 0
  %955 = vmatprep.subr.bf16.mxu0 0
  %956 = vmatpush1.bf16.msra.mxu0 0
  %957 = vmatprep.subr.bf16.mxu0 0
  %958 = vmatpush1.bf16.msra.mxu0 0
  %959 = vmatprep.subr.bf16.mxu0 0
  %960 = vmatpush1.bf16.msra.mxu0 0
  %961 = vmatprep.mubr.bf16.mxu0 0
  %962 = vmatmul.mubr.bf16.gmra.mrb[0].mxu0 %v927
  %v963 = vpop.f32.mrb[0].mxu0
  %v964 = vadd.f32 0.0, %v963
  %v965 = vpop.f32.mrb[0].mxu0
  %v966 = vpop.f32.mrb[0].mxu0
  %v967 = vpop.f32.mrb[0].mxu0
  %968 = vdwg.mxu0
  %969 = vst.msk [vmem:[#allocation2] sm:$0xff] %vm169, %v964
  %971 = vrot.lane.b32.xlu0 %v861, 120
  %v972 = vpop.permute.xlu0 %971
  %973 = vrot.lane.b32.xlu0 %v862, 120
  %v974 = vpop.permute.xlu0 %973
  %v976 = vsel %vm169, %v972, 0
  %v979 = vsel %vm169, %v974, 0
  %981 = vmatprep.subr.bf16.mxu0 0
  %982 = vmatpush1.bf16.xpose.msra.mxu0 %v979
  %983 = vmatprep.subr.bf16.mxu0 0
  %984 = vmatpush1.bf16.xpose.msra.mxu0 0
  %985 = vmatprep.subr.bf16.mxu0 0
  %986 = vmatpush1.bf16.xpose.msra.mxu0 0
  %987 = vmatprep.subr.bf16.mxu0 0
  %988 = vmatpush1.bf16.xpose.msra.mxu0 0
  %989 = vmatprep.subr.bf16.mxu0 0
  %990 = vmatpush1.bf16.xpose.msra.mxu0 0
  %991 = vmatprep.subr.bf16.mxu0 0
  %992 = vmatpush1.bf16.xpose.msra.mxu0 0
  %993 = vmatprep.subr.bf16.mxu0 0
  %994 = vmatpush1.bf16.xpose.msra.mxu0 0
  %995 = vmatprep.subr.bf16.mxu0 0
  %996 = vmatpush1.bf16.xpose.msra.mxu0 0
  %997 = vmatprep.subr.bf16.mxu0 0
  %998 = vmatpush1.bf16.xpose.msra.mxu0 0
  %999 = vmatprep.subr.bf16.mxu0 0
  %1000 = vmatpush1.bf16.xpose.msra.mxu0 0
  %1001 = vmatprep.subr.bf16.mxu0 0
  %1002 = vmatpush1.bf16.xpose.msra.mxu0 0
  %1003 = vmatprep.subr.bf16.mxu0 0
  %1004 = vmatpush1.bf16.xpose.msra.mxu0 0
  %1005 = vmatprep.subr.bf16.mxu0 0
  %1006 = vmatpush1.bf16.xpose.msra.mxu0 0
  %1007 = vmatprep.subr.bf16.mxu0 0
  %1008 = vmatpush1.bf16.xpose.msra.mxu0 0
  %1009 = vmatprep.subr.bf16.mxu0 0
  %1010 = vmatpush1.bf16.xpose.msra.mxu0 0
  %1011 = vmatprep.subr.bf16.mxu0 0
  %1012 = vmatpush1.bf16.xpose.msra.mxu0 0
  %1013 = vmatprep.mubr.bf16.mxu0 0
  %1014 = vmatmul.mubr.bf16.gmra.mrb[0].mxu0 %v976
  %v1015 = vpop.f32.mrb[0].mxu0
  %v1016 = vadd.f32 0.0, %v1015
  %v1017 = vpop.f32.mrb[0].mxu0
  %v1018 = vpop.f32.mrb[0].mxu0
  %v1019 = vpop.f32.mrb[0].mxu0
  %1020 = vdwg.mxu0
  %v1021 = vsel %vm909, %v1016, -inf
  %1022 = vmax.xlane.f32.xlu0 %v1021
  %v1023 = vpop.xlane.xlu0 %1022
  %v1024 = vsub.f32 %v1016, %v1023
  %v1025 = vmul.f32 %v1024, 1.442695
  %v1026 = vpow.pop %v1025
  %v1027 = vsel %vm909, %v1026, 0.0
  %1028 = vadd.xlane.f32.xlu0 %v1027
  %v1029 = vpop.xlane.xlu0 %1028
  %v1030 = vrcp.pop %v1029
  %v1031 = vmul.f32 %v1026, %v1030
  %v1032 = vpack.c.bf16 %v1031, %v1031
  %1033 = vrot.lane.b32.xlu0 %v862, 88
  %v1034 = vpop.permute.xlu0 %1033
  %v1037 = vsel %vm909, %v1032, 0
  %1039 = vmatprep.subr.bf16.mxu0 0
  %1040 = vmatpush1.bf16.msra.mxu0 %v1034
  %1041 = vmatprep.subr.bf16.mxu0 0
  %1042 = vmatpush1.bf16.msra.mxu0 0
  %1043 = vmatprep.subr.bf16.mxu0 0
  %1044 = vmatpush1.bf16.msra.mxu0 0
  %1045 = vmatprep.subr.bf16.mxu0 0
  %1046 = vmatpush1.bf16.msra.mxu0 0
  %1047 = vmatprep.subr.bf16.mxu0 0
  %1048 = vmatpush1.bf16.msra.mxu0 0
  %1049 = vmatprep.subr.bf16.mxu0 0
  %1050 = vmatpush1.bf16.msra.mxu0 0
  %1051 = vmatprep.subr.bf16.mxu0 0
  %1052 = vmatpush1.bf16.msra.mxu0 0
  %1053 = vmatprep.subr.bf16.mxu0 0
  %1054 = vmatpush1.bf16.msra.mxu0 0
  %1055 = vmatprep.subr.bf16.mxu0 0
  %1056 = vmatpush1.bf16.msra.mxu0 0
  %1057 = vmatprep.subr.bf16.mxu0 0
  %1058 = vmatpush1.bf16.msra.mxu0 0
  %1059 = vmatprep.subr.bf16.mxu0 0
  %1060 = vmatpush1.bf16.msra.mxu0 0
  %1061 = vmatprep.subr.bf16.mxu0 0
  %1062 = vmatpush1.bf16.msra.mxu0 0
  %1063 = vmatprep.subr.bf16.mxu0 0
  %1064 = vmatpush1.bf16.msra.mxu0 0
  %1065 = vmatprep.subr.bf16.mxu0 0
  %1066 = vmatpush1.bf16.msra.mxu0 0
  %1067 = vmatprep.subr.bf16.mxu0 0
  %1068 = vmatpush1.bf16.msra.mxu0 0
  %1069 = vmatprep.subr.bf16.mxu0 0
  %1070 = vmatpush1.bf16.msra.mxu0 0
  %1071 = vmatprep.mubr.bf16.mxu0 0
  %1072 = vmatmul.mubr.bf16.gmra.mrb[0].mxu0 %v1037
  %v1073 = vpop.f32.mrb[0].mxu0
  %v1074 = vadd.f32 0.0, %v1073
  %v1075 = vpop.f32.mrb[0].mxu0
  %v1076 = vpop.f32.mrb[0].mxu0
  %v1077 = vpop.f32.mrb[0].mxu0
  %1078 = vdwg.mxu0
  %1080 = vrot.lane.b32.xlu0 %v1074, 8
  %v1081 = vpop.permute.xlu0 %1080
  %1083 = vst.msk [vmem:[#allocation2] sm:$0xff] %vm392, %v1081
  %1084 = vrot.lane.b32.xlu0 %v861, 112
  %v1085 = vpop.permute.xlu0 %1084
  %1086 = vrot.lane.b32.xlu0 %v862, 112
  %v1087 = vpop.permute.xlu0 %1086
  %v1089 = vsel %vm169, %v1085, 0
  %v1092 = vsel %vm169, %v1087, 0
  %1094 = vmatprep.subr.bf16.mxu0 0
  %1095 = vmatpush1.bf16.xpose.msra.mxu0 %v1092
  %1096 = vmatprep.subr.bf16.mxu0 0
  %1097 = vmatpush1.bf16.xpose.msra.mxu0 0
  %1098 = vmatprep.subr.bf16.mxu0 0
  %1099 = vmatpush1.bf16.xpose.msra.mxu0 0
  %1100 = vmatprep.subr.bf16.mxu0 0
  %1101 = vmatpush1.bf16.xpose.msra.mxu0 0
  %1102 = vmatprep.subr.bf16.mxu0 0
  %1103 = vmatpush1.bf16.xpose.msra.mxu0 0
  %1104 = vmatprep.subr.bf16.mxu0 0
  %1105 = vmatpush1.bf16.xpose.msra.mxu0 0
  %1106 = vmatprep.subr.bf16.mxu0 0
  %1107 = vmatpush1.bf16.xpose.msra.mxu0 0
  %1108 = vmatprep.subr.bf16.mxu0 0
  %1109 = vmatpush1.bf16.xpose.msra.mxu0 0
  %1110 = vmatprep.subr.bf16.mxu0 0
  %1111 = vmatpush1.bf16.xpose.msra.mxu0 0
  %1112 = vmatprep.subr.bf16.mxu0 0
  %1113 = vmatpush1.bf16.xpose.msra.mxu0 0
  %1114 = vmatprep.subr.bf16.mxu0 0
  %1115 = vmatpush1.bf16.xpose.msra.mxu0 0
  %1116 = vmatprep.subr.bf16.mxu0 0
  %1117 = vmatpush1.bf16.xpose.msra.mxu0 0
  %1118 = vmatprep.subr.bf16.mxu0 0
  %1119 = vmatpush1.bf16.xpose.msra.mxu0 0
  %1120 = vmatprep.subr.bf16.mxu0 0
  %1121 = vmatpush1.bf16.xpose.msra.mxu0 0
  %1122 = vmatprep.subr.bf16.mxu0 0
  %1123 = vmatpush1.bf16.xpose.msra.mxu0 0
  %1124 = vmatprep.subr.bf16.mxu0 0
  %1125 = vmatpush1.bf16.xpose.msra.mxu0 0
  %1126 = vmatprep.mubr.bf16.mxu0 0
  %1127 = vmatmul.mubr.bf16.gmra.mrb[0].mxu0 %v1089
  %v1128 = vpop.f32.mrb[0].mxu0
  %v1129 = vadd.f32 0.0, %v1128
  %v1130 = vpop.f32.mrb[0].mxu0
  %v1131 = vpop.f32.mrb[0].mxu0
  %v1132 = vpop.f32.mrb[0].mxu0
  %1133 = vdwg.mxu0
  %v1134 = vsel %vm909, %v1129, -inf
  %1135 = vmax.xlane.f32.xlu0 %v1134
  %v1136 = vpop.xlane.xlu0 %1135
  %v1137 = vsub.f32 %v1129, %v1136
  %v1138 = vmul.f32 %v1137, 1.442695
  %v1139 = vpow.pop %v1138
  %v1140 = vsel %vm909, %v1139, 0.0
  %1141 = vadd.xlane.f32.xlu0 %v1140
  %v1142 = vpop.xlane.xlu0 %1141
  %v1143 = vrcp.pop %v1142
  %v1144 = vmul.f32 %v1139, %v1143
  %v1145 = vpack.c.bf16 %v1144, %v1144
  %1146 = vrot.lane.b32.xlu0 %v862, 80
  %v1147 = vpop.permute.xlu0 %1146
  %v1150 = vsel %vm909, %v1145, 0
  %1152 = vmatprep.subr.bf16.mxu0 0
  %1153 = vmatpush1.bf16.msra.mxu0 %v1147
  %1154 = vmatprep.subr.bf16.mxu0 0
  %1155 = vmatpush1.bf16.msra.mxu0 0
  %1156 = vmatprep.subr.bf16.mxu0 0
  %1157 = vmatpush1.bf16.msra.mxu0 0
  %1158 = vmatprep.subr.bf16.mxu0 0
  %1159 = vmatpush1.bf16.msra.mxu0 0
  %1160 = vmatprep.subr.bf16.mxu0 0
  %1161 = vmatpush1.bf16.msra.mxu0 0
  %1162 = vmatprep.subr.bf16.mxu0 0
  %1163 = vmatpush1.bf16.msra.mxu0 0
  %1164 = vmatprep.subr.bf16.mxu0 0
  %1165 = vmatpush1.bf16.msra.mxu0 0
  %1166 = vmatprep.subr.bf16.mxu0 0
  %1167 = vmatpush1.bf16.msra.mxu0 0
  %1168 = vmatprep.subr.bf16.mxu0 0
  %1169 = vmatpush1.bf16.msra.mxu0 0
  %1170 = vmatprep.subr.bf16.mxu0 0
  %1171 = vmatpush1.bf16.msra.mxu0 0
  %1172 = vmatprep.subr.bf16.mxu0 0
  %1173 = vmatpush1.bf16.msra.mxu0 0
  %1174 = vmatprep.subr.bf16.mxu0 0
  %1175 = vmatpush1.bf16.msra.mxu0 0
  %1176 = vmatprep.subr.bf16.mxu0 0
  %1177 = vmatpush1.bf16.msra.mxu0 0
  %1178 = vmatprep.subr.bf16.mxu0 0
  %1179 = vmatpush1.bf16.msra.mxu0 0
  %1180 = vmatprep.subr.bf16.mxu0 0
  %1181 = vmatpush1.bf16.msra.mxu0 0
  %1182 = vmatprep.subr.bf16.mxu0 0
  %1183 = vmatpush1.bf16.msra.mxu0 0
  %1184 = vmatprep.mubr.bf16.mxu0 0
  %1185 = vmatmul.mubr.bf16.gmra.mrb[0].mxu0 %v1150
  %v1186 = vpop.f32.mrb[0].mxu0
  %v1187 = vadd.f32 0.0, %v1186
  %v1188 = vpop.f32.mrb[0].mxu0
  %v1189 = vpop.f32.mrb[0].mxu0
  %v1190 = vpop.f32.mrb[0].mxu0
  %1191 = vdwg.mxu0
  %1193 = vrot.lane.b32.xlu0 %v1187, 16
  %v1194 = vpop.permute.xlu0 %1193
  %1196 = vst.msk [vmem:[#allocation2] sm:$0xff] %vm508, %v1194
  %1197 = vrot.lane.b32.xlu0 %v861, 104
  %v1198 = vpop.permute.xlu0 %1197
  %1199 = vrot.lane.b32.xlu0 %v862, 104
  %v1200 = vpop.permute.xlu0 %1199
  %v1202 = vsel %vm169, %v1198, 0
  %v1205 = vsel %vm169, %v1200, 0
  %1207 = vmatprep.subr.bf16.mxu0 0
  %1208 = vmatpush1.bf16.xpose.msra.mxu0 %v1205
  %1209 = vmatprep.subr.bf16.mxu0 0
  %1210 = vmatpush1.bf16.xpose.msra.mxu0 0
  %1211 = vmatprep.subr.bf16.mxu0 0
  %1212 = vmatpush1.bf16.xpose.msra.mxu0 0
  %1213 = vmatprep.subr.bf16.mxu0 0
  %1214 = vmatpush1.bf16.xpose.msra.mxu0 0
  %1215 = vmatprep.subr.bf16.mxu0 0
  %1216 = vmatpush1.bf16.xpose.msra.mxu0 0
  %1217 = vmatprep.subr.bf16.mxu0 0
  %1218 = vmatpush1.bf16.xpose.msra.mxu0 0
  %1219 = vmatprep.subr.bf16.mxu0 0
  %1220 = vmatpush1.bf16.xpose.msra.mxu0 0
  %1221 = vmatprep.subr.bf16.mxu0 0
  %1222 = vmatpush1.bf16.xpose.msra.mxu0 0
  %1223 = vmatprep.subr.bf16.mxu0 0
  %1224 = vmatpush1.bf16.xpose.msra.mxu0 0
  %1225 = vmatprep.subr.bf16.mxu0 0
  %1226 = vmatpush1.bf16.xpose.msra.mxu0 0
  %1227 = vmatprep.subr.bf16.mxu0 0
  %1228 = vmatpush1.bf16.xpose.msra.mxu0 0
  %1229 = vmatprep.subr.bf16.mxu0 0
  %1230 = vmatpush1.bf16.xpose.msra.mxu0 0
  %1231 = vmatprep.subr.bf16.mxu0 0
  %1232 = vmatpush1.bf16.xpose.msra.mxu0 0
  %1233 = vmatprep.subr.bf16.mxu0 0
  %1234 = vmatpush1.bf16.xpose.msra.mxu0 0
  %1235 = vmatprep.subr.bf16.mxu0 0
  %1236 = vmatpush1.bf16.xpose.msra.mxu0 0
  %1237 = vmatprep.subr.bf16.mxu0 0
  %1238 = vmatpush1.bf16.xpose.msra.mxu0 0
  %1239 = vmatprep.mubr.bf16.mxu0 0
  %1240 = vmatmul.mubr.bf16.gmra.mrb[0].mxu0 %v1202
  %v1241 = vpop.f32.mrb[0].mxu0
  %v1242 = vadd.f32 0.0, %v1241
  %v1243 = vpop.f32.mrb[0].mxu0
  %v1244 = vpop.f32.mrb[0].mxu0
  %v1245 = vpop.f32.mrb[0].mxu0
  %1246 = vdwg.mxu0
  %v1247 = vsel %vm909, %v1242, -inf
  %1248 = vmax.xlane.f32.xlu0 %v1247
  %v1249 = vpop.xlane.xlu0 %1248
  %v1250 = vsub.f32 %v1242, %v1249
  %v1251 = vmul.f32 %v1250, 1.442695
  %v1252 = vpow.pop %v1251
  %v1253 = vsel %vm909, %v1252, 0.0
  %1254 = vadd.xlane.f32.xlu0 %v1253
  %v1255 = vpop.xlane.xlu0 %1254
  %v1256 = vrcp.pop %v1255
  %v1257 = vmul.f32 %v1252, %v1256
  %v1258 = vpack.c.bf16 %v1257, %v1257
  %1259 = vrot.lane.b32.xlu0 %v862, 72
  %v1260 = vpop.permute.xlu0 %1259
  %v1263 = vsel %vm909, %v1258, 0
  %1265 = vmatprep.subr.bf16.mxu0 0
  %1266 = vmatpush1.bf16.msra.mxu0 %v1260
  %1267 = vmatprep.subr.bf16.mxu0 0
  %1268 = vmatpush1.bf16.msra.mxu0 0
  %1269 = vmatprep.subr.bf16.mxu0 0
  %1270 = vmatpush1.bf16.msra.mxu0 0
  %1271 = vmatprep.subr.bf16.mxu0 0
  %1272 = vmatpush1.bf16.msra.mxu0 0
  %1273 = vmatprep.subr.bf16.mxu0 0
  %1274 = vmatpush1.bf16.msra.mxu0 0
  %1275 = vmatprep.subr.bf16.mxu0 0
  %1276 = vmatpush1.bf16.msra.mxu0 0
  %1277 = vmatprep.subr.bf16.mxu0 0
  %1278 = vmatpush1.bf16.msra.mxu0 0
  %1279 = vmatprep.subr.bf16.mxu0 0
  %1280 = vmatpush1.bf16.msra.mxu0 0
  %1281 = vmatprep.subr.bf16.mxu0 0
  %1282 = vmatpush1.bf16.msra.mxu0 0
  %1283 = vmatprep.subr.bf16.mxu0 0
  %1284 = vmatpush1.bf16.msra.mxu0 0
  %1285 = vmatprep.subr.bf16.mxu0 0
  %1286 = vmatpush1.bf16.msra.mxu0 0
  %1287 = vmatprep.subr.bf16.mxu0 0
  %1288 = vmatpush1.bf16.msra.mxu0 0
  %1289 = vmatprep.subr.bf16.mxu0 0
  %1290 = vmatpush1.bf16.msra.mxu0 0
  %1291 = vmatprep.subr.bf16.mxu0 0
  %1292 = vmatpush1.bf16.msra.mxu0 0
  %1293 = vmatprep.subr.bf16.mxu0 0
  %1294 = vmatpush1.bf16.msra.mxu0 0
  %1295 = vmatprep.subr.bf16.mxu0 0
  %1296 = vmatpush1.bf16.msra.mxu0 0
  %1297 = vmatprep.mubr.bf16.mxu0 0
  %1298 = vmatmul.mubr.bf16.gmra.mrb[0].mxu0 %v1263
  %v1299 = vpop.f32.mrb[0].mxu0
  %v1300 = vadd.f32 0.0, %v1299
  %v1301 = vpop.f32.mrb[0].mxu0
  %v1302 = vpop.f32.mrb[0].mxu0
  %v1303 = vpop.f32.mrb[0].mxu0
  %1304 = vdwg.mxu0
  %1306 = vrot.lane.b32.xlu0 %v1300, 24
  %v1307 = vpop.permute.xlu0 %1306
  %1309 = vst.msk [vmem:[#allocation2] sm:$0xff] %vm624, %v1307
  %v1310 = vld [vmem:[#allocation2] sm:$0xff]
  %v1311 = vpack.c.bf16 %v1310, %v1310
  %v1312 = vld [vmem:[%s10] sm:$0xf]
  %v1313 = vld [vmem:[%s10 + $0x4] sm:$0xf]
  %v1314 = vld [vmem:[%s10 + $0x8] sm:$0xf]
  %v1315 = vld [vmem:[%s10 + $0xc] sm:$0xf]
  %v1316 = vld [vmem:[%s11] sm:$0x1]
  %v1318 = vlaneseq
  %v1319 = vshrl.u32 %v1318, 7
  %v1320 = vsub.s32 0, %v1319
  %v1321 = vrot.slane %v1316, %v1320
  %v1327 = vunpack.c.l.b16 %v1312
  %v1328 = vunpack.c.l.b16 %v1313
  %v1329 = vunpack.c.l.b16 %v1314
  %v1330 = vunpack.c.l.b16 %v1315
  %v1331 = vpack.c.b16 %v1328, %v1327
  %v1332 = vpack.c.b16 %v1330, %v1329
  %v1336 = vsel %vm71, %v1311, 0
  %1338 = vmatprep.subr.bf16.mxu0 0
  %1339 = vmatpush1.bf16.msra.mxu0 %v1331
  %1340 = vmatprep.subr.bf16.mxu0 0
  %1341 = vmatpush1.bf16.msra.mxu0 %v1332
  %1342 = vmatprep.subr.bf16.mxu0 0
  %1343 = vmatpush1.bf16.msra.mxu0 0
  %1344 = vmatprep.subr.bf16.mxu0 0
  %1345 = vmatpush1.bf16.msra.mxu0 0
  %1346 = vmatprep.subr.bf16.mxu0 0
  %1347 = vmatpush1.bf16.msra.mxu0 0
  %1348 = vmatprep.subr.bf16.mxu0 0
  %1349 = vmatpush1.bf16.msra.mxu0 0
  %1350 = vmatprep.subr.bf16.mxu0 0
  %1351 = vmatpush1.bf16.msra.mxu0 0
  %1352 = vmatprep.subr.bf16.mxu0 0
  %1353 = vmatpush1.bf16.msra.mxu0 0
  %1354 = vmatprep.subr.bf16.mxu0 0
  %1355 = vmatpush1.bf16.msra.mxu0 0
  %1356 = vmatprep.subr.bf16.mxu0 0
  %1357 = vmatpush1.bf16.msra.mxu0 0
  %1358 = vmatprep.subr.bf16.mxu0 0
  %1359 = vmatpush1.bf16.msra.mxu0 0
  %1360 = vmatprep.subr.bf16.mxu0 0
  %1361 = vmatpush1.bf16.msra.mxu0 0
  %1362 = vmatprep.subr.bf16.mxu0 0
  %1363 = vmatpush1.bf16.msra.mxu0 0
  %1364 = vmatprep.subr.bf16.mxu0 0
  %1365 = vmatpush1.bf16.msra.mxu0 0
  %1366 = vmatprep.subr.bf16.mxu0 0
  %1367 = vmatpush1.bf16.msra.mxu0 0
  %1368 = vmatprep.subr.bf16.mxu0 0
  %1369 = vmatpush1.bf16.msra.mxu0 0
  %1370 = vmatprep.mubr.bf16.mxu0 0
  %1371 = vmatmul.mubr.bf16.gmra.mrb[0].mxu0 %v1336
  %v1372 = vpop.f32.mrb[0].mxu0
  %v1373 = vadd.f32 %v1321, %v1372
  %v1374 = vpop.f32.mrb[0].mxu0
  %v1375 = vpop.f32.mrb[0].mxu0
  %v1376 = vpop.f32.mrb[0].mxu0
  %1377 = vdwg.mxu0
  %v1378 = vadd.f32 %v1373, %v721
  %v1379 = vld [vmem:[%s16 + $0x2] sm:$0x1]
  %v1380 = vld [vmem:[%s17 + $0x2] sm:$0x1]
  %v1381 = vsel %vm71, %v1378, 0.0
  %1382 = vadd.xlane.f32.xlu0 %v1381
  %v1383 = vpop.xlane.xlu0 %1382
  %v1384 = vmul.f32 %v1383, %v75
  %v1385 = vmul.f32 %v1378, %v1378
  %v1386 = vsel %vm71, %v1385, 0.0
  %1387 = vadd.xlane.f32.xlu0 %v1386
  %v1388 = vpop.xlane.xlu0 %1387
  %v1389 = vmul.f32 %v1388, %v75
  %v1390 = vmul.f32 %v1384, %v1384
  %v1391 = vsub.f32 %v1389, %v1390
  %v1392 = vsub.f32 %v1378, %v1384
  %v1393 = vadd.f32 %v1391, 1e-05
  %v1394 = vrsqrt.pop %v1393
  %v1395 = vmul.f32 %v1392, %v1394
  %v1396 = vlaneseq
  %v1397 = vshrl.u32 %v1396, 7
  %v1398 = vsub.s32 0, %v1397
  %v1399 = vrot.slane %v1379, %v1398
  %v1400 = vmul.f32 %v1395, %v1399
  %v1401 = vlaneseq
  %v1402 = vshrl.u32 %v1401, 7
  %v1403 = vsub.s32 0, %v1402
  %v1404 = vrot.slane %v1380, %v1403
  %v1405 = vadd.f32 %v1400, %v1404
  %v1406 = vpack.c.bf16 %v1405, %v1405
  %v1407 = vld [vmem:[%s12] sm:$0xf]
  %v1408 = vld [vmem:[%s12 + $0x4] sm:$0xf]
  %v1409 = vld [vmem:[%s12 + $0x8] sm:$0xf]
  %v1410 = vld [vmem:[%s12 + $0xc] sm:$0xf]
  %v1411 = vld [vmem:[%s13] sm:$0x1]
  %v1413 = vlaneseq
  %v1414 = vshrl.u32 %v1413, 7
  %v1415 = vsub.s32 0, %v1414
  %v1416 = vrot.slane %v1411, %v1415
  %v1422 = vunpack.c.l.b16 %v1407
  %v1423 = vunpack.c.l.b16 %v1408
  %v1424 = vunpack.c.l.b16 %v1409
  %v1425 = vunpack.c.l.b16 %v1410
  %v1426 = vpack.c.b16 %v1423, %v1422
  %v1427 = vpack.c.b16 %v1425, %v1424
  %v1431 = vsel %vm71, %v1406, 0
  %1433 = vmatprep.subr.bf16.mxu0 0
  %1434 = vmatpush1.bf16.msra.mxu0 %v1426
  %1435 = vmatprep.subr.bf16.mxu0 0
  %1436 = vmatpush1.bf16.msra.mxu0 %v1427
  %1437 = vmatprep.subr.bf16.mxu0 0
  %1438 = vmatpush1.bf16.msra.mxu0 0
  %1439 = vmatprep.subr.bf16.mxu0 0
  %1440 = vmatpush1.bf16.msra.mxu0 0
  %1441 = vmatprep.subr.bf16.mxu0 0
  %1442 = vmatpush1.bf16.msra.mxu0 0
  %1443 = vmatprep.subr.bf16.mxu0 0
  %1444 = vmatpush1.bf16.msra.mxu0 0
  %1445 = vmatprep.subr.bf16.mxu0 0
  %1446 = vmatpush1.bf16.msra.mxu0 0
  %1447 = vmatprep.subr.bf16.mxu0 0
  %1448 = vmatpush1.bf16.msra.mxu0 0
  %1449 = vmatprep.subr.bf16.mxu0 0
  %1450 = vmatpush1.bf16.msra.mxu0 0
  %1451 = vmatprep.subr.bf16.mxu0 0
  %1452 = vmatpush1.bf16.msra.mxu0 0
  %1453 = vmatprep.subr.bf16.mxu0 0
  %1454 = vmatpush1.bf16.msra.mxu0 0
  %1455 = vmatprep.subr.bf16.mxu0 0
  %1456 = vmatpush1.bf16.msra.mxu0 0
  %1457 = vmatprep.subr.bf16.mxu0 0
  %1458 = vmatpush1.bf16.msra.mxu0 0
  %1459 = vmatprep.subr.bf16.mxu0 0
  %1460 = vmatpush1.bf16.msra.mxu0 0
  %1461 = vmatprep.subr.bf16.mxu0 0
  %1462 = vmatpush1.bf16.msra.mxu0 0
  %1463 = vmatprep.subr.bf16.mxu0 0
  %1464 = vmatpush1.bf16.msra.mxu0 0
  %1465 = vmatprep.mubr.bf16.mxu0 0
  %1466 = vmatmul.mubr.bf16.gmra.mrb[0].mxu0 %v1431
  %v1467 = vpop.f32.mrb[0].mxu0
  %v1468 = vadd.f32 %v1416, %v1467
  %v1469 = vpop.f32.mrb[0].mxu0
  %v1470 = vpop.f32.mrb[0].mxu0
  %v1471 = vpop.f32.mrb[0].mxu0
  %1472 = vdwg.mxu0
  %v1473 = vmax.f32 %v1468, 0.0
  %v1474 = vpack.c.bf16 %v1473, %v1473
  %v1475 = vld [vmem:[%s14] sm:$0xf]
  %v1476 = vld [vmem:[%s14 + $0x4] sm:$0xf]
  %v1477 = vld [vmem:[%s14 + $0x8] sm:$0xf]
  %v1478 = vld [vmem:[%s14 + $0xc] sm:$0xf]
  %v1479 = vld [vmem:[%s14 + $0x10] sm:$0xf]
  %v1480 = vld [vmem:[%s14 + $0x14] sm:$0xf]
  %v1481 = vld [vmem:[%s14 + $0x18] sm:$0xf]
  %v1482 = vld [vmem:[%s14 + $0x1c] sm:$0xf]
  %v1483 = vld [vmem:[%s15] sm:$0x1]
  %v1485 = vlaneseq
  %v1486 = vshrl.u32 %v1485, 7
  %v1487 = vsub.s32 0, %v1486
  %v1488 = vrot.slane %v1483, %v1487
  %v1498 = vunpack.c.l.b16 %v1475
  %v1499 = vunpack.c.l.b16 %v1476
  %v1500 = vunpack.c.l.b16 %v1477
  %v1501 = vunpack.c.l.b16 %v1478
  %v1502 = vunpack.c.l.b16 %v1479
  %v1503 = vunpack.c.l.b16 %v1480
  %v1504 = vunpack.c.l.b16 %v1481
  %v1505 = vunpack.c.l.b16 %v1482
  %v1506 = vpack.c.b16 %v1499, %v1498
  %v1507 = vpack.c.b16 %v1501, %v1500
  %v1508 = vpack.c.b16 %v1503, %v1502
  %v1509 = vpack.c.b16 %v1505, %v1504
  %vm1514 = vcmask 523264
  %v1516 = vsel %vm1514, %v1474, 0
  %1518 = vmatprep.subr.bf16.mxu0 0
  %1519 = vmatpush1.bf16.msra.mxu0 %v1506
  %1520 = vmatprep.subr.bf16.mxu0 0
  %1521 = vmatpush1.bf16.msra.mxu0 %v1507
  %1522 = vmatprep.subr.bf16.mxu0 0
  %1523 = vmatpush1.bf16.msra.mxu0 %v1508
  %1524 = vmatprep.subr.bf16.mxu0 0
  %1525 = vmatpush1.bf16.msra.mxu0 %v1509
  %1526 = vmatprep.subr.bf16.mxu0 0
  %1527 = vmatpush1.bf16.msra.mxu0 0
  %1528 = vmatprep.subr.bf16.mxu0 0
  %1529 = vmatpush1.bf16.msra.mxu0 0
  %1530 = vmatprep.subr.bf16.mxu0 0
  %1531 = vmatpush1.bf16.msra.mxu0 0
  %1532 = vmatprep.subr.bf16.mxu0 0
  %1533 = vmatpush1.bf16.msra.mxu0 0
  %1534 = vmatprep.subr.bf16.mxu0 0
  %1535 = vmatpush1.bf16.msra.mxu0 0
  %1536 = vmatprep.subr.bf16.mxu0 0
  %1537 = vmatpush1.bf16.msra.mxu0 0
  %1538 = vmatprep.subr.bf16.mxu0 0
  %1539 = vmatpush1.bf16.msra.mxu0 0
  %1540 = vmatprep.subr.bf16.mxu0 0
  %1541 = vmatpush1.bf16.msra.mxu0 0
  %1542 = vmatprep.subr.bf16.mxu0 0
  %1543 = vmatpush1.bf16.msra.mxu0 0
  %1544 = vmatprep.subr.bf16.mxu0 0
  %1545 = vmatpush1.bf16.msra.mxu0 0
  %1546 = vmatprep.subr.bf16.mxu0 0
  %1547 = vmatpush1.bf16.msra.mxu0 0
  %1548 = vmatprep.subr.bf16.mxu0 0
  %1549 = vmatpush1.bf16.msra.mxu0 0
  %1550 = vmatprep.mubr.bf16.mxu0 0
  %1551 = vmatmul.mubr.bf16.gmra.mrb[0].mxu0 %v1516
  %v1552 = vpop.f32.mrb[0].mxu0
  %v1553 = vadd.f32 %v1488, %v1552
  %v1554 = vpop.f32.mrb[0].mxu0
  %v1555 = vpop.f32.mrb[0].mxu0
  %v1556 = vpop.f32.mrb[0].mxu0
  %1557 = vdwg.mxu0
  %v1558 = vadd.f32 %v1553, %v1405
  %v1559 = vld [vmem:[%s16 + $0x3] sm:$0x1]
  %v1560 = vld [vmem:[%s17 + $0x3] sm:$0x1]
  %v1561 = vsel %vm71, %v1558, 0.0
  %1562 = vadd.xlane.f32.xlu0 %v1561
  %v1563 = vpop.xlane.xlu0 %1562
  %v1564 = vmul.f32 %v1563, %v75
  %v1565 = vmul.f32 %v1558, %v1558
  %v1566 = vsel %vm71, %v1565, 0.0
  %1567 = vadd.xlane.f32.xlu0 %v1566
  %v1568 = vpop.xlane.xlu0 %1567
  %v1569 = vmul.f32 %v1568, %v75
  %v1570 = vmul.f32 %v1564, %v1564
  %v1571 = vsub.f32 %v1569, %v1570
  %v1572 = vsub.f32 %v1558, %v1564
  %v1573 = vadd.f32 %v1571, 1e-05
  %v1574 = vrsqrt.pop %v1573
  %v1575 = vmul.f32 %v1572, %v1574
  %v1576 = vlaneseq
  %v1577 = vshrl.u32 %v1576, 7
  %v1578 = vsub.s32 0, %v1577
  %v1579 = vrot.slane %v1559, %v1578
  %v1580 = vmul.f32 %v1575, %v1579
  %v1581 = vlaneseq
  %v1582 = vshrl.u32 %v1581, 7
  %v1583 = vsub.s32 0, %v1582
  %v1584 = vrot.slane %v1560, %v1583
  %v1585 = vadd.f32 %v1580, %v1584
  %v1586 = vpack.c.bf16 %v1585, %v1585
  %s1587 = scalar_lea.vmem %s2, 16
  %v1588 = vld [vmem:[%s1587] sm:$0xf]
  %v1589 = vld [vmem:[%s1587 + $0x4] sm:$0xf]
  %v1590 = vld [vmem:[%s1587 + $0x8] sm:$0xf]
  %v1591 = vld [vmem:[%s1587 + $0xc] sm:$0xf]
  %s1592 = scalar_lea.vmem %s3, 1
  %v1593 = vld [vmem:[%s1592] sm:$0x1]
  %v1595 = vlaneseq
  %v1596 = vshrl.u32 %v1595, 7
  %v1597 = vsub.s32 0, %v1596
  %v1598 = vrot.slane %v1593, %v1597
  %v1604 = vunpack.c.l.b16 %v1588
  %v1605 = vunpack.c.l.b16 %v1589
  %v1606 = vunpack.c.l.b16 %v1590
  %v1607 = vunpack.c.l.b16 %v1591
  %v1608 = vpack.c.b16 %v1605, %v1604
  %v1609 = vpack.c.b16 %v1607, %v1606
  %v1613 = vsel %vm71, %v1586, 0
  %1615 = vmatprep.subr.bf16.mxu0 0
  %1616 = vmatpush1.bf16.msra.mxu0 %v1608
  %1617 = vmatprep.subr.bf16.mxu0 0
  %1618 = vmatpush1.bf16.msra.mxu0 %v1609
  %1619 = vmatprep.subr.bf16.mxu0 0
  %1620 = vmatpush1.bf16.msra.mxu0 0
  %1621 = vmatprep.subr.bf16.mxu0 0
  %1622 = vmatpush1.bf16.msra.mxu0 0
  %1623 = vmatprep.subr.bf16.mxu0 0
  %1624 = vmatpush1.bf16.msra.mxu0 0
  %1625 = vmatprep.subr.bf16.mxu0 0
  %1626 = vmatpush1.bf16.msra.mxu0 0
  %1627 = vmatprep.subr.bf16.mxu0 0
  %1628 = vmatpush1.bf16.msra.mxu0 0
  %1629 = vmatprep.subr.bf16.mxu0 0
  %1630 = vmatpush1.bf16.msra.mxu0 0
  %1631 = vmatprep.subr.bf16.mxu0 0
  %1632 = vmatpush1.bf16.msra.mxu0 0
  %1633 = vmatprep.subr.bf16.mxu0 0
  %1634 = vmatpush1.bf16.msra.mxu0 0
  %1635 = vmatprep.subr.bf16.mxu0 0
  %1636 = vmatpush1.bf16.msra.mxu0 0
  %1637 = vmatprep.subr.bf16.mxu0 0
  %1638 = vmatpush1.bf16.msra.mxu0 0
  %1639 = vmatprep.subr.bf16.mxu0 0
  %1640 = vmatpush1.bf16.msra.mxu0 0
  %1641 = vmatprep.subr.bf16.mxu0 0
  %1642 = vmatpush1.bf16.msra.mxu0 0
  %1643 = vmatprep.subr.bf16.mxu0 0
  %1644 = vmatpush1.bf16.msra.mxu0 0
  %1645 = vmatprep.subr.bf16.mxu0 0
  %1646 = vmatpush1.bf16.msra.mxu0 0
  %1647 = vmatprep.mubr.bf16.mxu0 0
  %1648 = vmatmul.mubr.bf16.gmra.mrb[0].mxu0 %v1613
  %v1649 = vpop.f32.mrb[0].mxu0
  %v1650 = vadd.f32 %v1598, %v1649
  %v1651 = vpop.f32.mrb[0].mxu0
  %v1652 = vpop.f32.mrb[0].mxu0
  %v1653 = vpop.f32.mrb[0].mxu0
  %1654 = vdwg.mxu0
  %v1655 = vpack.c.bf16 %v1650, %v1650
  %1657 = vrot.lane.b32.xlu0 %v1655, 96
  %v1658 = vpop.permute.xlu0 %1657
  %v1660 = vsel %vm169, %v1655, 0
  %v1663 = vsel %vm169, %v1658, 0
  %1665 = vmatprep.subr.bf16.mxu0 0
  %1666 = vmatpush1.bf16.xpose.msra.mxu0 %v1663
  %1667 = vmatprep.subr.bf16.mxu0 0
  %1668 = vmatpush1.bf16.xpose.msra.mxu0 0
  %1669 = vmatprep.subr.bf16.mxu0 0
  %1670 = vmatpush1.bf16.xpose.msra.mxu0 0
  %1671 = vmatprep.subr.bf16.mxu0 0
  %1672 = vmatpush1.bf16.xpose.msra.mxu0 0
  %1673 = vmatprep.subr.bf16.mxu0 0
  %1674 = vmatpush1.bf16.xpose.msra.mxu0 0
  %1675 = vmatprep.subr.bf16.mxu0 0
  %1676 = vmatpush1.bf16.xpose.msra.mxu0 0
  %1677 = vmatprep.subr.bf16.mxu0 0
  %1678 = vmatpush1.bf16.xpose.msra.mxu0 0
  %1679 = vmatprep.subr.bf16.mxu0 0
  %1680 = vmatpush1.bf16.xpose.msra.mxu0 0
  %1681 = vmatprep.subr.bf16.mxu0 0
  %1682 = vmatpush1.bf16.xpose.msra.mxu0 0
  %1683 = vmatprep.subr.bf16.mxu0 0
  %1684 = vmatpush1.bf16.xpose.msra.mxu0 0
  %1685 = vmatprep.subr.bf16.mxu0 0
  %1686 = vmatpush1.bf16.xpose.msra.mxu0 0
  %1687 = vmatprep.subr.bf16.mxu0 0
  %1688 = vmatpush1.bf16.xpose.msra.mxu0 0
  %1689 = vmatprep.subr.bf16.mxu0 0
  %1690 = vmatpush1.bf16.xpose.msra.mxu0 0
  %1691 = vmatprep.subr.bf16.mxu0 0
  %1692 = vmatpush1.bf16.xpose.msra.mxu0 0
  %1693 = vmatprep.subr.bf16.mxu0 0
  %1694 = vmatpush1.bf16.xpose.msra.mxu0 0
  %1695 = vmatprep.subr.bf16.mxu0 0
  %1696 = vmatpush1.bf16.xpose.msra.mxu0 0
  %1697 = vmatprep.mubr.bf16.mxu0 0
  %1698 = vmatmul.mubr.bf16.gmra.mrb[0].mxu0 %v1660
  %v1699 = vpop.f32.mrb[0].mxu0
  %v1700 = vadd.f32 %v65, %v1699
  %v1701 = vpop.f32.mrb[0].mxu0
  %v1702 = vpop.f32.mrb[0].mxu0
  %v1703 = vpop.f32.mrb[0].mxu0
  %1704 = vdwg.mxu0
  %v1705 = vsel %vm169, %v1700, -inf
  %1706 = vmax.xlane.f32.xlu0 %v1705
  %v1707 = vpop.xlane.xlu0 %1706
  %v1708 = vsub.f32 %v1700, %v1707
  %v1709 = vmul.f32 %v1708, 1.442695
  %v1710 = vpow.pop %v1709
  %v1711 = vsel %vm169, %v1710, 0.0
  %1712 = vadd.xlane.f32.xlu0 %v1711
  %v1713 = vpop.xlane.xlu0 %1712
  %v1714 = vrcp.pop %v1713
  %v1715 = vmul.f32 %v1710, %v1714
  %v1716 = vpack.c.bf16 %v1715, %v1715
  %1717 = vrot.lane.b32.xlu0 %v1655, 64
  %v1718 = vpop.permute.xlu0 %1717
  %v1720 = vsel %vm169, %v1716, 0
  %v1723 = vsel %vm233, %v1718, 0
  %1725 = vmatprep.subr.bf16.mxu0 0
  %1726 = vmatpush1.bf16.msra.mxu0 %v1723
  %1727 = vmatprep.subr.bf16.mxu0 0
  %1728 = vmatpush1.bf16.msra.mxu0 0
  %1729 = vmatprep.subr.bf16.mxu0 0
  %1730 = vmatpush1.bf16.msra.mxu0 0
  %1731 = vmatprep.subr.bf16.mxu0 0
  %1732 = vmatpush1.bf16.msra.mxu0 0
  %1733 = vmatprep.subr.bf16.mxu0 0
  %1734 = vmatpush1.bf16.msra.mxu0 0
  %1735 = vmatprep.subr.bf16.mxu0 0
  %1736 = vmatpush1.bf16.msra.mxu0 0
  %1737 = vmatprep.subr.bf16.mxu0 0
  %1738 = vmatpush1.bf16.msra.mxu0 0
  %1739 = vmatprep.subr.bf16.mxu0 0
  %1740 = vmatpush1.bf16.msra.mxu0 0
  %1741 = vmatprep.subr.bf16.mxu0 0
  %1742 = vmatpush1.bf16.msra.mxu0 0
  %1743 = vmatprep.subr.bf16.mxu0 0
  %1744 = vmatpush1.bf16.msra.mxu0 0
  %1745 = vmatprep.subr.bf16.mxu0 0
  %1746 = vmatpush1.bf16.msra.mxu0 0
  %1747 = vmatprep.subr.bf16.mxu0 0
  %1748 = vmatpush1.bf16.msra.mxu0 0
  %1749 = vmatprep.subr.bf16.mxu0 0
  %1750 = vmatpush1.bf16.msra.mxu0 0
  %1751 = vmatprep.subr.bf16.mxu0 0
  %1752 = vmatpush1.bf16.msra.mxu0 0
  %1753 = vmatprep.subr.bf16.mxu0 0
  %1754 = vmatpush1.bf16.msra.mxu0 0
  %1755 = vmatprep.subr.bf16.mxu0 0
  %1756 = vmatpush1.bf16.msra.mxu0 0
  %1757 = vmatprep.mubr.bf16.mxu0 0
  %1758 = vmatmul.mubr.bf16.gmra.mrb[0].mxu0 %v1720
  %v1759 = vpop.f32.mrb[0].mxu0
  %v1760 = vadd.f32 0.0, %v1759
  %v1761 = vpop.f32.mrb[0].mxu0
  %v1762 = vpop.f32.mrb[0].mxu0
  %v1763 = vpop.f32.mrb[0].mxu0
  %1764 = vdwg.mxu0
  %1765 = vst.msk [vmem:[#allocation2] sm:$0xff] %vm169, %v1760
  %1766 = vrot.lane.b32.xlu0 %v1655, 120
  %v1767 = vpop.permute.xlu0 %1766
  %1768 = vrot.lane.b32.xlu0 %v1655, 88
  %v1769 = vpop.permute.xlu0 %1768
  %v1771 = vsel %vm169, %v1767, 0
  %v1774 = vsel %vm169, %v1769, 0
  %1776 = vmatprep.subr.bf16.mxu0 0
  %1777 = vmatpush1.bf16.xpose.msra.mxu0 %v1774
  %1778 = vmatprep.subr.bf16.mxu0 0
  %1779 = vmatpush1.bf16.xpose.msra.mxu0 0
  %1780 = vmatprep.subr.bf16.mxu0 0
  %1781 = vmatpush1.bf16.xpose.msra.mxu0 0
  %1782 = vmatprep.subr.bf16.mxu0 0
  %1783 = vmatpush1.bf16.xpose.msra.mxu0 0
  %1784 = vmatprep.subr.bf16.mxu0 0
  %1785 = vmatpush1.bf16.xpose.msra.mxu0 0
  %1786 = vmatprep.subr.bf16.mxu0 0
  %1787 = vmatpush1.bf16.xpose.msra.mxu0 0
  %1788 = vmatprep.subr.bf16.mxu0 0
  %1789 = vmatpush1.bf16.xpose.msra.mxu0 0
  %1790 = vmatprep.subr.bf16.mxu0 0
  %1791 = vmatpush1.bf16.xpose.msra.mxu0 0
  %1792 = vmatprep.subr.bf16.mxu0 0
  %1793 = vmatpush1.bf16.xpose.msra.mxu0 0
  %1794 = vmatprep.subr.bf16.mxu0 0
  %1795 = vmatpush1.bf16.xpose.msra.mxu0 0
  %1796 = vmatprep.subr.bf16.mxu0 0
  %1797 = vmatpush1.bf16.xpose.msra.mxu0 0
  %1798 = vmatprep.subr.bf16.mxu0 0
  %1799 = vmatpush1.bf16.xpose.msra.mxu0 0
  %1800 = vmatprep.subr.bf16.mxu0 0
  %1801 = vmatpush1.bf16.xpose.msra.mxu0 0
  %1802 = vmatprep.subr.bf16.mxu0 0
  %1803 = vmatpush1.bf16.xpose.msra.mxu0 0
  %1804 = vmatprep.subr.bf16.mxu0 0
  %1805 = vmatpush1.bf16.xpose.msra.mxu0 0
  %1806 = vmatprep.subr.bf16.mxu0 0
  %1807 = vmatpush1.bf16.xpose.msra.mxu0 0
  %1808 = vmatprep.mubr.bf16.mxu0 0
  %1809 = vmatmul.mubr.bf16.gmra.mrb[0].mxu0 %v1771
  %v1810 = vpop.f32.mrb[0].mxu0
  %v1811 = vadd.f32 %v65, %v1810
  %v1812 = vpop.f32.mrb[0].mxu0
  %v1813 = vpop.f32.mrb[0].mxu0
  %v1814 = vpop.f32.mrb[0].mxu0
  %1815 = vdwg.mxu0
  %v1816 = vsel %vm169, %v1811, -inf
  %1817 = vmax.xlane.f32.xlu0 %v1816
  %v1818 = vpop.xlane.xlu0 %1817
  %v1819 = vsub.f32 %v1811, %v1818
  %v1820 = vmul.f32 %v1819, 1.442695
  %v1821 = vpow.pop %v1820
  %v1822 = vsel %vm169, %v1821, 0.0
  %1823 = vadd.xlane.f32.xlu0 %v1822
  %v1824 = vpop.xlane.xlu0 %1823
  %v1825 = vrcp.pop %v1824
  %v1826 = vmul.f32 %v1821, %v1825
  %v1827 = vpack.c.bf16 %v1826, %v1826
  %1828 = vrot.lane.b32.xlu0 %v1655, 56
  %v1829 = vpop.permute.xlu0 %1828
  %v1831 = vsel %vm169, %v1827, 0
  %v1834 = vsel %vm233, %v1829, 0
  %1836 = vmatprep.subr.bf16.mxu0 0
  %1837 = vmatpush1.bf16.msra.mxu0 %v1834
  %1838 = vmatprep.subr.bf16.mxu0 0
  %1839 = vmatpush1.bf16.msra.mxu0 0
  %1840 = vmatprep.subr.bf16.mxu0 0
  %1841 = vmatpush1.bf16.msra.mxu0 0
  %1842 = vmatprep.subr.bf16.mxu0 0
  %1843 = vmatpush1.bf16.msra.mxu0 0
  %1844 = vmatprep.subr.bf16.mxu0 0
  %1845 = vmatpush1.bf16.msra.mxu0 0
  %1846 = vmatprep.subr.bf16.mxu0 0
  %1847 = vmatpush1.bf16.msra.mxu0 0
  %1848 = vmatprep.subr.bf16.mxu0 0
  %1849 = vmatpush1.bf16.msra.mxu0 0
  %1850 = vmatprep.subr.bf16.mxu0 0
  %1851 = vmatpush1.bf16.msra.mxu0 0
  %1852 = vmatprep.subr.bf16.mxu0 0
  %1853 = vmatpush1.bf16.msra.mxu0 0
  %1854 = vmatprep.subr.bf16.mxu0 0
  %1855 = vmatpush1.bf16.msra.mxu0 0
  %1856 = vmatprep.subr.bf16.mxu0 0
  %1857 = vmatpush1.bf16.msra.mxu0 0
  %1858 = vmatprep.subr.bf16.mxu0 0
  %1859 = vmatpush1.bf16.msra.mxu0 0
  %1860 = vmatprep.subr.bf16.mxu0 0
  %1861 = vmatpush1.bf16.msra.mxu0 0
  %1862 = vmatprep.subr.bf16.mxu0 0
  %1863 = vmatpush1.bf16.msra.mxu0 0
  %1864 = vmatprep.subr.bf16.mxu0 0
  %1865 = vmatpush1.bf16.msra.mxu0 0
  %1866 = vmatprep.subr.bf16.mxu0 0
  %1867 = vmatpush1.bf16.msra.mxu0 0
  %1868 = vmatprep.mubr.bf16.mxu0 0
  %1869 = vmatmul.mubr.bf16.gmra.mrb[0].mxu0 %v1831
  %v1870 = vpop.f32.mrb[0].mxu0
  %v1871 = vadd.f32 0.0, %v1870
  %v1872 = vpop.f32.mrb[0].mxu0
  %v1873 = vpop.f32.mrb[0].mxu0
  %v1874 = vpop.f32.mrb[0].mxu0
  %1875 = vdwg.mxu0
  %1877 = vrot.lane.b32.xlu0 %v1871, 8
  %v1878 = vpop.permute.xlu0 %1877
  %1880 = vst.msk [vmem:[#allocation2] sm:$0xff] %vm392, %v1878
  %1881 = vrot.lane.b32.xlu0 %v1655, 112
  %v1882 = vpop.permute.xlu0 %1881
  %1883 = vrot.lane.b32.xlu0 %v1655, 80
  %v1884 = vpop.permute.xlu0 %1883
  %v1886 = vsel %vm169, %v1882, 0
  %v1889 = vsel %vm169, %v1884, 0
  %1891 = vmatprep.subr.bf16.mxu0 0
  %1892 = vmatpush1.bf16.xpose.msra.mxu0 %v1889
  %1893 = vmatprep.subr.bf16.mxu0 0
  %1894 = vmatpush1.bf16.xpose.msra.mxu0 0
  %1895 = vmatprep.subr.bf16.mxu0 0
  %1896 = vmatpush1.bf16.xpose.msra.mxu0 0
  %1897 = vmatprep.subr.bf16.mxu0 0
  %1898 = vmatpush1.bf16.xpose.msra.mxu0 0
  %1899 = vmatprep.subr.bf16.mxu0 0
  %1900 = vmatpush1.bf16.xpose.msra.mxu0 0
  %1901 = vmatprep.subr.bf16.mxu0 0
  %1902 = vmatpush1.bf16.xpose.msra.mxu0 0
  %1903 = vmatprep.subr.bf16.mxu0 0
  %1904 = vmatpush1.bf16.xpose.msra.mxu0 0
  %1905 = vmatprep.subr.bf16.mxu0 0
  %1906 = vmatpush1.bf16.xpose.msra.mxu0 0
  %1907 = vmatprep.subr.bf16.mxu0 0
  %1908 = vmatpush1.bf16.xpose.msra.mxu0 0
  %1909 = vmatprep.subr.bf16.mxu0 0
  %1910 = vmatpush1.bf16.xpose.msra.mxu0 0
  %1911 = vmatprep.subr.bf16.mxu0 0
  %1912 = vmatpush1.bf16.xpose.msra.mxu0 0
  %1913 = vmatprep.subr.bf16.mxu0 0
  %1914 = vmatpush1.bf16.xpose.msra.mxu0 0
  %1915 = vmatprep.subr.bf16.mxu0 0
  %1916 = vmatpush1.bf16.xpose.msra.mxu0 0
  %1917 = vmatprep.subr.bf16.mxu0 0
  %1918 = vmatpush1.bf16.xpose.msra.mxu0 0
  %1919 = vmatprep.subr.bf16.mxu0 0
  %1920 = vmatpush1.bf16.xpose.msra.mxu0 0
  %1921 = vmatprep.subr.bf16.mxu0 0
  %1922 = vmatpush1.bf16.xpose.msra.mxu0 0
  %1923 = vmatprep.mubr.bf16.mxu0 0
  %1924 = vmatmul.mubr.bf16.gmra.mrb[0].mxu0 %v1886
  %v1925 = vpop.f32.mrb[0].mxu0
  %v1926 = vadd.f32 %v65, %v1925
  %v1927 = vpop.f32.mrb[0].mxu0
  %v1928 = vpop.f32.mrb[0].mxu0
  %v1929 = vpop.f32.mrb[0].mxu0
  %1930 = vdwg.mxu0
  %v1931 = vsel %vm169, %v1926, -inf
  %1932 = vmax.xlane.f32.xlu0 %v1931
  %v1933 = vpop.xlane.xlu0 %1932
  %v1934 = vsub.f32 %v1926, %v1933
  %v1935 = vmul.f32 %v1934, 1.442695
  %v1936 = vpow.pop %v1935
  %v1937 = vsel %vm169, %v1936, 0.0
  %1938 = vadd.xlane.f32.xlu0 %v1937
  %v1939 = vpop.xlane.xlu0 %1938
  %v1940 = vrcp.pop %v1939
  %v1941 = vmul.f32 %v1936, %v1940
  %v1942 = vpack.c.bf16 %v1941, %v1941
  %1943 = vrot.lane.b32.xlu0 %v1655, 48
  %v1944 = vpop.permute.xlu0 %1943
  %v1946 = vsel %vm169, %v1942, 0
  %v1949 = vsel %vm233, %v1944, 0
  %1951 = vmatprep.subr.bf16.mxu0 0
  %1952 = vmatpush1.bf16.msra.mxu0 %v1949
  %1953 = vmatprep.subr.bf16.mxu0 0
  %1954 = vmatpush1.bf16.msra.mxu0 0
  %1955 = vmatprep.subr.bf16.mxu0 0
  %1956 = vmatpush1.bf16.msra.mxu0 0
  %1957 = vmatprep.subr.bf16.mxu0 0
  %1958 = vmatpush1.bf16.msra.mxu0 0
  %1959 = vmatprep.subr.bf16.mxu0 0
  %1960 = vmatpush1.bf16.msra.mxu0 0
  %1961 = vmatprep.subr.bf16.mxu0 0
  %1962 = vmatpush1.bf16.msra.mxu0 0
  %1963 = vmatprep.subr.bf16.mxu0 0
  %1964 = vmatpush1.bf16.msra.mxu0 0
  %1965 = vmatprep.subr.bf16.mxu0 0
  %1966 = vmatpush1.bf16.msra.mxu0 0
  %1967 = vmatprep.subr.bf16.mxu0 0
  %1968 = vmatpush1.bf16.msra.mxu0 0
  %1969 = vmatprep.subr.bf16.mxu0 0
  %1970 = vmatpush1.bf16.msra.mxu0 0
  %1971 = vmatprep.subr.bf16.mxu0 0
  %1972 = vmatpush1.bf16.msra.mxu0 0
  %1973 = vmatprep.subr.bf16.mxu0 0
  %1974 = vmatpush1.bf16.msra.mxu0 0
  %1975 = vmatprep.subr.bf16.mxu0 0
  %1976 = vmatpush1.bf16.msra.mxu0 0
  %1977 = vmatprep.subr.bf16.mxu0 0
  %1978 = vmatpush1.bf16.msra.mxu0 0
  %1979 = vmatprep.subr.bf16.mxu0 0
  %1980 = vmatpush1.bf16.msra.mxu0 0
  %1981 = vmatprep.subr.bf16.mxu0 0
  %1982 = vmatpush1.bf16.msra.mxu0 0
  %1983 = vmatprep.mubr.bf16.mxu0 0
  %1984 = vmatmul.mubr.bf16.gmra.mrb[0].mxu0 %v1946
  %v1985 = vpop.f32.mrb[0].mxu0
  %v1986 = vadd.f32 0.0, %v1985
  %v1987 = vpop.f32.mrb[0].mxu0
  %v1988 = vpop.f32.mrb[0].mxu0
  %v1989 = vpop.f32.mrb[0].mxu0
  %1990 = vdwg.mxu0
  %1992 = vrot.lane.b32.xlu0 %v1986, 16
  %v1993 = vpop.permute.xlu0 %1992
  %1995 = vst.msk [vmem:[#allocation2] sm:$0xff] %vm508, %v1993
  %1996 = vrot.lane.b32.xlu0 %v1655, 104
  %v1997 = vpop.permute.xlu0 %1996
  %1998 = vrot.lane.b32.xlu0 %v1655, 72
  %v1999 = vpop.permute.xlu0 %1998
  %v2001 = vsel %vm169, %v1997, 0
  %v2004 = vsel %vm169, %v1999, 0
  %2006 = vmatprep.subr.bf16.mxu0 0
  %2007 = vmatpush1.bf16.xpose.msra.mxu0 %v2004
  %2008 = vmatprep.subr.bf16.mxu0 0
  %2009 = vmatpush1.bf16.xpose.msra.mxu0 0
  %2010 = vmatprep.subr.bf16.mxu0 0
  %2011 = vmatpush1.bf16.xpose.msra.mxu0 0
  %2012 = vmatprep.subr.bf16.mxu0 0
  %2013 = vmatpush1.bf16.xpose.msra.mxu0 0
  %2014 = vmatprep.subr.bf16.mxu0 0
  %2015 = vmatpush1.bf16.xpose.msra.mxu0 0
  %2016 = vmatprep.subr.bf16.mxu0 0
  %2017 = vmatpush1.bf16.xpose.msra.mxu0 0
  %2018 = vmatprep.subr.bf16.mxu0 0
  %2019 = vmatpush1.bf16.xpose.msra.mxu0 0
  %2020 = vmatprep.subr.bf16.mxu0 0
  %2021 = vmatpush1.bf16.xpose.msra.mxu0 0
  %2022 = vmatprep.subr.bf16.mxu0 0
  %2023 = vmatpush1.bf16.xpose.msra.mxu0 0
  %2024 = vmatprep.subr.bf16.mxu0 0
  %2025 = vmatpush1.bf16.xpose.msra.mxu0 0
  %2026 = vmatprep.subr.bf16.mxu0 0
  %2027 = vmatpush1.bf16.xpose.msra.mxu0 0
  %2028 = vmatprep.subr.bf16.mxu0 0
  %2029 = vmatpush1.bf16.xpose.msra.mxu0 0
  %2030 = vmatprep.subr.bf16.mxu0 0
  %2031 = vmatpush1.bf16.xpose.msra.mxu0 0
  %2032 = vmatprep.subr.bf16.mxu0 0
  %2033 = vmatpush1.bf16.xpose.msra.mxu0 0
  %2034 = vmatprep.subr.bf16.mxu0 0
  %2035 = vmatpush1.bf16.xpose.msra.mxu0 0
  %2036 = vmatprep.subr.bf16.mxu0 0
  %2037 = vmatpush1.bf16.xpose.msra.mxu0 0
  %2038 = vmatprep.mubr.bf16.mxu0 0
  %2039 = vmatmul.mubr.bf16.gmra.mrb[0].mxu0 %v2001
  %v2040 = vpop.f32.mrb[0].mxu0
  %v2041 = vadd.f32 %v65, %v2040
  %v2042 = vpop.f32.mrb[0].mxu0
  %v2043 = vpop.f32.mrb[0].mxu0
  %v2044 = vpop.f32.mrb[0].mxu0
  %2045 = vdwg.mxu0
  %v2046 = vsel %vm169, %v2041, -inf
  %2047 = vmax.xlane.f32.xlu0 %v2046
  %v2048 = vpop.xlane.xlu0 %2047
  %v2049 = vsub.f32 %v2041, %v2048
  %v2050 = vmul.f32 %v2049, 1.442695
  %v2051 = vpow.pop %v2050
  %v2052 = vsel %vm169, %v2051, 0.0
  %2053 = vadd.xlane.f32.xlu0 %v2052
  %v2054 = vpop.xlane.xlu0 %2053
  %v2055 = vrcp.pop %v2054
  %v2056 = vmul.f32 %v2051, %v2055
  %v2057 = vpack.c.bf16 %v2056, %v2056
  %2058 = vrot.lane.b32.xlu0 %v1655, 40
  %v2059 = vpop.permute.xlu0 %2058
  %v2061 = vsel %vm169, %v2057, 0
  %v2064 = vsel %vm233, %v2059, 0
  %2066 = vmatprep.subr.bf16.mxu0 0
  %2067 = vmatpush1.bf16.msra.mxu0 %v2064
  %2068 = vmatprep.subr.bf16.mxu0 0
  %2069 = vmatpush1.bf16.msra.mxu0 0
  %2070 = vmatprep.subr.bf16.mxu0 0
  %2071 = vmatpush1.bf16.msra.mxu0 0
  %2072 = vmatprep.subr.bf16.mxu0 0
  %2073 = vmatpush1.bf16.msra.mxu0 0
  %2074 = vmatprep.subr.bf16.mxu0 0
  %2075 = vmatpush1.bf16.msra.mxu0 0
  %2076 = vmatprep.subr.bf16.mxu0 0
  %2077 = vmatpush1.bf16.msra.mxu0 0
  %2078 = vmatprep.subr.bf16.mxu0 0
  %2079 = vmatpush1.bf16.msra.mxu0 0
  %2080 = vmatprep.subr.bf16.mxu0 0
  %2081 = vmatpush1.bf16.msra.mxu0 0
  %2082 = vmatprep.subr.bf16.mxu0 0
  %2083 = vmatpush1.bf16.msra.mxu0 0
  %2084 = vmatprep.subr.bf16.mxu0 0
  %2085 = vmatpush1.bf16.msra.mxu0 0
  %2086 = vmatprep.subr.bf16.mxu0 0
  %2087 = vmatpush1.bf16.msra.mxu0 0
  %2088 = vmatprep.subr.bf16.mxu0 0
  %2089 = vmatpush1.bf16.msra.mxu0 0
  %2090 = vmatprep.subr.bf16.mxu0 0
  %2091 = vmatpush1.bf16.msra.mxu0 0
  %2092 = vmatprep.subr.bf16.mxu0 0
  %2093 = vmatpush1.bf16.msra.mxu0 0
  %2094 = vmatprep.subr.bf16.mxu0 0
  %2095 = vmatpush1.bf16.msra.mxu0 0
  %2096 = vmatprep.subr.bf16.mxu0 0
  %2097 = vmatpush1.bf16.msra.mxu0 0
  %2098 = vmatprep.mubr.bf16.mxu0 0
  %2099 = vmatmul.mubr.bf16.gmra.mrb[0].mxu0 %v2061
  %v2100 = vpop.f32.mrb[0].mxu0
  %v2101 = vadd.f32 0.0, %v2100
  %v2102 = vpop.f32.mrb[0].mxu0
  %v2103 = vpop.f32.mrb[0].mxu0
  %v2104 = vpop.f32.mrb[0].mxu0
  %2105 = vdwg.mxu0
  %2107 = vrot.lane.b32.xlu0 %v2101, 24
  %v2108 = vpop.permute.xlu0 %2107
  %2110 = vst.msk [vmem:[#allocation2] sm:$0xff] %vm624, %v2108
  %v2111 = vld [vmem:[#allocation2] sm:$0xff]
  %v2112 = vpack.c.bf16 %v2111, %v2111
  %s2113 = scalar_lea.vmem %s4, 16
  %v2114 = vld [vmem:[%s2113] sm:$0xf]
  %v2115 = vld [vmem:[%s2113 + $0x4] sm:$0xf]
  %v2116 = vld [vmem:[%s2113 + $0x8] sm:$0xf]
  %v2117 = vld [vmem:[%s2113 + $0xc] sm:$0xf]
  %s2118 = scalar_lea.vmem %s5, 1
  %v2119 = vld [vmem:[%s2118] sm:$0x1]
  %v2121 = vlaneseq
  %v2122 = vshrl.u32 %v2121, 7
  %v2123 = vsub.s32 0, %v2122
  %v2124 = vrot.slane %v2119, %v2123
  %v2130 = vunpack.c.l.b16 %v2114
  %v2131 = vunpack.c.l.b16 %v2115
  %v2132 = vunpack.c.l.b16 %v2116
  %v2133 = vunpack.c.l.b16 %v2117
  %v2134 = vpack.c.b16 %v2131, %v2130
  %v2135 = vpack.c.b16 %v2133, %v2132
  %v2139 = vsel %vm71, %v2112, 0
  %2141 = vmatprep.subr.bf16.mxu0 0
  %2142 = vmatpush1.bf16.msra.mxu0 %v2134
  %2143 = vmatprep.subr.bf16.mxu0 0
  %2144 = vmatpush1.bf16.msra.mxu0 %v2135
  %2145 = vmatprep.subr.bf16.mxu0 0
  %2146 = vmatpush1.bf16.msra.mxu0 0
  %2147 = vmatprep.subr.bf16.mxu0 0
  %2148 = vmatpush1.bf16.msra.mxu0 0
  %2149 = vmatprep.subr.bf16.mxu0 0
  %2150 = vmatpush1.bf16.msra.mxu0 0
  %2151 = vmatprep.subr.bf16.mxu0 0
  %2152 = vmatpush1.bf16.msra.mxu0 0
  %2153 = vmatprep.subr.bf16.mxu0 0
  %2154 = vmatpush1.bf16.msra.mxu0 0
  %2155 = vmatprep.subr.bf16.mxu0 0
  %2156 = vmatpush1.bf16.msra.mxu0 0
  %2157 = vmatprep.subr.bf16.mxu0 0
  %2158 = vmatpush1.bf16.msra.mxu0 0
  %2159 = vmatprep.subr.bf16.mxu0 0
  %2160 = vmatpush1.bf16.msra.mxu0 0
  %2161 = vmatprep.subr.bf16.mxu0 0
  %2162 = vmatpush1.bf16.msra.mxu0 0
  %2163 = vmatprep.subr.bf16.mxu0 0
  %2164 = vmatpush1.bf16.msra.mxu0 0
  %2165 = vmatprep.subr.bf16.mxu0 0
  %2166 = vmatpush1.bf16.msra.mxu0 0
  %2167 = vmatprep.subr.bf16.mxu0 0
  %2168 = vmatpush1.bf16.msra.mxu0 0
  %2169 = vmatprep.subr.bf16.mxu0 0
  %2170 = vmatpush1.bf16.msra.mxu0 0
  %2171 = vmatprep.subr.bf16.mxu0 0
  %2172 = vmatpush1.bf16.msra.mxu0 0
  %2173 = vmatprep.mubr.bf16.mxu0 0
  %2174 = vmatmul.mubr.bf16.gmra.mrb[0].mxu0 %v2139
  %v2175 = vpop.f32.mrb[0].mxu0
  %v2176 = vadd.f32 %v2124, %v2175
  %v2177 = vpop.f32.mrb[0].mxu0
  %v2178 = vpop.f32.mrb[0].mxu0
  %v2179 = vpop.f32.mrb[0].mxu0
  %2180 = vdwg.mxu0
  %v2181 = vadd.f32 %v2176, %v1585
  %v2182 = vld [vmem:[%s16 + $0x4] sm:$0x1]
  %v2183 = vld [vmem:[%s17 + $0x4] sm:$0x1]
  %v2184 = vsel %vm71, %v2181, 0.0
  %2185 = vadd.xlane.f32.xlu0 %v2184
  %v2186 = vpop.xlane.xlu0 %2185
  %v2187 = vmul.f32 %v2186, %v75
  %v2188 = vmul.f32 %v2181, %v2181
  %v2189 = vsel %vm71, %v2188, 0.0
  %2190 = vadd.xlane.f32.xlu0 %v2189
  %v2191 = vpop.xlane.xlu0 %2190
  %v2192 = vmul.f32 %v2191, %v75
  %v2193 = vmul.f32 %v2187, %v2187
  %v2194 = vsub.f32 %v2192, %v2193
  %v2195 = vsub.f32 %v2181, %v2187
  %v2196 = vadd.f32 %v2194, 1e-05
  %v2197 = vrsqrt.pop %v2196
  %v2198 = vmul.f32 %v2195, %v2197
  %v2199 = vlaneseq
  %v2200 = vshrl.u32 %v2199, 7
  %v2201 = vsub.s32 0, %v2200
  %v2202 = vrot.slane %v2182, %v2201
  %v2203 = vmul.f32 %v2198, %v2202
  %v2204 = vlaneseq
  %v2205 = vshrl.u32 %v2204, 7
  %v2206 = vsub.s32 0, %v2205
  %v2207 = vrot.slane %v2183, %v2206
  %v2208 = vadd.f32 %v2203, %v2207
  %v2209 = vpack.c.bf16 %v2208, %v2208
  %s2210 = scalar_lea.vmem %s6, 16
  %v2211 = vld [vmem:[%s2210] sm:$0xf]
  %v2212 = vld [vmem:[%s2210 + $0x4] sm:$0xf]
  %v2213 = vld [vmem:[%s2210 + $0x8] sm:$0xf]
  %v2214 = vld [vmem:[%s2210 + $0xc] sm:$0xf]
  %s2215 = scalar_lea.vmem %s7, 1
  %v2216 = vld [vmem:[%s2215] sm:$0x1]
  %v2218 = vlaneseq
  %v2219 = vshrl.u32 %v2218, 7
  %v2220 = vsub.s32 0, %v2219
  %v2221 = vrot.slane %v2216, %v2220
  %v2227 = vunpack.c.l.b16 %v2211
  %v2228 = vunpack.c.l.b16 %v2212
  %v2229 = vunpack.c.l.b16 %v2213
  %v2230 = vunpack.c.l.b16 %v2214
  %v2231 = vpack.c.b16 %v2228, %v2227
  %v2232 = vpack.c.b16 %v2230, %v2229
  %v2236 = vsel %vm71, %v2209, 0
  %2238 = vmatprep.subr.bf16.mxu0 0
  %2239 = vmatpush1.bf16.msra.mxu0 %v2231
  %2240 = vmatprep.subr.bf16.mxu0 0
  %2241 = vmatpush1.bf16.msra.mxu0 %v2232
  %2242 = vmatprep.subr.bf16.mxu0 0
  %2243 = vmatpush1.bf16.msra.mxu0 0
  %2244 = vmatprep.subr.bf16.mxu0 0
  %2245 = vmatpush1.bf16.msra.mxu0 0
  %2246 = vmatprep.subr.bf16.mxu0 0
  %2247 = vmatpush1.bf16.msra.mxu0 0
  %2248 = vmatprep.subr.bf16.mxu0 0
  %2249 = vmatpush1.bf16.msra.mxu0 0
  %2250 = vmatprep.subr.bf16.mxu0 0
  %2251 = vmatpush1.bf16.msra.mxu0 0
  %2252 = vmatprep.subr.bf16.mxu0 0
  %2253 = vmatpush1.bf16.msra.mxu0 0
  %2254 = vmatprep.subr.bf16.mxu0 0
  %2255 = vmatpush1.bf16.msra.mxu0 0
  %2256 = vmatprep.subr.bf16.mxu0 0
  %2257 = vmatpush1.bf16.msra.mxu0 0
  %2258 = vmatprep.subr.bf16.mxu0 0
  %2259 = vmatpush1.bf16.msra.mxu0 0
  %2260 = vmatprep.subr.bf16.mxu0 0
  %2261 = vmatpush1.bf16.msra.mxu0 0
  %2262 = vmatprep.subr.bf16.mxu0 0
  %2263 = vmatpush1.bf16.msra.mxu0 0
  %2264 = vmatprep.subr.bf16.mxu0 0
  %2265 = vmatpush1.bf16.msra.mxu0 0
  %2266 = vmatprep.subr.bf16.mxu0 0
  %2267 = vmatpush1.bf16.msra.mxu0 0
  %2268 = vmatprep.subr.bf16.mxu0 0
  %2269 = vmatpush1.bf16.msra.mxu0 0
  %2270 = vmatprep.mubr.bf16.mxu0 0
  %2271 = vmatmul.mubr.bf16.gmra.mrb[0].mxu0 %v2236
  %v2272 = vpop.f32.mrb[0].mxu0
  %v2273 = vadd.f32 %v2221, %v2272
  %v2274 = vpop.f32.mrb[0].mxu0
  %v2275 = vpop.f32.mrb[0].mxu0
  %v2276 = vpop.f32.mrb[0].mxu0
  %2277 = vdwg.mxu0
  %s2278 = scalar_lea.vmem %s8, 16
  %v2279 = vld [vmem:[%s2278] sm:$0xf]
  %v2280 = vld [vmem:[%s2278 + $0x4] sm:$0xf]
  %v2281 = vld [vmem:[%s2278 + $0x8] sm:$0xf]
  %v2282 = vld [vmem:[%s2278 + $0xc] sm:$0xf]
  %s2283 = scalar_lea.vmem %s9, 1
  %v2284 = vld [vmem:[%s2283] sm:$0x1]
  %v2286 = vlaneseq
  %v2287 = vshrl.u32 %v2286, 7
  %v2288 = vsub.s32 0, %v2287
  %v2289 = vrot.slane %v2284, %v2288
  %v2295 = vunpack.c.l.b16 %v2279
  %v2296 = vunpack.c.l.b16 %v2280
  %v2297 = vunpack.c.l.b16 %v2281
  %v2298 = vunpack.c.l.b16 %v2282
  %v2299 = vpack.c.b16 %v2296, %v2295
  %v2300 = vpack.c.b16 %v2298, %v2297
  %2303 = vmatprep.subr.bf16.mxu0 0
  %2304 = vmatpush1.bf16.msra.mxu0 %v2299
  %2305 = vmatprep.subr.bf16.mxu0 0
  %2306 = vmatpush1.bf16.msra.mxu0 %v2300
  %2307 = vmatprep.subr.bf16.mxu0 0
  %2308 = vmatpush1.bf16.msra.mxu0 0
  %2309 = vmatprep.subr.bf16.mxu0 0
  %2310 = vmatpush1.bf16.msra.mxu0 0
  %2311 = vmatprep.subr.bf16.mxu0 0
  %2312 = vmatpush1.bf16.msra.mxu0 0
  %2313 = vmatprep.subr.bf16.mxu0 0
  %2314 = vmatpush1.bf16.msra.mxu0 0
  %2315 = vmatprep.subr.bf16.mxu0 0
  %2316 = vmatpush1.bf16.msra.mxu0 0
  %2317 = vmatprep.subr.bf16.mxu0 0
  %2318 = vmatpush1.bf16.msra.mxu0 0
  %2319 = vmatprep.subr.bf16.mxu0 0
  %2320 = vmatpush1.bf16.msra.mxu0 0
  %2321 = vmatprep.subr.bf16.mxu0 0
  %2322 = vmatpush1.bf16.msra.mxu0 0
  %2323 = vmatprep.subr.bf16.mxu0 0
  %2324 = vmatpush1.bf16.msra.mxu0 0
  %2325 = vmatprep.subr.bf16.mxu0 0
  %2326 = vmatpush1.bf16.msra.mxu0 0
  %2327 = vmatprep.subr.bf16.mxu0 0
  %2328 = vmatpush1.bf16.msra.mxu0 0
  %2329 = vmatprep.subr.bf16.mxu0 0
  %2330 = vmatpush1.bf16.msra.mxu0 0
  %2331 = vmatprep.subr.bf16.mxu0 0
  %2332 = vmatpush1.bf16.msra.mxu0 0
  %2333 = vmatprep.subr.bf16.mxu0 0
  %2334 = vmatpush1.bf16.msra.mxu0 0
  %2335 = vmatprep.mubr.bf16.mxu0 0
  %2336 = vmatmul.mubr.bf16.gmra.mrb[0].mxu0 %v818
  %v2337 = vpop.f32.mrb[0].mxu0
  %v2338 = vadd.f32 %v2289, %v2337
  %v2339 = vpop.f32.mrb[0].mxu0
  %v2340 = vpop.f32.mrb[0].mxu0
  %v2341 = vadd.f32 %v2289, %v2340
  %v2342 = vpop.f32.mrb[0].mxu0
  %2343 = vdwg.mxu0
  %v2344 = vpack.c.bf16 %v2273, %v2273
  %v2345 = vpack.c.bf16 %v2341, %v2338
  %v2347 = vsel %vm169, %v2344, 0
  %v2350 = vsel %vm169, %v2345, 0
  %2352 = vmatprep.subr.bf16.mxu0 0
  %2353 = vmatpush1.bf16.xpose.msra.mxu0 %v2350
  %2354 = vmatprep.subr.bf16.mxu0 0
  %2355 = vmatpush1.bf16.xpose.msra.mxu0 0
  %2356 = vmatprep.subr.bf16.mxu0 0
  %2357 = vmatpush1.bf16.xpose.msra.mxu0 0
  %2358 = vmatprep.subr.bf16.mxu0 0
  %2359 = vmatpush1.bf16.xpose.msra.mxu0 0
  %2360 = vmatprep.subr.bf16.mxu0 0
  %2361 = vmatpush1.bf16.xpose.msra.mxu0 0
  %2362 = vmatprep.subr.bf16.mxu0 0
  %2363 = vmatpush1.bf16.xpose.msra.mxu0 0
  %2364 = vmatprep.subr.bf16.mxu0 0
  %2365 = vmatpush1.bf16.xpose.msra.mxu0 0
  %2366 = vmatprep.subr.bf16.mxu0 0
  %2367 = vmatpush1.bf16.xpose.msra.mxu0 0
  %2368 = vmatprep.subr.bf16.mxu0 0
  %2369 = vmatpush1.bf16.xpose.msra.mxu0 0
  %2370 = vmatprep.subr.bf16.mxu0 0
  %2371 = vmatpush1.bf16.xpose.msra.mxu0 0
  %2372 = vmatprep.subr.bf16.mxu0 0
  %2373 = vmatpush1.bf16.xpose.msra.mxu0 0
  %2374 = vmatprep.subr.bf16.mxu0 0
  %2375 = vmatpush1.bf16.xpose.msra.mxu0 0
  %2376 = vmatprep.subr.bf16.mxu0 0
  %2377 = vmatpush1.bf16.xpose.msra.mxu0 0
  %2378 = vmatprep.subr.bf16.mxu0 0
  %2379 = vmatpush1.bf16.xpose.msra.mxu0 0
  %2380 = vmatprep.subr.bf16.mxu0 0
  %2381 = vmatpush1.bf16.xpose.msra.mxu0 0
  %2382 = vmatprep.subr.bf16.mxu0 0
  %2383 = vmatpush1.bf16.xpose.msra.mxu0 0
  %2384 = vmatprep.mubr.bf16.mxu0 0
  %2385 = vmatmul.mubr.bf16.gmra.mrb[0].mxu0 %v2347
  %v2386 = vpop.f32.mrb[0].mxu0
  %v2387 = vadd.f32 0.0, %v2386
  %v2388 = vpop.f32.mrb[0].mxu0
  %v2389 = vpop.f32.mrb[0].mxu0
  %v2390 = vpop.f32.mrb[0].mxu0
  %2391 = vdwg.mxu0
  %v2392 = vsel %vm909, %v2387, -inf
  %2393 = vmax.xlane.f32.xlu0 %v2392
  %v2394 = vpop.xlane.xlu0 %2393
  %v2395 = vsub.f32 %v2387, %v2394
  %v2396 = vmul.f32 %v2395, 1.442695
  %v2397 = vpow.pop %v2396
  %v2398 = vsel %vm909, %v2397, 0.0
  %2399 = vadd.xlane.f32.xlu0 %v2398
  %v2400 = vpop.xlane.xlu0 %2399
  %v2401 = vrcp.pop %v2400
  %v2402 = vmul.f32 %v2397, %v2401
  %v2403 = vpack.c.bf16 %v2402, %v2402
  %2405 = vrot.lane.b32.xlu0 %v2345, 96
  %v2406 = vpop.permute.xlu0 %2405
  %v2409 = vsel %vm909, %v2403, 0
  %2411 = vmatprep.subr.bf16.mxu0 0
  %2412 = vmatpush1.bf16.msra.mxu0 %v2406
  %2413 = vmatprep.subr.bf16.mxu0 0
  %2414 = vmatpush1.bf16.msra.mxu0 0
  %2415 = vmatprep.subr.bf16.mxu0 0
  %2416 = vmatpush1.bf16.msra.mxu0 0
  %2417 = vmatprep.subr.bf16.mxu0 0
  %2418 = vmatpush1.bf16.msra.mxu0 0
  %2419 = vmatprep.subr.bf16.mxu0 0
  %2420 = vmatpush1.bf16.msra.mxu0 0
  %2421 = vmatprep.subr.bf16.mxu0 0
  %2422 = vmatpush1.bf16.msra.mxu0 0
  %2423 = vmatprep.subr.bf16.mxu0 0
  %2424 = vmatpush1.bf16.msra.mxu0 0
  %2425 = vmatprep.subr.bf16.mxu0 0
  %2426 = vmatpush1.bf16.msra.mxu0 0
  %2427 = vmatprep.subr.bf16.mxu0 0
  %2428 = vmatpush1.bf16.msra.mxu0 0
  %2429 = vmatprep.subr.bf16.mxu0 0
  %2430 = vmatpush1.bf16.msra.mxu0 0
  %2431 = vmatprep.subr.bf16.mxu0 0
  %2432 = vmatpush1.bf16.msra.mxu0 0
  %2433 = vmatprep.subr.bf16.mxu0 0
  %2434 = vmatpush1.bf16.msra.mxu0 0
  %2435 = vmatprep.subr.bf16.mxu0 0
  %2436 = vmatpush1.bf16.msra.mxu0 0
  %2437 = vmatprep.subr.bf16.mxu0 0
  %2438 = vmatpush1.bf16.msra.mxu0 0
  %2439 = vmatprep.subr.bf16.mxu0 0
  %2440 = vmatpush1.bf16.msra.mxu0 0
  %2441 = vmatprep.subr.bf16.mxu0 0
  %2442 = vmatpush1.bf16.msra.mxu0 0
  %2443 = vmatprep.mubr.bf16.mxu0 0
  %2444 = vmatmul.mubr.bf16.gmra.mrb[0].mxu0 %v2409
  %v2445 = vpop.f32.mrb[0].mxu0
  %v2446 = vadd.f32 0.0, %v2445
  %v2447 = vpop.f32.mrb[0].mxu0
  %v2448 = vpop.f32.mrb[0].mxu0
  %v2449 = vpop.f32.mrb[0].mxu0
  %2450 = vdwg.mxu0
  %2451 = vst.msk [vmem:[#allocation2] sm:$0xff] %vm169, %v2446
  %2453 = vrot.lane.b32.xlu0 %v2344, 120
  %v2454 = vpop.permute.xlu0 %2453
  %2455 = vrot.lane.b32.xlu0 %v2345, 120
  %v2456 = vpop.permute.xlu0 %2455
  %v2458 = vsel %vm169, %v2454, 0
  %v2461 = vsel %vm169, %v2456, 0
  %2463 = vmatprep.subr.bf16.mxu0 0
  %2464 = vmatpush1.bf16.xpose.msra.mxu0 %v2461
  %2465 = vmatprep.subr.bf16.mxu0 0
  %2466 = vmatpush1.bf16.xpose.msra.mxu0 0
  %2467 = vmatprep.subr.bf16.mxu0 0
  %2468 = vmatpush1.bf16.xpose.msra.mxu0 0
  %2469 = vmatprep.subr.bf16.mxu0 0
  %2470 = vmatpush1.bf16.xpose.msra.mxu0 0
  %2471 = vmatprep.subr.bf16.mxu0 0
  %2472 = vmatpush1.bf16.xpose.msra.mxu0 0
  %2473 = vmatprep.subr.bf16.mxu0 0
  %2474 = vmatpush1.bf16.xpose.msra.mxu0 0
  %2475 = vmatprep.subr.bf16.mxu0 0
  %2476 = vmatpush1.bf16.xpose.msra.mxu0 0
  %2477 = vmatprep.subr.bf16.mxu0 0
  %2478 = vmatpush1.bf16.xpose.msra.mxu0 0
  %2479 = vmatprep.subr.bf16.mxu0 0
  %2480 = vmatpush1.bf16.xpose.msra.mxu0 0
  %2481 = vmatprep.subr.bf16.mxu0 0
  %2482 = vmatpush1.bf16.xpose.msra.mxu0 0
  %2483 = vmatprep.subr.bf16.mxu0 0
  %2484 = vmatpush1.bf16.xpose.msra.mxu0 0
  %2485 = vmatprep.subr.bf16.mxu0 0
  %2486 = vmatpush1.bf16.xpose.msra.mxu0 0
  %2487 = vmatprep.subr.bf16.mxu0 0
  %2488 = vmatpush1.bf16.xpose.msra.mxu0 0
  %2489 = vmatprep.subr.bf16.mxu0 0
  %2490 = vmatpush1.bf16.xpose.msra.mxu0 0
  %2491 = vmatprep.subr.bf16.mxu0 0
  %2492 = vmatpush1.bf16.xpose.msra.mxu0 0
  %2493 = vmatprep.subr.bf16.mxu0 0
  %2494 = vmatpush1.bf16.xpose.msra.mxu0 0
  %2495 = vmatprep.mubr.bf16.mxu0 0
  %2496 = vmatmul.mubr.bf16.gmra.mrb[0].mxu0 %v2458
  %v2497 = vpop.f32.mrb[0].mxu0
  %v2498 = vadd.f32 0.0, %v2497
  %v2499 = vpop.f32.mrb[0].mxu0
  %v2500 = vpop.f32.mrb[0].mxu0
  %v2501 = vpop.f32.mrb[0].mxu0
  %2502 = vdwg.mxu0
  %v2503 = vsel %vm909, %v2498, -inf
  %2504 = vmax.xlane.f32.xlu0 %v2503
  %v2505 = vpop.xlane.xlu0 %2504
  %v2506 = vsub.f32 %v2498, %v2505
  %v2507 = vmul.f32 %v2506, 1.442695
  %v2508 = vpow.pop %v2507
  %v2509 = vsel %vm909, %v2508, 0.0
  %2510 = vadd.xlane.f32.xlu0 %v2509
  %v2511 = vpop.xlane.xlu0 %2510
  %v2512 = vrcp.pop %v2511
  %v2513 = vmul.f32 %v2508, %v2512
  %v2514 = vpack.c.bf16 %v2513, %v2513
  %2515 = vrot.lane.b32.xlu0 %v2345, 88
  %v2516 = vpop.permute.xlu0 %2515
  %v2519 = vsel %vm909, %v2514, 0
  %2521 = vmatprep.subr.bf16.mxu0 0
  %2522 = vmatpush1.bf16.msra.mxu0 %v2516
  %2523 = vmatprep.subr.bf16.mxu0 0
  %2524 = vmatpush1.bf16.msra.mxu0 0
  %2525 = vmatprep.subr.bf16.mxu0 0
  %2526 = vmatpush1.bf16.msra.mxu0 0
  %2527 = vmatprep.subr.bf16.mxu0 0
  %2528 = vmatpush1.bf16.msra.mxu0 0
  %2529 = vmatprep.subr.bf16.mxu0 0
  %2530 = vmatpush1.bf16.msra.mxu0 0
  %2531 = vmatprep.subr.bf16.mxu0 0
  %2532 = vmatpush1.bf16.msra.mxu0 0
  %2533 = vmatprep.subr.bf16.mxu0 0
  %2534 = vmatpush1.bf16.msra.mxu0 0
  %2535 = vmatprep.subr.bf16.mxu0 0
  %2536 = vmatpush1.bf16.msra.mxu0 0
  %2537 = vmatprep.subr.bf16.mxu0 0
  %2538 = vmatpush1.bf16.msra.mxu0 0
  %2539 = vmatprep.subr.bf16.mxu0 0
  %2540 = vmatpush1.bf16.msra.mxu0 0
  %2541 = vmatprep.subr.bf16.mxu0 0
  %2542 = vmatpush1.bf16.msra.mxu0 0
  %2543 = vmatprep.subr.bf16.mxu0 0
  %2544 = vmatpush1.bf16.msra.mxu0 0
  %2545 = vmatprep.subr.bf16.mxu0 0
  %2546 = vmatpush1.bf16.msra.mxu0 0
  %2547 = vmatprep.subr.bf16.mxu0 0
  %2548 = vmatpush1.bf16.msra.mxu0 0
  %2549 = vmatprep.subr.bf16.mxu0 0
  %2550 = vmatpush1.bf16.msra.mxu0 0
  %2551 = vmatprep.subr.bf16.mxu0 0
  %2552 = vmatpush1.bf16.msra.mxu0 0
  %2553 = vmatprep.mubr.bf16.mxu0 0
  %2554 = vmatmul.mubr.bf16.gmra.mrb[0].mxu0 %v2519
  %v2555 = vpop.f32.mrb[0].mxu0
  %v2556 = vadd.f32 0.0, %v2555
  %v2557 = vpop.f32.mrb[0].mxu0
  %v2558 = vpop.f32.mrb[0].mxu0
  %v2559 = vpop.f32.mrb[0].mxu0
  %2560 = vdwg.mxu0
  %2562 = vrot.lane.b32.xlu0 %v2556, 8
  %v2563 = vpop.permute.xlu0 %2562
  %2565 = vst.msk [vmem:[#allocation2] sm:$0xff] %vm392, %v2563
  %2566 = vrot.lane.b32.xlu0 %v2344, 112
  %v2567 = vpop.permute.xlu0 %2566
  %2568 = vrot.lane.b32.xlu0 %v2345, 112
  %v2569 = vpop.permute.xlu0 %2568
  %v2571 = vsel %vm169, %v2567, 0
  %v2574 = vsel %vm169, %v2569, 0
  %2576 = vmatprep.subr.bf16.mxu0 0
  %2577 = vmatpush1.bf16.xpose.msra.mxu0 %v2574
  %2578 = vmatprep.subr.bf16.mxu0 0
  %2579 = vmatpush1.bf16.xpose.msra.mxu0 0
  %2580 = vmatprep.subr.bf16.mxu0 0
  %2581 = vmatpush1.bf16.xpose.msra.mxu0 0
  %2582 = vmatprep.subr.bf16.mxu0 0
  %2583 = vmatpush1.bf16.xpose.msra.mxu0 0
  %2584 = vmatprep.subr.bf16.mxu0 0
  %2585 = vmatpush1.bf16.xpose.msra.mxu0 0
  %2586 = vmatprep.subr.bf16.mxu0 0
  %2587 = vmatpush1.bf16.xpose.msra.mxu0 0
  %2588 = vmatprep.subr.bf16.mxu0 0
  %2589 = vmatpush1.bf16.xpose.msra.mxu0 0
  %2590 = vmatprep.subr.bf16.mxu0 0
  %2591 = vmatpush1.bf16.xpose.msra.mxu0 0
  %2592 = vmatprep.subr.bf16.mxu0 0
  %2593 = vmatpush1.bf16.xpose.msra.mxu0 0
  %2594 = vmatprep.subr.bf16.mxu0 0
  %2595 = vmatpush1.bf16.xpose.msra.mxu0 0
  %2596 = vmatprep.subr.bf16.mxu0 0
  %2597 = vmatpush1.bf16.xpose.msra.mxu0 0
  %2598 = vmatprep.subr.bf16.mxu0 0
  %2599 = vmatpush1.bf16.xpose.msra.mxu0 0
  %2600 = vmatprep.subr.bf16.mxu0 0
  %2601 = vmatpush1.bf16.xpose.msra.mxu0 0
  %2602 = vmatprep.subr.bf16.mxu0 0
  %2603 = vmatpush1.bf16.xpose.msra.mxu0 0
  %2604 = vmatprep.subr.bf16.mxu0 0
  %2605 = vmatpush1.bf16.xpose.msra.mxu0 0
  %2606 = vmatprep.subr.bf16.mxu0 0
  %2607 = vmatpush1.bf16.xpose.msra.mxu0 0
  %2608 = vmatprep.mubr.bf16.mxu0 0
  %2609 = vmatmul.mubr.bf16.gmra.mrb[0].mxu0 %v2571
  %v2610 = vpop.f32.mrb[0].mxu0
  %v2611 = vadd.f32 0.0, %v2610
  %v2612 = vpop.f32.mrb[0].mxu0
  %v2613 = vpop.f32.mrb[0].mxu0
  %v2614 = vpop.f32.mrb[0].mxu0
  %2615 = vdwg.mxu0
  %v2616 = vsel %vm909, %v2611, -inf
  %2617 = vmax.xlane.f32.xlu0 %v2616
  %v2618 = vpop.xlane.xlu0 %2617
  %v2619 = vsub.f32 %v2611, %v2618
  %v2620 = vmul.f32 %v2619, 1.442695
  %v2621 = vpow.pop %v2620
  %v2622 = vsel %vm909, %v2621, 0.0
  %2623 = vadd.xlane.f32.xlu0 %v2622
  %v2624 = vpop.xlane.xlu0 %2623
  %v2625 = vrcp.pop %v2624
  %v2626 = vmul.f32 %v2621, %v2625
  %v2627 = vpack.c.bf16 %v2626, %v2626
  %2628 = vrot.lane.b32.xlu0 %v2345, 80
  %v2629 = vpop.permute.xlu0 %2628
  %v2632 = vsel %vm909, %v2627, 0
  %2634 = vmatprep.subr.bf16.mxu0 0
  %2635 = vmatpush1.bf16.msra.mxu0 %v2629
  %2636 = vmatprep.subr.bf16.mxu0 0
  %2637 = vmatpush1.bf16.msra.mxu0 0
  %2638 = vmatprep.subr.bf16.mxu0 0
  %2639 = vmatpush1.bf16.msra.mxu0 0
  %2640 = vmatprep.subr.bf16.mxu0 0
  %2641 = vmatpush1.bf16.msra.mxu0 0
  %2642 = vmatprep.subr.bf16.mxu0 0
  %2643 = vmatpush1.bf16.msra.mxu0 0
  %2644 = vmatprep.subr.bf16.mxu0 0
  %2645 = vmatpush1.bf16.msra.mxu0 0
  %2646 = vmatprep.subr.bf16.mxu0 0
  %2647 = vmatpush1.bf16.msra.mxu0 0
  %2648 = vmatprep.subr.bf16.mxu0 0
  %2649 = vmatpush1.bf16.msra.mxu0 0
  %2650 = vmatprep.subr.bf16.mxu0 0
  %2651 = vmatpush1.bf16.msra.mxu0 0
  %2652 = vmatprep.subr.bf16.mxu0 0
  %2653 = vmatpush1.bf16.msra.mxu0 0
  %2654 = vmatprep.subr.bf16.mxu0 0
  %2655 = vmatpush1.bf16.msra.mxu0 0
  %2656 = vmatprep.subr.bf16.mxu0 0
  %2657 = vmatpush1.bf16.msra.mxu0 0
  %2658 = vmatprep.subr.bf16.mxu0 0
  %2659 = vmatpush1.bf16.msra.mxu0 0
  %2660 = vmatprep.subr.bf16.mxu0 0
  %2661 = vmatpush1.bf16.msra.mxu0 0
  %2662 = vmatprep.subr.bf16.mxu0 0
  %2663 = vmatpush1.bf16.msra.mxu0 0
  %2664 = vmatprep.subr.bf16.mxu0 0
  %2665 = vmatpush1.bf16.msra.mxu0 0
  %2666 = vmatprep.mubr.bf16.mxu0 0
  %2667 = vmatmul.mubr.bf16.gmra.mrb[0].mxu0 %v2632
  %v2668 = vpop.f32.mrb[0].mxu0
  %v2669 = vadd.f32 0.0, %v2668
  %v2670 = vpop.f32.mrb[0].mxu0
  %v2671 = vpop.f32.mrb[0].mxu0
  %v2672 = vpop.f32.mrb[0].mxu0
  %2673 = vdwg.mxu0
  %2675 = vrot.lane.b32.xlu0 %v2669, 16
  %v2676 = vpop.permute.xlu0 %2675
  %2678 = vst.msk [vmem:[#allocation2] sm:$0xff] %vm508, %v2676
  %2679 = vrot.lane.b32.xlu0 %v2344, 104
  %v2680 = vpop.permute.xlu0 %2679
  %2681 = vrot.lane.b32.xlu0 %v2345, 104
  %v2682 = vpop.permute.xlu0 %2681
  %v2684 = vsel %vm169, %v2680, 0
  %v2687 = vsel %vm169, %v2682, 0
  %2689 = vmatprep.subr.bf16.mxu0 0
  %2690 = vmatpush1.bf16.xpose.msra.mxu0 %v2687
  %2691 = vmatprep.subr.bf16.mxu0 0
  %2692 = vmatpush1.bf16.xpose.msra.mxu0 0
  %2693 = vmatprep.subr.bf16.mxu0 0
  %2694 = vmatpush1.bf16.xpose.msra.mxu0 0
  %2695 = vmatprep.subr.bf16.mxu0 0
  %2696 = vmatpush1.bf16.xpose.msra.mxu0 0
  %2697 = vmatprep.subr.bf16.mxu0 0
  %2698 = vmatpush1.bf16.xpose.msra.mxu0 0
  %2699 = vmatprep.subr.bf16.mxu0 0
  %2700 = vmatpush1.bf16.xpose.msra.mxu0 0
  %2701 = vmatprep.subr.bf16.mxu0 0
  %2702 = vmatpush1.bf16.xpose.msra.mxu0 0
  %2703 = vmatprep.subr.bf16.mxu0 0
  %2704 = vmatpush1.bf16.xpose.msra.mxu0 0
  %2705 = vmatprep.subr.bf16.mxu0 0
  %2706 = vmatpush1.bf16.xpose.msra.mxu0 0
  %2707 = vmatprep.subr.bf16.mxu0 0
  %2708 = vmatpush1.bf16.xpose.msra.mxu0 0
  %2709 = vmatprep.subr.bf16.mxu0 0
  %2710 = vmatpush1.bf16.xpose.msra.mxu0 0
  %2711 = vmatprep.subr.bf16.mxu0 0
  %2712 = vmatpush1.bf16.xpose.msra.mxu0 0
  %2713 = vmatprep.subr.bf16.mxu0 0
  %2714 = vmatpush1.bf16.xpose.msra.mxu0 0
  %2715 = vmatprep.subr.bf16.mxu0 0
  %2716 = vmatpush1.bf16.xpose.msra.mxu0 0
  %2717 = vmatprep.subr.bf16.mxu0 0
  %2718 = vmatpush1.bf16.xpose.msra.mxu0 0
  %2719 = vmatprep.subr.bf16.mxu0 0
  %2720 = vmatpush1.bf16.xpose.msra.mxu0 0
  %2721 = vmatprep.mubr.bf16.mxu0 0
  %2722 = vmatmul.mubr.bf16.gmra.mrb[0].mxu0 %v2684
  %v2723 = vpop.f32.mrb[0].mxu0
  %v2724 = vadd.f32 0.0, %v2723
  %v2725 = vpop.f32.mrb[0].mxu0
  %v2726 = vpop.f32.mrb[0].mxu0
  %v2727 = vpop.f32.mrb[0].mxu0
  %2728 = vdwg.mxu0
  %v2729 = vsel %vm909, %v2724, -inf
  %2730 = vmax.xlane.f32.xlu0 %v2729
  %v2731 = vpop.xlane.xlu0 %2730
  %v2732 = vsub.f32 %v2724, %v2731
  %v2733 = vmul.f32 %v2732, 1.442695
  %v2734 = vpow.pop %v2733
  %v2735 = vsel %vm909, %v2734, 0.0
  %2736 = vadd.xlane.f32.xlu0 %v2735
  %v2737 = vpop.xlane.xlu0 %2736
  %v2738 = vrcp.pop %v2737
  %v2739 = vmul.f32 %v2734, %v2738
  %v2740 = vpack.c.bf16 %v2739, %v2739
  %2741 = vrot.lane.b32.xlu0 %v2345, 72
  %v2742 = vpop.permute.xlu0 %2741
  %v2745 = vsel %vm909, %v2740, 0
  %2747 = vmatprep.subr.bf16.mxu0 0
  %2748 = vmatpush1.bf16.msra.mxu0 %v2742
  %2749 = vmatprep.subr.bf16.mxu0 0
  %2750 = vmatpush1.bf16.msra.mxu0 0
  %2751 = vmatprep.subr.bf16.mxu0 0
  %2752 = vmatpush1.bf16.msra.mxu0 0
  %2753 = vmatprep.subr.bf16.mxu0 0
  %2754 = vmatpush1.bf16.msra.mxu0 0
  %2755 = vmatprep.subr.bf16.mxu0 0
  %2756 = vmatpush1.bf16.msra.mxu0 0
  %2757 = vmatprep.subr.bf16.mxu0 0
  %2758 = vmatpush1.bf16.msra.mxu0 0
  %2759 = vmatprep.subr.bf16.mxu0 0
  %2760 = vmatpush1.bf16.msra.mxu0 0
  %2761 = vmatprep.subr.bf16.mxu0 0
  %2762 = vmatpush1.bf16.msra.mxu0 0
  %2763 = vmatprep.subr.bf16.mxu0 0
  %2764 = vmatpush1.bf16.msra.mxu0 0
  %2765 = vmatprep.subr.bf16.mxu0 0
  %2766 = vmatpush1.bf16.msra.mxu0 0
  %2767 = vmatprep.subr.bf16.mxu0 0
  %2768 = vmatpush1.bf16.msra.mxu0 0
  %2769 = vmatprep.subr.bf16.mxu0 0
  %2770 = vmatpush1.bf16.msra.mxu0 0
  %2771 = vmatprep.subr.bf16.mxu0 0
  %2772 = vmatpush1.bf16.msra.mxu0 0
  %2773 = vmatprep.subr.bf16.mxu0 0
  %2774 = vmatpush1.bf16.msra.mxu0 0
  %2775 = vmatprep.subr.bf16.mxu0 0
  %2776 = vmatpush1.bf16.msra.mxu0 0
  %2777 = vmatprep.subr.bf16.mxu0 0
  %2778 = vmatpush1.bf16.msra.mxu0 0
  %2779 = vmatprep.mubr.bf16.mxu0 0
  %2780 = vmatmul.mubr.bf16.gmra.mrb[0].mxu0 %v2745
  %v2781 = vpop.f32.mrb[0].mxu0
  %v2782 = vadd.f32 0.0, %v2781
  %v2783 = vpop.f32.mrb[0].mxu0
  %v2784 = vpop.f32.mrb[0].mxu0
  %v2785 = vpop.f32.mrb[0].mxu0
  %2786 = vdwg.mxu0
  %2788 = vrot.lane.b32.xlu0 %v2782, 24
  %v2789 = vpop.permute.xlu0 %2788
  %2791 = vst.msk [vmem:[#allocation2] sm:$0xff] %vm624, %v2789
  %v2792 = vld [vmem:[#allocation2] sm:$0xff]
  %v2793 = vpack.c.bf16 %v2792, %v2792
  %s2794 = scalar_lea.vmem %s10, 16
  %v2795 = vld [vmem:[%s2794] sm:$0xf]
  %v2796 = vld [vmem:[%s2794 + $0x4] sm:$0xf]
  %v2797 = vld [vmem:[%s2794 + $0x8] sm:$0xf]
  %v2798 = vld [vmem:[%s2794 + $0xc] sm:$0xf]
  %s2799 = scalar_lea.vmem %s11, 1
  %v2800 = vld [vmem:[%s2799] sm:$0x1]
  %v2802 = vlaneseq
  %v2803 = vshrl.u32 %v2802, 7
  %v2804 = vsub.s32 0, %v2803
  %v2805 = vrot.slane %v2800, %v2804
  %v2811 = vunpack.c.l.b16 %v2795
  %v2812 = vunpack.c.l.b16 %v2796
  %v2813 = vunpack.c.l.b16 %v2797
  %v2814 = vunpack.c.l.b16 %v2798
  %v2815 = vpack.c.b16 %v2812, %v2811
  %v2816 = vpack.c.b16 %v2814, %v2813
  %v2820 = vsel %vm71, %v2793, 0
  %2822 = vmatprep.subr.bf16.mxu0 0
  %2823 = vmatpush1.bf16.msra.mxu0 %v2815
  %2824 = vmatprep.subr.bf16.mxu0 0
  %2825 = vmatpush1.bf16.msra.mxu0 %v2816
  %2826 = vmatprep.subr.bf16.mxu0 0
  %2827 = vmatpush1.bf16.msra.mxu0 0
  %2828 = vmatprep.subr.bf16.mxu0 0
  %2829 = vmatpush1.bf16.msra.mxu0 0
  %2830 = vmatprep.subr.bf16.mxu0 0
  %2831 = vmatpush1.bf16.msra.mxu0 0
  %2832 = vmatprep.subr.bf16.mxu0 0
  %2833 = vmatpush1.bf16.msra.mxu0 0
  %2834 = vmatprep.subr.bf16.mxu0 0
  %2835 = vmatpush1.bf16.msra.mxu0 0
  %2836 = vmatprep.subr.bf16.mxu0 0
  %2837 = vmatpush1.bf16.msra.mxu0 0
  %2838 = vmatprep.subr.bf16.mxu0 0
  %2839 = vmatpush1.bf16.msra.mxu0 0
  %2840 = vmatprep.subr.bf16.mxu0 0
  %2841 = vmatpush1.bf16.msra.mxu0 0
  %2842 = vmatprep.subr.bf16.mxu0 0
  %2843 = vmatpush1.bf16.msra.mxu0 0
  %2844 = vmatprep.subr.bf16.mxu0 0
  %2845 = vmatpush1.bf16.msra.mxu0 0
  %2846 = vmatprep.subr.bf16.mxu0 0
  %2847 = vmatpush1.bf16.msra.mxu0 0
  %2848 = vmatprep.subr.bf16.mxu0 0
  %2849 = vmatpush1.bf16.msra.mxu0 0
  %2850 = vmatprep.subr.bf16.mxu0 0
  %2851 = vmatpush1.bf16.msra.mxu0 0
  %2852 = vmatprep.subr.bf16.mxu0 0
  %2853 = vmatpush1.bf16.msra.mxu0 0
  %2854 = vmatprep.mubr.bf16.mxu0 0
  %2855 = vmatmul.mubr.bf16.gmra.mrb[0].mxu0 %v2820
  %v2856 = vpop.f32.mrb[0].mxu0
  %v2857 = vadd.f32 %v2805, %v2856
  %v2858 = vpop.f32.mrb[0].mxu0
  %v2859 = vpop.f32.mrb[0].mxu0
  %v2860 = vpop.f32.mrb[0].mxu0
  %2861 = vdwg.mxu0
  %v2862 = vadd.f32 %v2857, %v2208
  %v2863 = vld [vmem:[%s16 + $0x5] sm:$0x1]
  %v2864 = vld [vmem:[%s17 + $0x5] sm:$0x1]
  %v2865 = vsel %vm71, %v2862, 0.0
  %2866 = vadd.xlane.f32.xlu0 %v2865
  %v2867 = vpop.xlane.xlu0 %2866
  %v2868 = vmul.f32 %v2867, %v75
  %v2869 = vmul.f32 %v2862, %v2862
  %v2870 = vsel %vm71, %v2869, 0.0
  %2871 = vadd.xlane.f32.xlu0 %v2870
  %v2872 = vpop.xlane.xlu0 %2871
  %v2873 = vmul.f32 %v2872, %v75
  %v2874 = vmul.f32 %v2868, %v2868
  %v2875 = vsub.f32 %v2873, %v2874
  %v2876 = vsub.f32 %v2862, %v2868
  %v2877 = vadd.f32 %v2875, 1e-05
  %v2878 = vrsqrt.pop %v2877
  %v2879 = vmul.f32 %v2876, %v2878
  %v2880 = vlaneseq
  %v2881 = vshrl.u32 %v2880, 7
  %v2882 = vsub.s32 0, %v2881
  %v2883 = vrot.slane %v2863, %v2882
  %v2884 = vmul.f32 %v2879, %v2883
  %v2885 = vlaneseq
  %v2886 = vshrl.u32 %v2885, 7
  %v2887 = vsub.s32 0, %v2886
  %v2888 = vrot.slane %v2864, %v2887
  %v2889 = vadd.f32 %v2884, %v2888
  %v2890 = vpack.c.bf16 %v2889, %v2889
  %s2891 = scalar_lea.vmem %s12, 16
  %v2892 = vld [vmem:[%s2891] sm:$0xf]
  %v2893 = vld [vmem:[%s2891 + $0x4] sm:$0xf]
  %v2894 = vld [vmem:[%s2891 + $0x8] sm:$0xf]
  %v2895 = vld [vmem:[%s2891 + $0xc] sm:$0xf]
  %s2896 = scalar_lea.vmem %s13, 1
  %v2897 = vld [vmem:[%s2896] sm:$0x1]
  %v2899 = vlaneseq
  %v2900 = vshrl.u32 %v2899, 7
  %v2901 = vsub.s32 0, %v2900
  %v2902 = vrot.slane %v2897, %v2901
  %v2908 = vunpack.c.l.b16 %v2892
  %v2909 = vunpack.c.l.b16 %v2893
  %v2910 = vunpack.c.l.b16 %v2894
  %v2911 = vunpack.c.l.b16 %v2895
  %v2912 = vpack.c.b16 %v2909, %v2908
  %v2913 = vpack.c.b16 %v2911, %v2910
  %v2917 = vsel %vm71, %v2890, 0
  %2919 = vmatprep.subr.bf16.mxu0 0
  %2920 = vmatpush1.bf16.msra.mxu0 %v2912
  %2921 = vmatprep.subr.bf16.mxu0 0
  %2922 = vmatpush1.bf16.msra.mxu0 %v2913
  %2923 = vmatprep.subr.bf16.mxu0 0
  %2924 = vmatpush1.bf16.msra.mxu0 0
  %2925 = vmatprep.subr.bf16.mxu0 0
  %2926 = vmatpush1.bf16.msra.mxu0 0
  %2927 = vmatprep.subr.bf16.mxu0 0
  %2928 = vmatpush1.bf16.msra.mxu0 0
  %2929 = vmatprep.subr.bf16.mxu0 0
  %2930 = vmatpush1.bf16.msra.mxu0 0
  %2931 = vmatprep.subr.bf16.mxu0 0
  %2932 = vmatpush1.bf16.msra.mxu0 0
  %2933 = vmatprep.subr.bf16.mxu0 0
  %2934 = vmatpush1.bf16.msra.mxu0 0
  %2935 = vmatprep.subr.bf16.mxu0 0
  %2936 = vmatpush1.bf16.msra.mxu0 0
  %2937 = vmatprep.subr.bf16.mxu0 0
  %2938 = vmatpush1.bf16.msra.mxu0 0
  %2939 = vmatprep.subr.bf16.mxu0 0
  %2940 = vmatpush1.bf16.msra.mxu0 0
  %2941 = vmatprep.subr.bf16.mxu0 0
  %2942 = vmatpush1.bf16.msra.mxu0 0
  %2943 = vmatprep.subr.bf16.mxu0 0
  %2944 = vmatpush1.bf16.msra.mxu0 0
  %2945 = vmatprep.subr.bf16.mxu0 0
  %2946 = vmatpush1.bf16.msra.mxu0 0
  %2947 = vmatprep.subr.bf16.mxu0 0
  %2948 = vmatpush1.bf16.msra.mxu0 0
  %2949 = vmatprep.subr.bf16.mxu0 0
  %2950 = vmatpush1.bf16.msra.mxu0 0
  %2951 = vmatprep.mubr.bf16.mxu0 0
  %2952 = vmatmul.mubr.bf16.gmra.mrb[0].mxu0 %v2917
  %v2953 = vpop.f32.mrb[0].mxu0
  %v2954 = vadd.f32 %v2902, %v2953
  %v2955 = vpop.f32.mrb[0].mxu0
  %v2956 = vpop.f32.mrb[0].mxu0
  %v2957 = vpop.f32.mrb[0].mxu0
  %2958 = vdwg.mxu0
  %v2959 = vmax.f32 %v2954, 0.0
  %v2960 = vpack.c.bf16 %v2959, %v2959
  %s2961 = scalar_lea.vmem %s14, 32
  %v2962 = vld [vmem:[%s2961] sm:$0xf]
  %v2963 = vld [vmem:[%s2961 + $0x4] sm:$0xf]
  %v2964 = vld [vmem:[%s2961 + $0x8] sm:$0xf]
  %v2965 = vld [vmem:[%s2961 + $0xc] sm:$0xf]
  %v2966 = vld [vmem:[%s2961 + $0x10] sm:$0xf]
  %v2967 = vld [vmem:[%s2961 + $0x14] sm:$0xf]
  %v2968 = vld [vmem:[%s2961 + $0x18] sm:$0xf]
  %v2969 = vld [vmem:[%s2961 + $0x1c] sm:$0xf]
  %s2970 = scalar_lea.vmem %s15, 1
  %v2971 = vld [vmem:[%s2970] sm:$0x1]
  %v2973 = vlaneseq
  %v2974 = vshrl.u32 %v2973, 7
  %v2975 = vsub.s32 0, %v2974
  %v2976 = vrot.slane %v2971, %v2975
  %v2986 = vunpack.c.l.b16 %v2962
  %v2987 = vunpack.c.l.b16 %v2963
  %v2988 = vunpack.c.l.b16 %v2964
  %v2989 = vunpack.c.l.b16 %v2965
  %v2990 = vunpack.c.l.b16 %v2966
  %v2991 = vunpack.c.l.b16 %v2967
  %v2992 = vunpack.c.l.b16 %v2968
  %v2993 = vunpack.c.l.b16 %v2969
  %v2994 = vpack.c.b16 %v2987, %v2986
  %v2995 = vpack.c.b16 %v2989, %v2988
  %v2996 = vpack.c.b16 %v2991, %v2990
  %v2997 = vpack.c.b16 %v2993, %v2992
  %v3003 = vsel %vm1514, %v2960, 0
  %3005 = vmatprep.subr.bf16.mxu0 0
  %3006 = vmatpush1.bf16.msra.mxu0 %v2994
  %3007 = vmatprep.subr.bf16.mxu0 0
  %3008 = vmatpush1.bf16.msra.mxu0 %v2995
  %3009 = vmatprep.subr.bf16.mxu0 0
  %3010 = vmatpush1.bf16.msra.mxu0 %v2996
  %3011 = vmatprep.subr.bf16.mxu0 0
  %3012 = vmatpush1.bf16.msra.mxu0 %v2997
  %3013 = vmatprep.subr.bf16.mxu0 0
  %3014 = vmatpush1.bf16.msra.mxu0 0
  %3015 = vmatprep.subr.bf16.mxu0 0
  %3016 = vmatpush1.bf16.msra.mxu0 0
  %3017 = vmatprep.subr.bf16.mxu0 0
  %3018 = vmatpush1.bf16.msra.mxu0 0
  %3019 = vmatprep.subr.bf16.mxu0 0
  %3020 = vmatpush1.bf16.msra.mxu0 0
  %3021 = vmatprep.subr.bf16.mxu0 0
  %3022 = vmatpush1.bf16.msra.mxu0 0
  %3023 = vmatprep.subr.bf16.mxu0 0
  %3024 = vmatpush1.bf16.msra.mxu0 0
  %3025 = vmatprep.subr.bf16.mxu0 0
  %3026 = vmatpush1.bf16.msra.mxu0 0
  %3027 = vmatprep.subr.bf16.mxu0 0
  %3028 = vmatpush1.bf16.msra.mxu0 0
  %3029 = vmatprep.subr.bf16.mxu0 0
  %3030 = vmatpush1.bf16.msra.mxu0 0
  %3031 = vmatprep.subr.bf16.mxu0 0
  %3032 = vmatpush1.bf16.msra.mxu0 0
  %3033 = vmatprep.subr.bf16.mxu0 0
  %3034 = vmatpush1.bf16.msra.mxu0 0
  %3035 = vmatprep.subr.bf16.mxu0 0
  %3036 = vmatpush1.bf16.msra.mxu0 0
  %3037 = vmatprep.mubr.bf16.mxu0 0
  %3038 = vmatmul.mubr.bf16.gmra.mrb[0].mxu0 %v3003
  %v3039 = vpop.f32.mrb[0].mxu0
  %v3040 = vadd.f32 %v2976, %v3039
  %v3041 = vpop.f32.mrb[0].mxu0
  %v3042 = vpop.f32.mrb[0].mxu0
  %v3043 = vpop.f32.mrb[0].mxu0
  %3044 = vdwg.mxu0
  %v3045 = vadd.f32 %v3040, %v2889
  %v3046 = vld [vmem:[%s16 + $0x6] sm:$0x1]
  %v3047 = vld [vmem:[%s17 + $0x6] sm:$0x1]
  %v3048 = vsel %vm71, %v3045, 0.0
  %3049 = vadd.xlane.f32.xlu0 %v3048
  %v3050 = vpop.xlane.xlu0 %3049
  %v3051 = vmul.f32 %v3050, %v75
  %v3052 = vmul.f32 %v3045, %v3045
  %v3053 = vsel %vm71, %v3052, 0.0
  %3054 = vadd.xlane.f32.xlu0 %v3053
  %v3055 = vpop.xlane.xlu0 %3054
  %v3056 = vmul.f32 %v3055, %v75
  %v3057 = vmul.f32 %v3051, %v3051
  %v3058 = vsub.f32 %v3056, %v3057
  %v3059 = vsub.f32 %v3045, %v3051
  %v3060 = vadd.f32 %v3058, 1e-05
  %v3061 = vrsqrt.pop %v3060
  %v3062 = vmul.f32 %v3059, %v3061
  %v3063 = vlaneseq
  %v3064 = vshrl.u32 %v3063, 7
  %v3065 = vsub.s32 0, %v3064
  %v3066 = vrot.slane %v3046, %v3065
  %v3067 = vmul.f32 %v3062, %v3066
  %v3068 = vlaneseq
  %v3069 = vshrl.u32 %v3068, 7
  %v3070 = vsub.s32 0, %v3069
  %v3071 = vrot.slane %v3047, %v3070
  %v3072 = vadd.f32 %v3067, %v3071
  %v3073 = vpack.c.bf16 %v3072, %v3072
  %vm3074 = vcmask 257024
  %3075 = vst.msk [vmem:[%s18] sm:$0xf] %vm3074, %v3073
  // Predicated region
  $region74: #{decoder_wrapper_forward.2} parent=0 // pred_check
    _
  $region75: #{decoder_wrapper_forward.2} parent=0 // pred_check_branch
    %3077 = sbr.rel (0) target = $region77
  $region76: #{decoder_wrapper_forward.2} parent=0 // pred_region
    _
  $region77: #{decoder_wrapper_forward.2} parent=0 // pred_fallthru
    _
  // Predicated region
  $region78: #{decoder_wrapper_forward.2} parent=0 // pred_check
    _
  $region79: #{decoder_wrapper_forward.2} parent=0 // pred_check_branch
    %3079 = sbr.rel (0) target = $region81
  $region80: #{decoder_wrapper_forward.2} parent=0 // pred_region
    _
  $region81: #{decoder_wrapper_forward.2} parent=0 // pred_fallthru
    _

</llo_original>
